<compile_context>
chip_gen: v7x
topology: tpu7x:2x2x1
jax: 0.10.0
libtpu: 0.0.40
codegen_flags: <defaults>
</compile_context>

<pallas_src>
import numpy as np

import jax
import jax.numpy as jnp
from jax.experimental import pallas as pl
from jax.experimental.pallas import tpu as pltpu


# -----------------------------------------------------------------------------
# Host-side deterministic construction of the DFT / inverse-rFFT matrices
# -----------------------------------------------------------------------------
def create_dft_kernels(n_fft, fmin=50.0, fmax=5000.0, sr=16000.0):
    """Mirror of the reference create_dft_kernels (freq_bins=None)."""
    freq_bins = (n_fft - 1) // 2 + 1
    s = np.arange(n_fft, dtype=np.float64)
    k = np.arange(freq_bins, dtype=np.float64)
    start_bin = fmin * n_fft / sr
    scaling_ind = (fmax - fmin) * (n_fft / sr) / freq_bins
    freq = (k * scaling_ind + start_bin) * sr / n_fft            # (F,)
    ang = 2.0 * np.pi * freq[:, None] * s[None, :] / sr          # (F, N)
    wsin = np.sin(ang).astype(np.float32)
    wcos = np.cos(ang).astype(np.float32)
    return wsin, wcos, freq_bins


def create_irfft_matrices(n, freq_bins):
    """Matrices so that irfft(X, n, norm='ortho')[t] = icos[t,:]@Re(X) - isin[t,:]@Im(X).
    Matches torch.fft.irfft semantics (Hermitian extension; Im of DC ignored because
    sin(0)=0; missing Nyquist bin is implicitly zero-padded)."""
    t = np.arange(n, dtype=np.float64)
    f = np.arange(freq_bins, dtype=np.float64)
    coef = np.full(freq_bins, 2.0 / np.sqrt(n))
    coef[0] = 1.0 / np.sqrt(n)
    if n % 2 == 0 and freq_bins == n // 2 + 1:                   # Nyquist bin (not hit here)
        coef[-1] = 1.0 / np.sqrt(n)
    ang = 2.0 * np.pi * f[None, :] * t[:, None] / n              # (N, F)
    icos = (np.cos(ang) * coef[None, :]).astype(np.float32)
    isin = (np.sin(ang) * coef[None, :]).astype(np.float32)
    return icos, isin


# -----------------------------------------------------------------------------
# Deterministic parameter initialization (shapes follow the nn.Module __init__)
# -----------------------------------------------------------------------------
def init_params(key, C, H):
    ks = jax.random.split(key, 11)
    p = {}
    # LayerNorm default init
    p["g1"] = np.ones((C,), np.float32)
    p["b1"] = np.zeros((C,), np.float32)
    p["g2"] = np.ones((C,), np.float32)
    p["b2"] = np.zeros((C,), np.float32)
    # Adaptive_Spectral_Block complex weights (dim, 2) ~ trunc_normal(std=0.02)
    cw = 0.02 * jax.random.truncated_normal(ks[0], -2.0, 2.0, (C, 2), jnp.float32)
    cwh = 0.02 * jax.random.truncated_normal(ks[1], -2.0, 2.0, (C, 2), jnp.float32)
    p["wr"] = np.asarray(cw[:, 0], np.float32)
    p["wi"] = np.asarray(cw[:, 1], np.float32)
    p["whr"] = np.asarray(cwh[:, 0], np.float32)
    p["whi"] = np.asarray(cwh[:, 1], np.float32)
    # scalar parameters (baked into the kernel as compile-time constants)
    p["less_coeff"] = float(jax.random.uniform(ks[2], ()))
    p["greater_coeff"] = float(jax.random.uniform(ks[3], ()) + 1.0)
    p["threshold"] = float(jax.random.uniform(ks[4], ()))
    # ICB Conv1d weights (PyTorch: conv1 (H,C,1), conv2 (H,C,3), conv3 (C,H,1))
    p["w1"] = np.asarray(0.1 * jax.random.normal(ks[5], (H, C)), np.float32)
    p["bc1"] = np.asarray(0.1 * jax.random.normal(ks[6], (H,)), np.float32)
    p["w2"] = np.asarray(0.1 * jax.random.normal(ks[7], (H, C, 3)), np.float32)
    p["bc2"] = np.asarray(0.1 * jax.random.normal(ks[8], (H,)), np.float32)
    p["w3"] = np.asarray(0.1 * jax.random.normal(ks[9], (C, H)), np.float32)
    p["bc3"] = np.asarray(0.1 * jax.random.normal(ks[10], (C,)), np.float32)
    return p


# -----------------------------------------------------------------------------
# Exact-GELU helpers (erf via an f32-accurate rational approximation)
# -----------------------------------------------------------------------------
def _erf(v):
    a = jnp.abs(v)
    t = 1.0 / (1.0 + 0.5 * a)
    poly = t * jnp.exp(
        -a * a - 1.26551223
        + t * (1.00002368 + t * (0.37409196 + t * (0.09678418
        + t * (-0.18628806 + t * (0.27886807 + t * (-1.13520398
        + t * (1.48851587 + t * (-0.82215223 + t * 0.17087277))))))))
    )
    return jnp.where(v >= 0.0, 1.0 - poly, poly - 1.0)


def _gelu_exact(v):
    return 0.5 * v * (1.0 + _erf(v * float(1.0 / np.sqrt(2.0))))


# Packed per-row parameter columns (one (BH, 16) slab; column index per parameter).
_PCOL = {"g1": 0, "b1": 1, "g2": 2, "b2": 3, "wr": 4, "wi": 5,
         "whr": 6, "whi": 7, "bc3": 8, "bc1": 9, "bc2": 10}
_NPCOL = 16


# -----------------------------------------------------------------------------
# Pallas kernel builder
# -----------------------------------------------------------------------------
def build_block_forward(B, N, C, H, params, wsin, wcos, icos, isin):
    F = int(wsin.shape[0])
    BC, BH = B * C, B * H
    WIN = 512                                  # temporal_background_equalization window

    l_coeff = float(params["less_coeff"])
    g_coeff = float(params["greater_coeff"])
    thr = float(params["threshold"])
    k_med = (F - 1) // 2                       # torch.median -> lower median (0-indexed)

    eye_b = np.eye(B, dtype=np.float32)

    def bdiag(w):                              # (a, b) -> block-diagonal (B*a, B*b)
        return np.kron(eye_b, np.asarray(w, np.float32)).astype(np.float32)

    def tile_b(v):                             # (K,) per-channel -> (B*K,) per-row
        return np.tile(np.asarray(v, np.float32).reshape(-1), B)

    # ---- constant matrices (activation slab stays (rows, time) throughout) ----
    # LayerNorm channel mean (left-multiplied block-diag 1/C; broadcast falls out).
    MAVG = bdiag(np.full((C, C), 1.0 / C, np.float32))                        # (BC, BC)

    # time-axis matrices (right-multiplied):
    #   [0] per-window time mean, [1] shift to t-1 (zero pad), [2] shift to t+1 (zero pad)
    MTIME = np.zeros((N, N), np.float32)
    for i0 in range(0, N, WIN):
        blk = min(WIN, N - i0)
        MTIME[i0:i0 + blk, i0:i0 + blk] = 1.0 / blk
    SPREV = np.eye(N, k=1, dtype=np.float32)
    SNEXT = np.eye(N, k=-1, dtype=np.float32)
    TIMEM = np.stack([MTIME, SPREV, SNEXT])                                   # (3, N, N)

    # forward custom DFT (right-multiplied): Re = y @ wcos^T, Im = y @ (-wsin^T)
    FWD = np.stack([np.asarray(wcos, np.float32).T,
                    -np.asarray(wsin, np.float32).T])                         # (2, N, F)
    # irfft(n=N, norm='ortho') (right-multiplied): t = Re @ icos^T + Im @ (-isin^T)
    INV = np.stack([np.asarray(icos, np.float32).T,
                    -np.asarray(isin, np.float32).T])                         # (2, F, N)

    # per-batch channel-sum for the adaptive-mask energy (left-multiplied)
    SUMB = np.kron(eye_b, np.ones((1, C), np.float32)).astype(np.float32)     # (B, BC)

    # ICB conv weights, block-diagonal over the batch (left-multiplied):
    #   [0] conv1 (k=1), [1..3] conv2 taps for t-1 / t / t+1
    WCONV = np.stack([bdiag(params["w1"]),
                      bdiag(params["w2"][:, :, 0]),
                      bdiag(params["w2"][:, :, 1]),
                      bdiag(params["w2"][:, :, 2])])                          # (4, BH, BC)
    W3L = bdiag(params["w3"])                                                 # (BC, BH)

    # all per-row parameter vectors packed into one slab
    ppack = np.zeros((BH, _NPCOL), np.float32)
    per_row = {"g1": tile_b(params["g1"]), "b1": tile_b(params["b1"]),
               "g2": tile_b(params["g2"]), "b2": tile_b(params["b2"]),
               "wr": tile_b(params["wr"]), "wi": tile_b(params["wi"]),
               "whr": tile_b(params["whr"]), "whi": tile_b(params["whi"]),
               "bc3": tile_b(params["bc3"]),
               "bc1": tile_b(params["bc1"]), "bc2": tile_b(params["bc2"])}
    for name, vec in per_row.items():
        ppack[:vec.shape[0], _PCOL[name]] = vec

    const_arrays = [jnp.asarray(a) for a in
                    (MAVG, TIMEM, FWD, INV, SUMB, WCONV, W3L, ppack)]

    def kernel(x_ref, mavg_ref, timem_ref, fwd_ref, inv_ref, sumb_ref,
               wconv_ref, w3_ref, pp_ref, out_ref):
        f32 = jnp.float32
        x = x_ref[...]                                    # (BC, N): rows=(b,c), lanes=time
        mavg = mavg_ref[...]
        pp = pp_ref[...]

        def pcol(name, rows):                             # (rows, 1) per-row column
            j = _PCOL[name]
            return pp[:rows, j:j + 1]

        g1, b1 = pcol("g1", BC), pcol("b1", BC)
        g2, b2 = pcol("g2", BC), pcol("b2", BC)
        wr, wi = pcol("wr", BC), pcol("wi", BC)
        whr, whi = pcol("whr", BC), pcol("whi", BC)
        bc1, bc2 = pcol("bc1", BH), pcol("bc2", BH)
        bc3 = pcol("bc3", BC)

        # ---------------- LayerNorm1 over channels (block-diag matmuls) ----------
        mu = jnp.dot(mavg, x, preferred_element_type=f32)
        d = x - mu
        var = jnp.dot(mavg, d * d, preferred_element_type=f32)
        y = d * jax.lax.rsqrt(var + 1e-5) * g1 + b1

        # ---------------- temporal background equalization -----------------------
        wm = jnp.dot(y, timem_ref[0], preferred_element_type=f32)   # window means (MXU)
        yeq = jnp.where(y > wm, y * g_coeff, y * l_coeff)

        # ---------------- custom (non-uniform frequency) DFT ----------------------
        xr = jnp.dot(yeq, fwd_ref[0], preferred_element_type=f32)   # (BC, F) Re
        xi = jnp.dot(yeq, fwd_ref[1], preferred_element_type=f32)   # (BC, F) Im

        # ---------------- per-channel complex spectral weighting ------------------
        out_r = xr * wr - xi * wi
        out_i = xr * wi + xi * wr

        # -------- adaptive high-frequency mask (per-batch lower median) -----------
        p = xr * xr + xi * xi                                        # |X|^2  (BC, F)
        e = jnp.dot(sumb_ref[...], p, preferred_element_type=f32)   # (B, F) energies
        ones_row = jnp.ones((1, F), f32)
        ones_ff = jnp.ones((F, F), f32)
        # frequency-on-sublanes replica of the energies is built with a diag*ones
        # matmul (keeps everything on VPU/MXU paths; no in-kernel transpose).
        eye_f = (jax.lax.broadcasted_iota(jnp.int32, (F, F), 0)
                 == jax.lax.broadcasted_iota(jnp.int32, (F, F), 1))
        mask_rows = []
        for b in range(B):
            e_row = e[b:b + 1, :]                                    # (1, F)
            diag_e = jnp.where(eye_f, e_row, 0.0)                    # diag(e_b)
            e_colrep = jnp.dot(diag_e, ones_ff,
                               preferred_element_type=f32)           # [k, j] = e_b[k]
            lt = jnp.dot(ones_row, (e_colrep < e_row).astype(f32),
                         preferred_element_type=f32)                 # (1, F) rank counts
            le = jnp.dot(ones_row, (e_colrep <= e_row).astype(f32),
                         preferred_element_type=f32)
            is_med = jnp.logical_and(lt <= float(k_med), le >= float(k_med + 1))
            med = jnp.max(jnp.where(is_med, e_row, -1.0), axis=1, keepdims=True)
            # energy / (med + 1e-6) > thr  <=>  energy > thr * (med + 1e-6)   (med >= 0)
            m_b = (e_row > thr * (med + 1e-6)).astype(f32)           # (1, F)
            mask_rows.append(jnp.broadcast_to(m_b, (C, F)))          # sublane broadcast
        mask = mask_rows[0] if B == 1 else jnp.concatenate(mask_rows, axis=0)

        mr = xr * mask
        mi = xi * mask
        out_r = out_r + mr * whr - mi * whi
        out_i = out_i + mr * whi + mi * whr

        # ---------------- irfft(n=N, norm='ortho') --------------------------------
        t = (jnp.dot(out_r, inv_ref[0], preferred_element_type=f32)
             + jnp.dot(out_i, inv_ref[1], preferred_element_type=f32))  # (BC, N)

        # ---------------- LayerNorm2 -----------------------------------------------
        mu2 = jnp.dot(mavg, t, preferred_element_type=f32)
        d2 = t - mu2
        var2 = jnp.dot(mavg, d2 * d2, preferred_element_type=f32)
        z = d2 * jax.lax.rsqrt(var2 + 1e-5) * g2 + b2

        # ---------------- ICB -------------------------------------------------------
        # time shifts via shift matrices on the MXU (zero padding built in, no concat)
        zprev = jnp.dot(z, timem_ref[1], preferred_element_type=f32)
        znext = jnp.dot(z, timem_ref[2], preferred_element_type=f32)
        x1 = jnp.dot(wconv_ref[0], z, preferred_element_type=f32) + bc1        # conv1
        x2 = (jnp.dot(wconv_ref[1], zprev, preferred_element_type=f32)
              + jnp.dot(wconv_ref[2], z, preferred_element_type=f32)
              + jnp.dot(wconv_ref[3], znext, preferred_element_type=f32)
              + bc2)                                                            # conv2 (k=3)
        gx1 = _gelu_exact(x1)
        gx2 = _gelu_exact(x2)
        icb = jnp.dot(w3_ref[...], x1 * gx2 + x2 * gx1,
                      preferred_element_type=f32) + bc3                         # conv3

        # ---------------- residual ---------------------------------------------------
        out_ref[...] = x + icb

    vmem_spec = pl.BlockSpec(memory_space=pltpu.MemorySpace.VMEM)
    call = pl.pallas_call(
        kernel,
        out_shape=jax.ShapeDtypeStruct((BC, N), jnp.float32),
        in_specs=[vmem_spec] * 9,
        out_specs=vmem_spec,
        # No grid: whole problem fits one TensorCore / <1 MiB VMEM.  When B grows,
        # add a batch grid axis with dimension_semantics=("parallel",) for v7x's
        # second core; default VMEM limits are ample so no vmem_limit override.
    )

    @jax.jit
    def forward(x):
        # (B, N, C) -> (B*C, N): time-on-lanes layout (wrapper-side layout plumbing).
        x2d = jnp.transpose(x.astype(jnp.float32), (0, 2, 1)).reshape(BC, N)
        out2d = call(x2d, *const_arrays)
        return jnp.transpose(out2d.reshape(B, C, N), (0, 2, 1))

    return forward


# -----------------------------------------------------------------------------
if __name__ == "__main__":
    B, N, C = 2, 128, 16          # batch, sequence length, dim
    mlp_ratio = 3.0
    H = int(C * mlp_ratio)        # 48

    key = jax.random.PRNGKey(0)
    kx, kp = jax.random.split(key)
    x = jax.random.normal(kx, (B, N, C), dtype=jnp.float32)

    params = init_params(kp, C, H)
    wsin, wcos, F = create_dft_kernels(N, fmin=50.0, fmax=5000.0, sr=16000.0)
    icos, isin = create_irfft_matrices(N, F)

    block_forward = build_block_forward(B, N, C, H, params, wsin, wcos, icos, isin)

    out = jax.block_until_ready(block_forward(x))

    assert out.shape == (B, N, C), out.shape
    assert bool(jnp.all(jnp.isfinite(out))), "non-finite output"
    print("KERNEL_OK")
</pallas_src>

<mosaic_0001>
module attributes {stable_mosaic.version = 11 : i64} {
  func.func @kernel(%arg0: memref<32x128xf32, #tpu.memory_space<vmem>>, %arg1: memref<32x32xf32, #tpu.memory_space<vmem>>, %arg2: memref<3x128x128xf32, #tpu.memory_space<vmem>>, %arg3: memref<2x128x64xf32, #tpu.memory_space<vmem>>, %arg4: memref<2x64x128xf32, #tpu.memory_space<vmem>>, %arg5: memref<2x32xf32, #tpu.memory_space<vmem>>, %arg6: memref<4x96x32xf32, #tpu.memory_space<vmem>>, %arg7: memref<32x96xf32, #tpu.memory_space<vmem>>, %arg8: memref<96x16xf32, #tpu.memory_space<vmem>>, %arg9: memref<32x128xf32, #tpu.memory_space<vmem>>) attributes {dimension_semantics = [], scalar_prefetch = 0 : i64, scratch_operands = 0 : i64, tpu.core_type = #tpu.core_type<tc>} {
    %c0 = arith.constant 0 : index
    %c0_0 = arith.constant 0 : index
    %0 = vector.load %arg0[%c0, %c0_0] : memref<32x128xf32, #tpu.memory_space<vmem>>, vector<32x128xf32>
    %c0_1 = arith.constant 0 : index
    %c0_2 = arith.constant 0 : index
    %1 = vector.load %arg1[%c0_1, %c0_2] : memref<32x32xf32, #tpu.memory_space<vmem>>, vector<32x32xf32>
    %c0_3 = arith.constant 0 : index
    %c0_4 = arith.constant 0 : index
    %2 = vector.load %arg8[%c0_3, %c0_4] : memref<96x16xf32, #tpu.memory_space<vmem>>, vector<96x16xf32>
    %3 = vector.extract_strided_slice %2 {offsets = [0, 0], sizes = [32, 1], strides = [1, 1]} : vector<96x16xf32> to vector<32x1xf32>
    %4 = vector.extract_strided_slice %2 {offsets = [0, 1], sizes = [32, 1], strides = [1, 1]} : vector<96x16xf32> to vector<32x1xf32>
    %5 = vector.extract_strided_slice %2 {offsets = [0, 2], sizes = [32, 1], strides = [1, 1]} : vector<96x16xf32> to vector<32x1xf32>
    %6 = vector.extract_strided_slice %2 {offsets = [0, 3], sizes = [32, 1], strides = [1, 1]} : vector<96x16xf32> to vector<32x1xf32>
    %7 = vector.extract_strided_slice %2 {offsets = [0, 4], sizes = [32, 1], strides = [1, 1]} : vector<96x16xf32> to vector<32x1xf32>
    %8 = vector.extract_strided_slice %2 {offsets = [0, 5], sizes = [32, 1], strides = [1, 1]} : vector<96x16xf32> to vector<32x1xf32>
    %9 = vector.extract_strided_slice %2 {offsets = [0, 6], sizes = [32, 1], strides = [1, 1]} : vector<96x16xf32> to vector<32x1xf32>
    %10 = vector.extract_strided_slice %2 {offsets = [0, 7], sizes = [32, 1], strides = [1, 1]} : vector<96x16xf32> to vector<32x1xf32>
    %11 = vector.extract_strided_slice %2 {offsets = [0, 9], sizes = [96, 1], strides = [1, 1]} : vector<96x16xf32> to vector<96x1xf32>
    %12 = vector.extract_strided_slice %2 {offsets = [0, 10], sizes = [96, 1], strides = [1, 1]} : vector<96x16xf32> to vector<96x1xf32>
    %13 = vector.extract_strided_slice %2 {offsets = [0, 8], sizes = [32, 1], strides = [1, 1]} : vector<96x16xf32> to vector<32x1xf32>
    %cst = arith.constant dense<0.000000e+00> : vector<32x128xf32>
    %14 = tpu.matmul %1, %0, %cst {dimension_numbers = #tpu.dot_dimension_numbers<[1], [0], [0], [1], [0, 0, 1, 1], [], []>} : vector<32x32xf32>, vector<32x128xf32>, vector<32x128xf32> -> vector<32x128xf32>
    %15 = arith.subf %0, %14 : vector<32x128xf32>
    %16 = arith.mulf %15, %15 : vector<32x128xf32>
    %cst_5 = arith.constant dense<0.000000e+00> : vector<32x128xf32>
    %17 = tpu.matmul %1, %16, %cst_5 {dimension_numbers = #tpu.dot_dimension_numbers<[1], [0], [0], [1], [0, 0, 1, 1], [], []>} : vector<32x32xf32>, vector<32x128xf32>, vector<32x128xf32> -> vector<32x128xf32>
    %cst_6 = arith.constant 9.99999974E-6 : f32
    %18 = vector.broadcast %cst_6 : f32 to vector<32x128xf32>
    %19 = arith.addf %17, %18 : vector<32x128xf32>
    %20 = math.rsqrt %19 : vector<32x128xf32>
    %21 = arith.mulf %15, %20 : vector<32x128xf32>
    %22 = vector.broadcast %3 : vector<32x1xf32> to vector<32x128xf32>
    %23 = arith.mulf %21, %22 : vector<32x128xf32>
    %24 = vector.broadcast %4 : vector<32x1xf32> to vector<32x128xf32>
    %25 = arith.addf %23, %24 : vector<32x128xf32>
    %c0_7 = arith.constant 0 : index
    %c0_8 = arith.constant 0 : index
    %c0_9 = arith.constant 0 : index
    %26 = vector.load %arg2[%c0_7, %c0_8, %c0_9] : memref<3x128x128xf32, #tpu.memory_space<vmem>>, vector<1x128x128xf32>
    %27 = vector.shape_cast %26 : vector<1x128x128xf32> to vector<128x128xf32>
    %cst_10 = arith.constant dense<0.000000e+00> : vector<32x128xf32>
    %28 = tpu.matmul %25, %27, %cst_10 {dimension_numbers = #tpu.dot_dimension_numbers<[1], [0], [0], [1], [0, 0, 1, 1], [], []>} : vector<32x128xf32>, vector<128x128xf32>, vector<32x128xf32> -> vector<32x128xf32>
    %29 = arith.cmpf ogt, %25, %28 : vector<32x128xf32>
    %cst_11 = arith.constant 1.95163083 : f32
    %30 = vector.broadcast %cst_11 : f32 to vector<32x128xf32>
    %31 = arith.mulf %25, %30 : vector<32x128xf32>
    %cst_12 = arith.constant 0.751638293 : f32
    %32 = vector.broadcast %cst_12 : f32 to vector<32x128xf32>
    %33 = arith.mulf %25, %32 : vector<32x128xf32>
    %34 = arith.select %29, %31, %33 : vector<32x128xi1>, vector<32x128xf32>
    %c0_13 = arith.constant 0 : index
    %c0_14 = arith.constant 0 : index
    %c0_15 = arith.constant 0 : index
    %35 = vector.load %arg3[%c0_13, %c0_14, %c0_15] : memref<2x128x64xf32, #tpu.memory_space<vmem>>, vector<1x128x64xf32>
    %36 = vector.shape_cast %35 : vector<1x128x64xf32> to vector<128x64xf32>
    %cst_16 = arith.constant dense<0.000000e+00> : vector<32x64xf32>
    %37 = tpu.matmul %34, %36, %cst_16 {dimension_numbers = #tpu.dot_dimension_numbers<[1], [0], [0], [1], [0, 0, 1, 1], [], []>} : vector<32x128xf32>, vector<128x64xf32>, vector<32x64xf32> -> vector<32x64xf32>
    %c1 = arith.constant 1 : index
    %c0_17 = arith.constant 0 : index
    %c0_18 = arith.constant 0 : index
    %38 = vector.load %arg3[%c1, %c0_17, %c0_18] : memref<2x128x64xf32, #tpu.memory_space<vmem>>, vector<1x128x64xf32>
    %39 = vector.shape_cast %38 : vector<1x128x64xf32> to vector<128x64xf32>
    %cst_19 = arith.constant dense<0.000000e+00> : vector<32x64xf32>
    %40 = tpu.matmul %34, %39, %cst_19 {dimension_numbers = #tpu.dot_dimension_numbers<[1], [0], [0], [1], [0, 0, 1, 1], [], []>} : vector<32x128xf32>, vector<128x64xf32>, vector<32x64xf32> -> vector<32x64xf32>
    %41 = vector.broadcast %7 : vector<32x1xf32> to vector<32x64xf32>
    %42 = arith.mulf %37, %41 : vector<32x64xf32>
    %43 = vector.broadcast %8 : vector<32x1xf32> to vector<32x64xf32>
    %44 = arith.mulf %40, %43 : vector<32x64xf32>
    %45 = arith.subf %42, %44 : vector<32x64xf32>
    %46 = vector.broadcast %8 : vector<32x1xf32> to vector<32x64xf32>
    %47 = arith.mulf %37, %46 : vector<32x64xf32>
    %48 = vector.broadcast %7 : vector<32x1xf32> to vector<32x64xf32>
    %49 = arith.mulf %40, %48 : vector<32x64xf32>
    %50 = arith.addf %47, %49 : vector<32x64xf32>
    %51 = arith.mulf %37, %37 : vector<32x64xf32>
    %52 = arith.mulf %40, %40 : vector<32x64xf32>
    %53 = arith.addf %51, %52 : vector<32x64xf32>
    %c0_20 = arith.constant 0 : index
    %c0_21 = arith.constant 0 : index
    %54 = vector.load %arg5[%c0_20, %c0_21] : memref<2x32xf32, #tpu.memory_space<vmem>>, vector<2x32xf32>
    %cst_22 = arith.constant dense<0.000000e+00> : vector<2x64xf32>
    %55 = tpu.matmul %54, %53, %cst_22 {dimension_numbers = #tpu.dot_dimension_numbers<[1], [0], [0], [1], [0, 0, 1, 1], [], []>} : vector<2x32xf32>, vector<32x64xf32>, vector<2x64xf32> -> vector<2x64xf32>
    %cst_23 = arith.constant 1.000000e+00 : f32
    %56 = vector.broadcast %cst_23 : f32 to vector<1x64xf32>
    %cst_24 = arith.constant 1.000000e+00 : f32
    %57 = vector.broadcast %cst_24 : f32 to vector<64x64xf32>
    %58 = tpu.iota {dimensions = array<i32: 0>} : vector<64x64xi32>
    %59 = tpu.iota {dimensions = array<i32: 1>} : vector<64x64xi32>
    %60 = arith.cmpi eq, %58, %59 : vector<64x64xi32>
    %61 = vector.extract_strided_slice %55 {offsets = [0, 0], sizes = [1, 64], strides = [1, 1]} : vector<2x64xf32> to vector<1x64xf32>
    %cst_25 = arith.constant 0.000000e+00 : f32
    %62 = vector.shape_cast %61 : vector<1x64xf32> to vector<1x64xf32>
    %63 = vector.broadcast %62 : vector<1x64xf32> to vector<64x64xf32>
    %64 = vector.broadcast %cst_25 : f32 to vector<64x64xf32>
    %65 = arith.select %60, %63, %64 : vector<64x64xi1>, vector<64x64xf32>
    %cst_26 = arith.constant dense<0.000000e+00> : vector<64x64xf32>
    %66 = tpu.matmul %65, %57, %cst_26 {dimension_numbers = #tpu.dot_dimension_numbers<[1], [0], [0], [1], [0, 0, 1, 1], [], []>} : vector<64x64xf32>, vector<64x64xf32>, vector<64x64xf32> -> vector<64x64xf32>
    %67 = vector.broadcast %61 : vector<1x64xf32> to vector<64x64xf32>
    %68 = arith.cmpf olt, %66, %67 : vector<64x64xf32>
    %69 = arith.extui %68 : vector<64x64xi1> to vector<64x64xi32>
    %70 = arith.sitofp %69 : vector<64x64xi32> to vector<64x64xf32>
    %cst_27 = arith.constant dense<0.000000e+00> : vector<1x64xf32>
    %71 = tpu.matmul %56, %70, %cst_27 {dimension_numbers = #tpu.dot_dimension_numbers<[1], [0], [0], [1], [0, 0, 1, 1], [], []>} : vector<1x64xf32>, vector<64x64xf32>, vector<1x64xf32> -> vector<1x64xf32>
    %72 = vector.broadcast %61 : vector<1x64xf32> to vector<64x64xf32>
    %73 = arith.cmpf ole, %66, %72 : vector<64x64xf32>
    %74 = arith.extui %73 : vector<64x64xi1> to vector<64x64xi32>
    %75 = arith.sitofp %74 : vector<64x64xi32> to vector<64x64xf32>
    %cst_28 = arith.constant dense<0.000000e+00> : vector<1x64xf32>
    %76 = tpu.matmul %56, %75, %cst_28 {dimension_numbers = #tpu.dot_dimension_numbers<[1], [0], [0], [1], [0, 0, 1, 1], [], []>} : vector<1x64xf32>, vector<64x64xf32>, vector<1x64xf32> -> vector<1x64xf32>
    %cst_29 = arith.constant 3.100000e+01 : f32
    %77 = vector.broadcast %cst_29 : f32 to vector<1x64xf32>
    %78 = arith.cmpf ole, %71, %77 : vector<1x64xf32>
    %cst_30 = arith.constant 3.200000e+01 : f32
    %79 = vector.broadcast %cst_30 : f32 to vector<1x64xf32>
    %80 = arith.cmpf oge, %76, %79 : vector<1x64xf32>
    %81 = arith.andi %78, %80 : vector<1x64xi1>
    %cst_31 = arith.constant -1.000000e+00 : f32
    %82 = vector.broadcast %cst_31 : f32 to vector<1x64xf32>
    %83 = arith.select %81, %61, %82 : vector<1x64xi1>, vector<1x64xf32>
    %cst_32 = arith.constant dense<0xFF800000> : vector<1xf32>
    %84 = vector.multi_reduction <maximumf>, %83, %cst_32 [1] : vector<1x64xf32> to vector<1xf32>
    %85 = vector.shape_cast %84 : vector<1xf32> to vector<1x1xf32>
    %cst_33 = arith.constant 9.99999997E-7 : f32
    %86 = vector.broadcast %cst_33 : f32 to vector<1x1xf32>
    %87 = arith.addf %85, %86 : vector<1x1xf32>
    %cst_34 = arith.constant 0.757876396 : f32
    %88 = vector.broadcast %cst_34 : f32 to vector<1x1xf32>
    %89 = arith.mulf %88, %87 : vector<1x1xf32>
    %90 = vector.broadcast %89 : vector<1x1xf32> to vector<1x64xf32>
    %91 = arith.cmpf ogt, %61, %90 : vector<1x64xf32>
    %92 = arith.extui %91 : vector<1x64xi1> to vector<1x64xi32>
    %93 = arith.sitofp %92 : vector<1x64xi32> to vector<1x64xf32>
    %94 = vector.shape_cast %93 : vector<1x64xf32> to vector<1x64xf32>
    %95 = vector.broadcast %94 : vector<1x64xf32> to vector<16x64xf32>
    %96 = vector.extract_strided_slice %55 {offsets = [1, 0], sizes = [1, 64], strides = [1, 1]} : vector<2x64xf32> to vector<1x64xf32>
    %cst_35 = arith.constant 0.000000e+00 : f32
    %97 = vector.shape_cast %96 : vector<1x64xf32> to vector<1x64xf32>
    %98 = vector.broadcast %97 : vector<1x64xf32> to vector<64x64xf32>
    %99 = vector.broadcast %cst_35 : f32 to vector<64x64xf32>
    %100 = arith.select %60, %98, %99 : vector<64x64xi1>, vector<64x64xf32>
    %cst_36 = arith.constant dense<0.000000e+00> : vector<64x64xf32>
    %101 = tpu.matmul %100, %57, %cst_36 {dimension_numbers = #tpu.dot_dimension_numbers<[1], [0], [0], [1], [0, 0, 1, 1], [], []>} : vector<64x64xf32>, vector<64x64xf32>, vector<64x64xf32> -> vector<64x64xf32>
    %102 = vector.broadcast %96 : vector<1x64xf32> to vector<64x64xf32>
    %103 = arith.cmpf olt, %101, %102 : vector<64x64xf32>
    %104 = arith.extui %103 : vector<64x64xi1> to vector<64x64xi32>
    %105 = arith.sitofp %104 : vector<64x64xi32> to vector<64x64xf32>
    %cst_37 = arith.constant dense<0.000000e+00> : vector<1x64xf32>
    %106 = tpu.matmul %56, %105, %cst_37 {dimension_numbers = #tpu.dot_dimension_numbers<[1], [0], [0], [1], [0, 0, 1, 1], [], []>} : vector<1x64xf32>, vector<64x64xf32>, vector<1x64xf32> -> vector<1x64xf32>
    %107 = vector.broadcast %96 : vector<1x64xf32> to vector<64x64xf32>
    %108 = arith.cmpf ole, %101, %107 : vector<64x64xf32>
    %109 = arith.extui %108 : vector<64x64xi1> to vector<64x64xi32>
    %110 = arith.sitofp %109 : vector<64x64xi32> to vector<64x64xf32>
    %cst_38 = arith.constant dense<0.000000e+00> : vector<1x64xf32>
    %111 = tpu.matmul %56, %110, %cst_38 {dimension_numbers = #tpu.dot_dimension_numbers<[1], [0], [0], [1], [0, 0, 1, 1], [], []>} : vector<1x64xf32>, vector<64x64xf32>, vector<1x64xf32> -> vector<1x64xf32>
    %cst_39 = arith.constant 3.100000e+01 : f32
    %112 = vector.broadcast %cst_39 : f32 to vector<1x64xf32>
    %113 = arith.cmpf ole, %106, %112 : vector<1x64xf32>
    %cst_40 = arith.constant 3.200000e+01 : f32
    %114 = vector.broadcast %cst_40 : f32 to vector<1x64xf32>
    %115 = arith.cmpf oge, %111, %114 : vector<1x64xf32>
    %116 = arith.andi %113, %115 : vector<1x64xi1>
    %cst_41 = arith.constant -1.000000e+00 : f32
    %117 = vector.broadcast %cst_41 : f32 to vector<1x64xf32>
    %118 = arith.select %116, %96, %117 : vector<1x64xi1>, vector<1x64xf32>
    %cst_42 = arith.constant dense<0xFF800000> : vector<1xf32>
    %119 = vector.multi_reduction <maximumf>, %118, %cst_42 [1] : vector<1x64xf32> to vector<1xf32>
    %120 = vector.shape_cast %119 : vector<1xf32> to vector<1x1xf32>
    %cst_43 = arith.constant 9.99999997E-7 : f32
    %121 = vector.broadcast %cst_43 : f32 to vector<1x1xf32>
    %122 = arith.addf %120, %121 : vector<1x1xf32>
    %cst_44 = arith.constant 0.757876396 : f32
    %123 = vector.broadcast %cst_44 : f32 to vector<1x1xf32>
    %124 = arith.mulf %123, %122 : vector<1x1xf32>
    %125 = vector.broadcast %124 : vector<1x1xf32> to vector<1x64xf32>
    %126 = arith.cmpf ogt, %96, %125 : vector<1x64xf32>
    %127 = arith.extui %126 : vector<1x64xi1> to vector<1x64xi32>
    %128 = arith.sitofp %127 : vector<1x64xi32> to vector<1x64xf32>
    %129 = vector.shape_cast %128 : vector<1x64xf32> to vector<1x64xf32>
    %130 = vector.broadcast %129 : vector<1x64xf32> to vector<16x64xf32>
    %131 = tpu.concatenate %95, %130 in 0 : vector<16x64xf32>, vector<16x64xf32> -> vector<32x64xf32>
    %132 = arith.mulf %37, %131 : vector<32x64xf32>
    %133 = arith.mulf %40, %131 : vector<32x64xf32>
    %134 = vector.broadcast %9 : vector<32x1xf32> to vector<32x64xf32>
    %135 = arith.mulf %132, %134 : vector<32x64xf32>
    %136 = arith.addf %45, %135 : vector<32x64xf32>
    %137 = vector.broadcast %10 : vector<32x1xf32> to vector<32x64xf32>
    %138 = arith.mulf %133, %137 : vector<32x64xf32>
    %139 = arith.subf %136, %138 : vector<32x64xf32>
    %140 = vector.broadcast %10 : vector<32x1xf32> to vector<32x64xf32>
    %141 = arith.mulf %132, %140 : vector<32x64xf32>
    %142 = arith.addf %50, %141 : vector<32x64xf32>
    %143 = vector.broadcast %9 : vector<32x1xf32> to vector<32x64xf32>
    %144 = arith.mulf %133, %143 : vector<32x64xf32>
    %145 = arith.addf %142, %144 : vector<32x64xf32>
    %c0_45 = arith.constant 0 : index
    %c0_46 = arith.constant 0 : index
    %c0_47 = arith.constant 0 : index
    %146 = vector.load %arg4[%c0_45, %c0_46, %c0_47] : memref<2x64x128xf32, #tpu.memory_space<vmem>>, vector<1x64x128xf32>
    %147 = vector.shape_cast %146 : vector<1x64x128xf32> to vector<64x128xf32>
    %cst_48 = arith.constant dense<0.000000e+00> : vector<32x128xf32>
    %148 = tpu.matmul %139, %147, %cst_48 {dimension_numbers = #tpu.dot_dimension_numbers<[1], [0], [0], [1], [0, 0, 1, 1], [], []>} : vector<32x64xf32>, vector<64x128xf32>, vector<32x128xf32> -> vector<32x128xf32>
    %c1_49 = arith.constant 1 : index
    %c0_50 = arith.constant 0 : index
    %c0_51 = arith.constant 0 : index
    %149 = vector.load %arg4[%c1_49, %c0_50, %c0_51] : memref<2x64x128xf32, #tpu.memory_space<vmem>>, vector<1x64x128xf32>
    %150 = vector.shape_cast %149 : vector<1x64x128xf32> to vector<64x128xf32>
    %cst_52 = arith.constant dense<0.000000e+00> : vector<32x128xf32>
    %151 = tpu.matmul %145, %150, %cst_52 {dimension_numbers = #tpu.dot_dimension_numbers<[1], [0], [0], [1], [0, 0, 1, 1], [], []>} : vector<32x64xf32>, vector<64x128xf32>, vector<32x128xf32> -> vector<32x128xf32>
    %152 = arith.addf %148, %151 : vector<32x128xf32>
    %cst_53 = arith.constant dense<0.000000e+00> : vector<32x128xf32>
    %153 = tpu.matmul %1, %152, %cst_53 {dimension_numbers = #tpu.dot_dimension_numbers<[1], [0], [0], [1], [0, 0, 1, 1], [], []>} : vector<32x32xf32>, vector<32x128xf32>, vector<32x128xf32> -> vector<32x128xf32>
    %154 = arith.subf %152, %153 : vector<32x128xf32>
    %155 = arith.mulf %154, %154 : vector<32x128xf32>
    %cst_54 = arith.constant dense<0.000000e+00> : vector<32x128xf32>
    %156 = tpu.matmul %1, %155, %cst_54 {dimension_numbers = #tpu.dot_dimension_numbers<[1], [0], [0], [1], [0, 0, 1, 1], [], []>} : vector<32x32xf32>, vector<32x128xf32>, vector<32x128xf32> -> vector<32x128xf32>
    %cst_55 = arith.constant 9.99999974E-6 : f32
    %157 = vector.broadcast %cst_55 : f32 to vector<32x128xf32>
    %158 = arith.addf %156, %157 : vector<32x128xf32>
    %159 = math.rsqrt %158 : vector<32x128xf32>
    %160 = arith.mulf %154, %159 : vector<32x128xf32>
    %161 = vector.broadcast %5 : vector<32x1xf32> to vector<32x128xf32>
    %162 = arith.mulf %160, %161 : vector<32x128xf32>
    %163 = vector.broadcast %6 : vector<32x1xf32> to vector<32x128xf32>
    %164 = arith.addf %162, %163 : vector<32x128xf32>
    %c1_56 = arith.constant 1 : index
    %c0_57 = arith.constant 0 : index
    %c0_58 = arith.constant 0 : index
    %165 = vector.load %arg2[%c1_56, %c0_57, %c0_58] : memref<3x128x128xf32, #tpu.memory_space<vmem>>, vector<1x128x128xf32>
    %166 = vector.shape_cast %165 : vector<1x128x128xf32> to vector<128x128xf32>
    %cst_59 = arith.constant dense<0.000000e+00> : vector<32x128xf32>
    %167 = tpu.matmul %164, %166, %cst_59 {dimension_numbers = #tpu.dot_dimension_numbers<[1], [0], [0], [1], [0, 0, 1, 1], [], []>} : vector<32x128xf32>, vector<128x128xf32>, vector<32x128xf32> -> vector<32x128xf32>
    %c2 = arith.constant 2 : index
    %c0_60 = arith.constant 0 : index
    %c0_61 = arith.constant 0 : index
    %168 = vector.load %arg2[%c2, %c0_60, %c0_61] : memref<3x128x128xf32, #tpu.memory_space<vmem>>, vector<1x128x128xf32>
    %169 = vector.shape_cast %168 : vector<1x128x128xf32> to vector<128x128xf32>
    %cst_62 = arith.constant dense<0.000000e+00> : vector<32x128xf32>
    %170 = tpu.matmul %164, %169, %cst_62 {dimension_numbers = #tpu.dot_dimension_numbers<[1], [0], [0], [1], [0, 0, 1, 1], [], []>} : vector<32x128xf32>, vector<128x128xf32>, vector<32x128xf32> -> vector<32x128xf32>
    %c0_63 = arith.constant 0 : index
    %c0_64 = arith.constant 0 : index
    %c0_65 = arith.constant 0 : index
    %171 = vector.load %arg6[%c0_63, %c0_64, %c0_65] : memref<4x96x32xf32, #tpu.memory_space<vmem>>, vector<1x96x32xf32>
    %172 = vector.shape_cast %171 : vector<1x96x32xf32> to vector<96x32xf32>
    %cst_66 = arith.constant dense<0.000000e+00> : vector<96x128xf32>
    %173 = tpu.matmul %172, %164, %cst_66 {dimension_numbers = #tpu.dot_dimension_numbers<[1], [0], [0], [1], [0, 0, 1, 1], [], []>} : vector<96x32xf32>, vector<32x128xf32>, vector<96x128xf32> -> vector<96x128xf32>
    %174 = vector.broadcast %11 : vector<96x1xf32> to vector<96x128xf32>
    %175 = arith.addf %173, %174 : vector<96x128xf32>
    %c1_67 = arith.constant 1 : index
    %c0_68 = arith.constant 0 : index
    %c0_69 = arith.constant 0 : index
    %176 = vector.load %arg6[%c1_67, %c0_68, %c0_69] : memref<4x96x32xf32, #tpu.memory_space<vmem>>, vector<1x96x32xf32>
    %177 = vector.shape_cast %176 : vector<1x96x32xf32> to vector<96x32xf32>
    %cst_70 = arith.constant dense<0.000000e+00> : vector<96x128xf32>
    %178 = tpu.matmul %177, %167, %cst_70 {dimension_numbers = #tpu.dot_dimension_numbers<[1], [0], [0], [1], [0, 0, 1, 1], [], []>} : vector<96x32xf32>, vector<32x128xf32>, vector<96x128xf32> -> vector<96x128xf32>
    %c2_71 = arith.constant 2 : index
    %c0_72 = arith.constant 0 : index
    %c0_73 = arith.constant 0 : index
    %179 = vector.load %arg6[%c2_71, %c0_72, %c0_73] : memref<4x96x32xf32, #tpu.memory_space<vmem>>, vector<1x96x32xf32>
    %180 = vector.shape_cast %179 : vector<1x96x32xf32> to vector<96x32xf32>
    %cst_74 = arith.constant dense<0.000000e+00> : vector<96x128xf32>
    %181 = tpu.matmul %180, %164, %cst_74 {dimension_numbers = #tpu.dot_dimension_numbers<[1], [0], [0], [1], [0, 0, 1, 1], [], []>} : vector<96x32xf32>, vector<32x128xf32>, vector<96x128xf32> -> vector<96x128xf32>
    %182 = arith.addf %178, %181 : vector<96x128xf32>
    %c3 = arith.constant 3 : index
    %c0_75 = arith.constant 0 : index
    %c0_76 = arith.constant 0 : index
    %183 = vector.load %arg6[%c3, %c0_75, %c0_76] : memref<4x96x32xf32, #tpu.memory_space<vmem>>, vector<1x96x32xf32>
    %184 = vector.shape_cast %183 : vector<1x96x32xf32> to vector<96x32xf32>
    %cst_77 = arith.constant dense<0.000000e+00> : vector<96x128xf32>
    %185 = tpu.matmul %184, %170, %cst_77 {dimension_numbers = #tpu.dot_dimension_numbers<[1], [0], [0], [1], [0, 0, 1, 1], [], []>} : vector<96x32xf32>, vector<32x128xf32>, vector<96x128xf32> -> vector<96x128xf32>
    %186 = arith.addf %182, %185 : vector<96x128xf32>
    %187 = vector.broadcast %12 : vector<96x1xf32> to vector<96x128xf32>
    %188 = arith.addf %186, %187 : vector<96x128xf32>
    %cst_78 = arith.constant 5.000000e-01 : f32
    %189 = vector.broadcast %cst_78 : f32 to vector<96x128xf32>
    %190 = arith.mulf %189, %175 : vector<96x128xf32>
    %cst_79 = arith.constant 0.707106769 : f32
    %191 = vector.broadcast %cst_79 : f32 to vector<96x128xf32>
    %192 = arith.mulf %175, %191 : vector<96x128xf32>
    %193 = math.absf %192 : vector<96x128xf32>
    %cst_80 = arith.constant 5.000000e-01 : f32
    %194 = vector.broadcast %cst_80 : f32 to vector<96x128xf32>
    %195 = arith.mulf %194, %193 : vector<96x128xf32>
    %cst_81 = arith.constant 1.000000e+00 : f32
    %196 = vector.broadcast %cst_81 : f32 to vector<96x128xf32>
    %197 = arith.addf %196, %195 : vector<96x128xf32>
    %cst_82 = arith.constant 1.000000e+00 : f32
    %198 = vector.broadcast %cst_82 : f32 to vector<96x128xf32>
    %199 = arith.divf %198, %197 : vector<96x128xf32>
    %cst_83 = arith.constant 0.000000e+00 : f32
    %200 = vector.broadcast %cst_83 : f32 to vector<96x128xf32>
    %201 = arith.subf %200, %193 : vector<96x128xf32>
    %202 = arith.mulf %201, %193 : vector<96x128xf32>
    %cst_84 = arith.constant 1.26551223 : f32
    %203 = vector.broadcast %cst_84 : f32 to vector<96x128xf32>
    %204 = arith.subf %202, %203 : vector<96x128xf32>
    %cst_85 = arith.constant 0.170872763 : f32
    %205 = vector.broadcast %cst_85 : f32 to vector<96x128xf32>
    %206 = arith.mulf %199, %205 : vector<96x128xf32>
    %cst_86 = arith.constant -0.822152256 : f32
    %207 = vector.broadcast %cst_86 : f32 to vector<96x128xf32>
    %208 = arith.addf %207, %206 : vector<96x128xf32>
    %209 = arith.mulf %199, %208 : vector<96x128xf32>
    %cst_87 = arith.constant 1.48851585 : f32
    %210 = vector.broadcast %cst_87 : f32 to vector<96x128xf32>
    %211 = arith.addf %210, %209 : vector<96x128xf32>
    %212 = arith.mulf %199, %211 : vector<96x128xf32>
    %cst_88 = arith.constant -1.13520396 : f32
    %213 = vector.broadcast %cst_88 : f32 to vector<96x128xf32>
    %214 = arith.addf %213, %212 : vector<96x128xf32>
    %215 = arith.mulf %199, %214 : vector<96x128xf32>
    %cst_89 = arith.constant 0.278868079 : f32
    %216 = vector.broadcast %cst_89 : f32 to vector<96x128xf32>
    %217 = arith.addf %216, %215 : vector<96x128xf32>
    %218 = arith.mulf %199, %217 : vector<96x128xf32>
    %cst_90 = arith.constant -0.186288059 : f32
    %219 = vector.broadcast %cst_90 : f32 to vector<96x128xf32>
    %220 = arith.addf %219, %218 : vector<96x128xf32>
    %221 = arith.mulf %199, %220 : vector<96x128xf32>
    %cst_91 = arith.constant 0.0967841818 : f32
    %222 = vector.broadcast %cst_91 : f32 to vector<96x128xf32>
    %223 = arith.addf %222, %221 : vector<96x128xf32>
    %224 = arith.mulf %199, %223 : vector<96x128xf32>
    %cst_92 = arith.constant 0.374091953 : f32
    %225 = vector.broadcast %cst_92 : f32 to vector<96x128xf32>
    %226 = arith.addf %225, %224 : vector<96x128xf32>
    %227 = arith.mulf %199, %226 : vector<96x128xf32>
    %cst_93 = arith.constant 1.00002372 : f32
    %228 = vector.broadcast %cst_93 : f32 to vector<96x128xf32>
    %229 = arith.addf %228, %227 : vector<96x128xf32>
    %230 = arith.mulf %199, %229 : vector<96x128xf32>
    %231 = arith.addf %204, %230 : vector<96x128xf32>
    %232 = math.exp %231 : vector<96x128xf32>
    %233 = arith.mulf %199, %232 : vector<96x128xf32>
    %cst_94 = arith.constant 0.000000e+00 : f32
    %234 = vector.broadcast %cst_94 : f32 to vector<96x128xf32>
    %235 = arith.cmpf oge, %192, %234 : vector<96x128xf32>
    %cst_95 = arith.constant 1.000000e+00 : f32
    %236 = vector.broadcast %cst_95 : f32 to vector<96x128xf32>
    %237 = arith.subf %236, %233 : vector<96x128xf32>
    %cst_96 = arith.constant 1.000000e+00 : f32
    %238 = vector.broadcast %cst_96 : f32 to vector<96x128xf32>
    %239 = arith.subf %233, %238 : vector<96x128xf32>
    %240 = arith.select %235, %237, %239 : vector<96x128xi1>, vector<96x128xf32>
    %cst_97 = arith.constant 1.000000e+00 : f32
    %241 = vector.broadcast %cst_97 : f32 to vector<96x128xf32>
    %242 = arith.addf %241, %240 : vector<96x128xf32>
    %243 = arith.mulf %190, %242 : vector<96x128xf32>
    %cst_98 = arith.constant 5.000000e-01 : f32
    %244 = vector.broadcast %cst_98 : f32 to vector<96x128xf32>
    %245 = arith.mulf %244, %188 : vector<96x128xf32>
    %cst_99 = arith.constant 0.707106769 : f32
    %246 = vector.broadcast %cst_99 : f32 to vector<96x128xf32>
    %247 = arith.mulf %188, %246 : vector<96x128xf32>
    %248 = math.absf %247 : vector<96x128xf32>
    %cst_100 = arith.constant 5.000000e-01 : f32
    %249 = vector.broadcast %cst_100 : f32 to vector<96x128xf32>
    %250 = arith.mulf %249, %248 : vector<96x128xf32>
    %cst_101 = arith.constant 1.000000e+00 : f32
    %251 = vector.broadcast %cst_101 : f32 to vector<96x128xf32>
    %252 = arith.addf %251, %250 : vector<96x128xf32>
    %cst_102 = arith.constant 1.000000e+00 : f32
    %253 = vector.broadcast %cst_102 : f32 to vector<96x128xf32>
    %254 = arith.divf %253, %252 : vector<96x128xf32>
    %cst_103 = arith.constant 0.000000e+00 : f32
    %255 = vector.broadcast %cst_103 : f32 to vector<96x128xf32>
    %256 = arith.subf %255, %248 : vector<96x128xf32>
    %257 = arith.mulf %256, %248 : vector<96x128xf32>
    %cst_104 = arith.constant 1.26551223 : f32
    %258 = vector.broadcast %cst_104 : f32 to vector<96x128xf32>
    %259 = arith.subf %257, %258 : vector<96x128xf32>
    %cst_105 = arith.constant 0.170872763 : f32
    %260 = vector.broadcast %cst_105 : f32 to vector<96x128xf32>
    %261 = arith.mulf %254, %260 : vector<96x128xf32>
    %cst_106 = arith.constant -0.822152256 : f32
    %262 = vector.broadcast %cst_106 : f32 to vector<96x128xf32>
    %263 = arith.addf %262, %261 : vector<96x128xf32>
    %264 = arith.mulf %254, %263 : vector<96x128xf32>
    %cst_107 = arith.constant 1.48851585 : f32
    %265 = vector.broadcast %cst_107 : f32 to vector<96x128xf32>
    %266 = arith.addf %265, %264 : vector<96x128xf32>
    %267 = arith.mulf %254, %266 : vector<96x128xf32>
    %cst_108 = arith.constant -1.13520396 : f32
    %268 = vector.broadcast %cst_108 : f32 to vector<96x128xf32>
    %269 = arith.addf %268, %267 : vector<96x128xf32>
    %270 = arith.mulf %254, %269 : vector<96x128xf32>
    %cst_109 = arith.constant 0.278868079 : f32
    %271 = vector.broadcast %cst_109 : f32 to vector<96x128xf32>
    %272 = arith.addf %271, %270 : vector<96x128xf32>
    %273 = arith.mulf %254, %272 : vector<96x128xf32>
    %cst_110 = arith.constant -0.186288059 : f32
    %274 = vector.broadcast %cst_110 : f32 to vector<96x128xf32>
    %275 = arith.addf %274, %273 : vector<96x128xf32>
    %276 = arith.mulf %254, %275 : vector<96x128xf32>
    %cst_111 = arith.constant 0.0967841818 : f32
    %277 = vector.broadcast %cst_111 : f32 to vector<96x128xf32>
    %278 = arith.addf %277, %276 : vector<96x128xf32>
    %279 = arith.mulf %254, %278 : vector<96x128xf32>
    %cst_112 = arith.constant 0.374091953 : f32
    %280 = vector.broadcast %cst_112 : f32 to vector<96x128xf32>
    %281 = arith.addf %280, %279 : vector<96x128xf32>
    %282 = arith.mulf %254, %281 : vector<96x128xf32>
    %cst_113 = arith.constant 1.00002372 : f32
    %283 = vector.broadcast %cst_113 : f32 to vector<96x128xf32>
    %284 = arith.addf %283, %282 : vector<96x128xf32>
    %285 = arith.mulf %254, %284 : vector<96x128xf32>
    %286 = arith.addf %259, %285 : vector<96x128xf32>
    %287 = math.exp %286 : vector<96x128xf32>
    %288 = arith.mulf %254, %287 : vector<96x128xf32>
    %cst_114 = arith.constant 0.000000e+00 : f32
    %289 = vector.broadcast %cst_114 : f32 to vector<96x128xf32>
    %290 = arith.cmpf oge, %247, %289 : vector<96x128xf32>
    %cst_115 = arith.constant 1.000000e+00 : f32
    %291 = vector.broadcast %cst_115 : f32 to vector<96x128xf32>
    %292 = arith.subf %291, %288 : vector<96x128xf32>
    %cst_116 = arith.constant 1.000000e+00 : f32
    %293 = vector.broadcast %cst_116 : f32 to vector<96x128xf32>
    %294 = arith.subf %288, %293 : vector<96x128xf32>
    %295 = arith.select %290, %292, %294 : vector<96x128xi1>, vector<96x128xf32>
    %cst_117 = arith.constant 1.000000e+00 : f32
    %296 = vector.broadcast %cst_117 : f32 to vector<96x128xf32>
    %297 = arith.addf %296, %295 : vector<96x128xf32>
    %298 = arith.mulf %245, %297 : vector<96x128xf32>
    %c0_118 = arith.constant 0 : index
    %c0_119 = arith.constant 0 : index
    %299 = vector.load %arg7[%c0_118, %c0_119] : memref<32x96xf32, #tpu.memory_space<vmem>>, vector<32x96xf32>
    %300 = arith.mulf %175, %298 : vector<96x128xf32>
    %301 = arith.mulf %188, %243 : vector<96x128xf32>
    %302 = arith.addf %300, %301 : vector<96x128xf32>
    %cst_120 = arith.constant dense<0.000000e+00> : vector<32x128xf32>
    %303 = tpu.matmul %299, %302, %cst_120 {dimension_numbers = #tpu.dot_dimension_numbers<[1], [0], [0], [1], [0, 0, 1, 1], [], []>} : vector<32x96xf32>, vector<96x128xf32>, vector<32x128xf32> -> vector<32x128xf32>
    %304 = vector.broadcast %13 : vector<32x1xf32> to vector<32x128xf32>
    %305 = arith.addf %303, %304 : vector<32x128xf32>
    %306 = arith.addf %0, %305 : vector<32x128xf32>
    %c0_121 = arith.constant 0 : index
    %c0_122 = arith.constant 0 : index
    %307 = vector.load %arg9[%c0_121, %c0_122] : memref<32x128xf32, #tpu.memory_space<vmem>>, vector<32x128xf32>
    tpu.vector_store %arg9[%c0_121, %c0_122], %306 {strides = array<i32>} : memref<32x128xf32, #tpu.memory_space<vmem>>, vector<32x128xf32>,
    return
  }
}

</mosaic_0001>

<llo_original>
// kernel: forward.1
$region0: #{forward.1}
  #allocation0 [shape = 'u32[]', space=smem, size = 0x4, offset = 0x4, fixed_abs, tag = 'smem constant byte address 0x4 - core index']
  #allocation1 [shape = 'u32[144,128]{1,0:T(1,128)}', space=vmem, size = 0x12000, scoped, tag = 'internal scratch']
  %s0 = inlined_call_operand.hbm [shape: f32[32,128], index: 0, kind: input, shape index: {}]
  %s1 = inlined_call_operand.hbm [shape: f32[32,32], index: 1, kind: input, shape index: {}]
  %s2 = inlined_call_operand.hbm [shape: f32[3,128,128], index: 2, kind: input, shape index: {}]
  %s3 = inlined_call_operand.hbm [shape: f32[2,128,64], index: 3, kind: input, shape index: {}]
  %s4 = inlined_call_operand.hbm [shape: f32[2,64,128], index: 4, kind: input, shape index: {}]
  %s5 = inlined_call_operand.vmem [shape: f32[2,32], index: 5, kind: input, shape index: {}]
  %s6 = inlined_call_operand.hbm [shape: f32[4,96,32], index: 6, kind: input, shape index: {}]
  %s7 = inlined_call_operand.hbm [shape: f32[32,96], index: 7, kind: input, shape index: {}]
  %s8 = inlined_call_operand.hbm [shape: f32[96,16], index: 8, kind: input, shape index: {}]
  %s9 = inlined_call_operand.hbm [shape: f32[32,128], index: 9, kind: output, shape index: {}]
  %s10 = sld [smem:[#allocation0]]
  $region78: #{forward.1} parent=0
    _
  %s12 = ssub.s32 1, %s10
  %s13 = scalar_select 0, %s12, %s10
  $region1: #{forward.1} parent=0
    #allocation2 [shape = 'u8[16384]{0}', space=vmem, size = 0x4000, scoped, tag = 'input window, operand 0, single buffered']
    #allocation3 [shape = 's32[1]{0}', space=sflag, size = 0x4, scoped, tag = 'scoped memory for forward.1']
    #allocation4 [shape = 's32[1]{0}', space=sflag, size = 0x4, scoped, tag = 'scoped memory for forward.1']
    #allocation5 [shape = 'u8[16384]{0}', space=vmem, size = 0x4000, scoped, tag = 'input window, operand 1, single buffered']
    #allocation6 [shape = 's32[1]{0}', space=sflag, size = 0x4, scoped, tag = 'scoped memory for forward.1']
    #allocation7 [shape = 'u8[196608]{0}', space=vmem, size = 0x30000, scoped, tag = 'input window, operand 2, single buffered']
    #allocation8 [shape = 'u8[131072]{0}', space=vmem, size = 0x20000, scoped, tag = 'input window, operand 3, single buffered']
    #allocation9 [shape = 's32[1]{0}', space=sflag, size = 0x4, scoped, tag = 'scoped memory for forward.1']
    #allocation10 [shape = 'u8[65536]{0}', space=vmem, size = 0x10000, scoped, tag = 'input window, operand 4, single buffered']
    #allocation11 [shape = 'u8[196608]{0}', space=vmem, size = 0x30000, scoped, tag = 'input window, operand 6, single buffered']
    #allocation12 [shape = 's32[1]{0}', space=sflag, size = 0x4, scoped, tag = 'scoped memory for forward.1']
    #allocation13 [shape = 'u8[16384]{0}', space=vmem, size = 0x4000, scoped, tag = 'input window, operand 7, single buffered']
    #allocation14 [shape = 'u8[49152]{0}', space=vmem, size = 0xc000, scoped, tag = 'input window, operand 8, single buffered']
    #allocation15 [shape = 's32[1]{0}', space=sflag, size = 0x4, scoped, tag = 'scoped memory for forward.1']
    #allocation16 [shape = 'u8[16384]{0}', space=vmem, size = 0x4000, scoped, tag = 'output window, operand 0, single buffered']
    %14 = vsyncpa [#allocation3], 0
    %15 = vsyncpa [#allocation6], 0
    %16 = vsyncpa [#allocation9], 0
    %17 = vsyncpa [#allocation12], 0
    %18 = vsyncpa [#allocation15], 0
    %19 = vsyncpa [#allocation4], 0
    // Predicated region
    $region2: #{forward.1} parent=1 // pred_check
      _
    $region3: #{forward.1} parent=1 // pred_check_branch
      %21 = sbr.rel (0) target = $region5
    $region4: #{forward.1} parent=1 // pred_region
      %s23 = ssub.s32 512, 512
      %24 = vsyncadd [#allocation3], %s23
      %s25 = sshll.u32 [#allocation2], 4
      %s26 = int_to_ptr.vmem [resolvable:$true] %s25
      %31 = dma.hbm_to_vmem [thread:$0]  %s0, 512, %s26, [#allocation3], 128, 128, 8
    $region5: #{forward.1} parent=1 // pred_fallthru
      _
    // Predicated region
    $region6: #{forward.1} parent=1 // pred_check
      _
    $region7: #{forward.1} parent=1 // pred_check_branch
      %33 = sbr.rel (0) target = $region9
    $region8: #{forward.1} parent=1 // pred_region
      %s35 = ssub.s32 512, 512
      %36 = vsyncadd [#allocation6], %s35
      %s37 = sshll.u32 [#allocation5], 4
      %s38 = int_to_ptr.vmem [resolvable:$true] %s37
      %43 = dma.hbm_to_vmem [thread:$0]  %s1, 512, %s38, [#allocation6], 128, 128, 8
    $region9: #{forward.1} parent=1 // pred_fallthru
      _
    // Predicated region
    $region10: #{forward.1} parent=1 // pred_check
      _
    $region11: #{forward.1} parent=1 // pred_check_branch
      %45 = sbr.rel (0) target = $region13
    $region12: #{forward.1} parent=1 // pred_region
      %s47 = ssub.s32 6144, 6144
      %48 = vsyncadd [#allocation6], %s47
      %s49 = sshll.u32 [#allocation7], 4
      %s50 = int_to_ptr.vmem [resolvable:$true] %s49
      %55 = dma.hbm_to_vmem [thread:$0]  %s2, 6144, %s50, [#allocation6], 128, 128, 8
    $region13: #{forward.1} parent=1 // pred_fallthru
      _
    // Predicated region
    $region14: #{forward.1} parent=1 // pred_check
      _
    $region15: #{forward.1} parent=1 // pred_check_branch
      %57 = sbr.rel (0) target = $region17
    $region16: #{forward.1} parent=1 // pred_region
      %s59 = ssub.s32 4096, 4096
      %60 = vsyncadd [#allocation9], %s59
      %s61 = sshll.u32 [#allocation8], 4
      %s62 = int_to_ptr.vmem [resolvable:$true] %s61
      %67 = dma.hbm_to_vmem [thread:$0]  %s3, 4096, %s62, [#allocation9], 128, 128, 8
    $region17: #{forward.1} parent=1 // pred_fallthru
      _
    // Predicated region
    $region18: #{forward.1} parent=1 // pred_check
      _
    $region19: #{forward.1} parent=1 // pred_check_branch
      %69 = sbr.rel (0) target = $region21
    $region20: #{forward.1} parent=1 // pred_region
      %s71 = ssub.s32 2048, 2048
      %72 = vsyncadd [#allocation9], %s71
      %s73 = sshll.u32 [#allocation10], 4
      %s74 = int_to_ptr.vmem [resolvable:$true] %s73
      %79 = dma.hbm_to_vmem [thread:$0]  %s4, 2048, %s74, [#allocation9], 128, 128, 8
    $region21: #{forward.1} parent=1 // pred_fallthru
      _
    // Predicated region
    $region22: #{forward.1} parent=1 // pred_check
      _
    $region23: #{forward.1} parent=1 // pred_check_branch
      %81 = sbr.rel (0) target = $region25
    $region24: #{forward.1} parent=1 // pred_region
      _
    $region25: #{forward.1} parent=1 // pred_fallthru
      _
    // Predicated region
    $region26: #{forward.1} parent=1 // pred_check
      _
    $region27: #{forward.1} parent=1 // pred_check_branch
      %83 = sbr.rel (0) target = $region29
    $region28: #{forward.1} parent=1 // pred_region
      %s85 = ssub.s32 6144, 6144
      %86 = vsyncadd [#allocation12], %s85
      %s87 = sshll.u32 [#allocation11], 4
      %s88 = int_to_ptr.vmem [resolvable:$true] %s87
      %93 = dma.hbm_to_vmem [thread:$0]  %s6, 6144, %s88, [#allocation12], 128, 128, 8
    $region29: #{forward.1} parent=1 // pred_fallthru
      _
    // Predicated region
    $region30: #{forward.1} parent=1 // pred_check
      _
    $region31: #{forward.1} parent=1 // pred_check_branch
      %95 = sbr.rel (0) target = $region33
    $region32: #{forward.1} parent=1 // pred_region
      %s97 = ssub.s32 512, 512
      %98 = vsyncadd [#allocation12], %s97
      %s99 = sshll.u32 [#allocation13], 4
      %s100 = int_to_ptr.vmem [resolvable:$true] %s99
      %105 = dma.hbm_to_vmem [thread:$0]  %s7, 512, %s100, [#allocation12], 128, 128, 8
    $region33: #{forward.1} parent=1 // pred_fallthru
      _
    // Predicated region
    $region34: #{forward.1} parent=1 // pred_check
      _
    $region35: #{forward.1} parent=1 // pred_check_branch
      %107 = sbr.rel (0) target = $region37
    $region36: #{forward.1} parent=1 // pred_region
      %s109 = ssub.s32 1536, 1536
      %110 = vsyncadd [#allocation15], %s109
      %s111 = sshll.u32 [#allocation14], 4
      %s112 = int_to_ptr.vmem [resolvable:$true] %s111
      %117 = dma.hbm_to_vmem [thread:$0]  %s8, 1536, %s112, [#allocation15], 128, 128, 8
    $region37: #{forward.1} parent=1 // pred_fallthru
      _
    // Predicated region
    $region38: #{forward.1} parent=1 // pred_check
      _
    $region39: #{forward.1} parent=1 // pred_check_branch
      %119 = sbr.rel (0) target = $region41
    $region40: #{forward.1} parent=1 // pred_region
      %120 = dma.done [#allocation3], 512
    $region41: #{forward.1} parent=1 // pred_fallthru
      _
    // Predicated region
    $region42: #{forward.1} parent=1 // pred_check
      _
    $region43: #{forward.1} parent=1 // pred_check_branch
      %122 = sbr.rel (0) target = $region45
    $region44: #{forward.1} parent=1 // pred_region
      %123 = dma.done [#allocation6], 512
    $region45: #{forward.1} parent=1 // pred_fallthru
      _
    // Predicated region
    $region46: #{forward.1} parent=1 // pred_check
      _
    $region47: #{forward.1} parent=1 // pred_check_branch
      %125 = sbr.rel (0) target = $region49
    $region48: #{forward.1} parent=1 // pred_region
      %126 = dma.done [#allocation6], 6144
    $region49: #{forward.1} parent=1 // pred_fallthru
      _
    // Predicated region
    $region50: #{forward.1} parent=1 // pred_check
      _
    $region51: #{forward.1} parent=1 // pred_check_branch
      %128 = sbr.rel (0) target = $region53
    $region52: #{forward.1} parent=1 // pred_region
      %129 = dma.done [#allocation9], 4096
    $region53: #{forward.1} parent=1 // pred_fallthru
      _
    // Predicated region
    $region54: #{forward.1} parent=1 // pred_check
      _
    $region55: #{forward.1} parent=1 // pred_check_branch
      %131 = sbr.rel (0) target = $region57
    $region56: #{forward.1} parent=1 // pred_region
      %132 = dma.done [#allocation9], 2048
    $region57: #{forward.1} parent=1 // pred_fallthru
      _
    // Predicated region
    $region58: #{forward.1} parent=1 // pred_check
      _
    $region59: #{forward.1} parent=1 // pred_check_branch
      %134 = sbr.rel (0) target = $region61
    $region60: #{forward.1} parent=1 // pred_region
      %135 = dma.done [#allocation12], 6144
    $region61: #{forward.1} parent=1 // pred_fallthru
      _
    // Predicated region
    $region62: #{forward.1} parent=1 // pred_check
      _
    $region63: #{forward.1} parent=1 // pred_check_branch
      %137 = sbr.rel (0) target = $region65
    $region64: #{forward.1} parent=1 // pred_region
      %138 = dma.done [#allocation12], 512
    $region65: #{forward.1} parent=1 // pred_fallthru
      _
    // Predicated region
    $region66: #{forward.1} parent=1 // pred_check
      _
    $region67: #{forward.1} parent=1 // pred_check_branch
      %140 = sbr.rel (0) target = $region69
    $region68: #{forward.1} parent=1 // pred_region
      %141 = dma.done [#allocation15], 1536
    $region69: #{forward.1} parent=1 // pred_fallthru
      _
    %v142 = vld [vmem:[#allocation2] sm:$0xff]
    %v143 = vld [vmem:[#allocation2 + $0x8] sm:$0xff]
    %v144 = vld [vmem:[#allocation2 + $0x10] sm:$0xff]
    %v145 = vld [vmem:[#allocation2 + $0x18] sm:$0xff]
    %v146 = vld [vmem:[#allocation5] sm:$0xff]
    %v147 = vld [vmem:[#allocation5 + $0x8] sm:$0xff]
    %v148 = vld [vmem:[#allocation5 + $0x10] sm:$0xff]
    %v149 = vld [vmem:[#allocation5 + $0x18] sm:$0xff]
    %v150 = vld [vmem:[#allocation14] sm:$0xff]
    %v151 = vld [vmem:[#allocation14 + $0x8] sm:$0xff]
    %v152 = vld [vmem:[#allocation14 + $0x10] sm:$0xff]
    %v153 = vld [vmem:[#allocation14 + $0x18] sm:$0xff]
    %v154 = vld [vmem:[#allocation14 + $0x20] sm:$0xff]
    %v155 = vld [vmem:[#allocation14 + $0x28] sm:$0xff]
    %v156 = vld [vmem:[#allocation14 + $0x30] sm:$0xff]
    %v157 = vld [vmem:[#allocation14 + $0x38] sm:$0xff]
    %v158 = vld [vmem:[#allocation14 + $0x40] sm:$0xff]
    %v159 = vld [vmem:[#allocation14 + $0x48] sm:$0xff]
    %v160 = vld [vmem:[#allocation14 + $0x50] sm:$0xff]
    %v161 = vld [vmem:[#allocation14 + $0x58] sm:$0xff]
    %vm162 = vcmask 261120
    %v164 = vsel %vm162, %v146, 0
    %v167 = vsel %vm162, %v147, 0
    %v170 = vsel %vm162, %v148, 0
    %v173 = vsel %vm162, %v149, 0
    %175 = vmatprep.subr.mxu0 0.0
    %176 = vmatpush1.msra.mxu0 %v142
    %177 = vmatprep.subr.mxu0 0.0
    %178 = vmatpush1.msra.mxu0 %v143
    %179 = vmatprep.subr.mxu0 0.0
    %180 = vmatpush1.msra.mxu0 %v144
    %181 = vmatprep.subr.mxu0 0.0
    %182 = vmatpush1.msra.mxu0 %v145
    %183 = vmatprep.subr.mxu0 0.0
    %184 = vmatpush1.msra.mxu0 0.0
    %185 = vmatprep.subr.mxu0 0.0
    %186 = vmatpush1.msra.mxu0 0.0
    %187 = vmatprep.subr.mxu0 0.0
    %188 = vmatpush1.msra.mxu0 0.0
    %189 = vmatprep.subr.mxu0 0.0
    %190 = vmatpush1.msra.mxu0 0.0
    %191 = vmatprep.subr.mxu0 0.0
    %192 = vmatpush1.msra.mxu0 0.0
    %193 = vmatprep.subr.mxu0 0.0
    %194 = vmatpush1.msra.mxu0 0.0
    %195 = vmatprep.subr.mxu0 0.0
    %196 = vmatpush1.msra.mxu0 0.0
    %197 = vmatprep.subr.mxu0 0.0
    %198 = vmatpush1.msra.mxu0 0.0
    %199 = vmatprep.subr.mxu0 0.0
    %200 = vmatpush1.msra.mxu0 0.0
    %201 = vmatprep.subr.mxu0 0.0
    %202 = vmatpush1.msra.mxu0 0.0
    %203 = vmatprep.subr.mxu0 0.0
    %204 = vmatpush1.msra.mxu0 0.0
    %205 = vmatprep.subr.mxu0 0.0
    %206 = vmatpush1.msra.mxu0 0.0
    %207 = vmatprep.subr.mxu0 0.0
    %208 = vmatpush1.msra.mxu0 0.0
    %209 = vmatprep.subr.mxu0 0.0
    %210 = vmatpush1.msra.mxu0 0.0
    %211 = vmatprep.subr.mxu0 0.0
    %212 = vmatpush1.msra.mxu0 0.0
    %213 = vmatprep.subr.mxu0 0.0
    %214 = vmatpush1.msra.mxu0 0.0
    %215 = vmatprep.subr.mxu0 0.0
    %216 = vmatpush1.msra.mxu0 0.0
    %217 = vmatprep.subr.mxu0 0.0
    %218 = vmatpush1.msra.mxu0 0.0
    %219 = vmatprep.subr.mxu0 0.0
    %220 = vmatpush1.msra.mxu0 0.0
    %221 = vmatprep.subr.mxu0 0.0
    %222 = vmatpush1.msra.mxu0 0.0
    %223 = vmatprep.subr.mxu0 0.0
    %224 = vmatpush1.msra.mxu0 0.0
    %225 = vmatprep.subr.mxu0 0.0
    %226 = vmatpush1.msra.mxu0 0.0
    %227 = vmatprep.subr.mxu0 0.0
    %228 = vmatpush1.msra.mxu0 0.0
    %229 = vmatprep.subr.mxu0 0.0
    %230 = vmatpush1.msra.mxu0 0.0
    %231 = vmatprep.subr.mxu0 0.0
    %232 = vmatpush1.msra.mxu0 0.0
    %233 = vmatprep.subr.mxu0 0.0
    %234 = vmatpush1.msra.mxu0 0.0
    %235 = vmatprep.subr.mxu0 0.0
    %236 = vmatpush1.msra.mxu0 0.0
    %237 = vmatprep.subr.mxu0 0.0
    %238 = vmatpush1.msra.mxu0 0.0
    %239 = vmatprep.mubr.f32.mxu0 0.0
    %240 = vmatmul.mubr.f32.gmra.mrb[0].mxu0 %v164
    %v241 = vpop.f32.mrb[0].mxu0
    %v242 = vadd.f32 0.0, %v241
    %v243 = vpop.f32.mrb[0].mxu0
    %244 = vmatprep.mubr.f32.mxu0 0.0
    %245 = vmatmul.mubr.f32.gmra.mrb[0].mxu0 %v167
    %v246 = vpop.f32.mrb[0].mxu0
    %v247 = vadd.f32 0.0, %v246
    %v248 = vpop.f32.mrb[0].mxu0
    %249 = vmatprep.mubr.f32.mxu0 0.0
    %250 = vmatmul.mubr.f32.gmra.mrb[0].mxu0 %v170
    %v251 = vpop.f32.mrb[0].mxu0
    %v252 = vadd.f32 0.0, %v251
    %v253 = vpop.f32.mrb[0].mxu0
    %254 = vmatprep.mubr.f32.mxu0 0.0
    %255 = vmatmul.mubr.f32.gmra.mrb[0].mxu0 %v173
    %v256 = vpop.f32.mrb[0].mxu0
    %v257 = vadd.f32 0.0, %v256
    %v258 = vpop.f32.mrb[0].mxu0
    %259 = vdwg.mxu0
    %v260 = vsub.f32 %v142, %v242
    %v261 = vsub.f32 %v143, %v247
    %v262 = vsub.f32 %v144, %v252
    %v263 = vsub.f32 %v145, %v257
    %v264 = vmul.f32 %v260, %v260
    %v265 = vmul.f32 %v261, %v261
    %v266 = vmul.f32 %v262, %v262
    %v267 = vmul.f32 %v263, %v263
    %268 = vmatprep.subr.mxu0 0.0
    %269 = vmatpush1.msra.mxu0 %v264
    %270 = vmatprep.subr.mxu0 0.0
    %271 = vmatpush1.msra.mxu0 %v265
    %272 = vmatprep.subr.mxu0 0.0
    %273 = vmatpush1.msra.mxu0 %v266
    %274 = vmatprep.subr.mxu0 0.0
    %275 = vmatpush1.msra.mxu0 %v267
    %276 = vmatprep.subr.mxu0 0.0
    %277 = vmatpush1.msra.mxu0 0.0
    %278 = vmatprep.subr.mxu0 0.0
    %279 = vmatpush1.msra.mxu0 0.0
    %280 = vmatprep.subr.mxu0 0.0
    %281 = vmatpush1.msra.mxu0 0.0
    %282 = vmatprep.subr.mxu0 0.0
    %283 = vmatpush1.msra.mxu0 0.0
    %284 = vmatprep.subr.mxu0 0.0
    %285 = vmatpush1.msra.mxu0 0.0
    %286 = vmatprep.subr.mxu0 0.0
    %287 = vmatpush1.msra.mxu0 0.0
    %288 = vmatprep.subr.mxu0 0.0
    %289 = vmatpush1.msra.mxu0 0.0
    %290 = vmatprep.subr.mxu0 0.0
    %291 = vmatpush1.msra.mxu0 0.0
    %292 = vmatprep.subr.mxu0 0.0
    %293 = vmatpush1.msra.mxu0 0.0
    %294 = vmatprep.subr.mxu0 0.0
    %295 = vmatpush1.msra.mxu0 0.0
    %296 = vmatprep.subr.mxu0 0.0
    %297 = vmatpush1.msra.mxu0 0.0
    %298 = vmatprep.subr.mxu0 0.0
    %299 = vmatpush1.msra.mxu0 0.0
    %300 = vmatprep.subr.mxu0 0.0
    %301 = vmatpush1.msra.mxu0 0.0
    %302 = vmatprep.subr.mxu0 0.0
    %303 = vmatpush1.msra.mxu0 0.0
    %304 = vmatprep.subr.mxu0 0.0
    %305 = vmatpush1.msra.mxu0 0.0
    %306 = vmatprep.subr.mxu0 0.0
    %307 = vmatpush1.msra.mxu0 0.0
    %308 = vmatprep.subr.mxu0 0.0
    %309 = vmatpush1.msra.mxu0 0.0
    %310 = vmatprep.subr.mxu0 0.0
    %311 = vmatpush1.msra.mxu0 0.0
    %312 = vmatprep.subr.mxu0 0.0
    %313 = vmatpush1.msra.mxu0 0.0
    %314 = vmatprep.subr.mxu0 0.0
    %315 = vmatpush1.msra.mxu0 0.0
    %316 = vmatprep.subr.mxu0 0.0
    %317 = vmatpush1.msra.mxu0 0.0
    %318 = vmatprep.subr.mxu0 0.0
    %319 = vmatpush1.msra.mxu0 0.0
    %320 = vmatprep.subr.mxu0 0.0
    %321 = vmatpush1.msra.mxu0 0.0
    %322 = vmatprep.subr.mxu0 0.0
    %323 = vmatpush1.msra.mxu0 0.0
    %324 = vmatprep.subr.mxu0 0.0
    %325 = vmatpush1.msra.mxu0 0.0
    %326 = vmatprep.subr.mxu0 0.0
    %327 = vmatpush1.msra.mxu0 0.0
    %328 = vmatprep.subr.mxu0 0.0
    %329 = vmatpush1.msra.mxu0 0.0
    %330 = vmatprep.subr.mxu0 0.0
    %331 = vmatpush1.msra.mxu0 0.0
    %332 = vmatprep.mubr.f32.mxu0 0.0
    %333 = vmatmul.mubr.f32.gmra.mrb[0].mxu0 %v164
    %v334 = vpop.f32.mrb[0].mxu0
    %v335 = vadd.f32 1e-05, %v334
    %v336 = vpop.f32.mrb[0].mxu0
    %337 = vmatprep.mubr.f32.mxu0 0.0
    %338 = vmatmul.mubr.f32.gmra.mrb[0].mxu0 %v167
    %v339 = vpop.f32.mrb[0].mxu0
    %v340 = vadd.f32 1e-05, %v339
    %v341 = vpop.f32.mrb[0].mxu0
    %342 = vmatprep.mubr.f32.mxu0 0.0
    %343 = vmatmul.mubr.f32.gmra.mrb[0].mxu0 %v170
    %v344 = vpop.f32.mrb[0].mxu0
    %v345 = vadd.f32 1e-05, %v344
    %v346 = vpop.f32.mrb[0].mxu0
    %347 = vmatprep.mubr.f32.mxu0 0.0
    %348 = vmatmul.mubr.f32.gmra.mrb[0].mxu0 %v173
    %v349 = vpop.f32.mrb[0].mxu0
    %v350 = vadd.f32 1e-05, %v349
    %v351 = vpop.f32.mrb[0].mxu0
    %352 = vdwg.mxu0
    %v353 = vrsqrt.pop %v335
    %v354 = vrsqrt.pop %v340
    %v355 = vrsqrt.pop %v345
    %v356 = vrsqrt.pop %v350
    %v357 = vmul.f32 %v260, %v353
    %v358 = vmul.f32 %v261, %v354
    %v359 = vmul.f32 %v262, %v355
    %v360 = vmul.f32 %v263, %v356
    %362 = vset.pattern.permute.xlu0 0
    %363 = vperm.xlu0 %362, %v150
    %v364 = vpop.permute.xlu0 %363
    %367 = vset.pattern.permute.xlu0 0
    %368 = vperm.xlu0 %367, %v151
    %v369 = vpop.permute.xlu0 %368
    %372 = vset.pattern.permute.xlu0 0
    %373 = vperm.xlu0 %372, %v152
    %v374 = vpop.permute.xlu0 %373
    %377 = vset.pattern.permute.xlu0 0
    %378 = vperm.xlu0 %377, %v153
    %v379 = vpop.permute.xlu0 %378
    %v381 = vmul.f32 %v357, %v364
    %v382 = vmul.f32 %v358, %v369
    %v383 = vmul.f32 %v359, %v374
    %v384 = vmul.f32 %v360, %v379
    %385 = vset.pattern.permute.xlu0 1
    %386 = vperm.xlu0 %385, %v150
    %v387 = vpop.permute.xlu0 %386
    %389 = vset.pattern.permute.xlu0 1
    %390 = vperm.xlu0 %389, %v151
    %v391 = vpop.permute.xlu0 %390
    %393 = vset.pattern.permute.xlu0 1
    %394 = vperm.xlu0 %393, %v152
    %v395 = vpop.permute.xlu0 %394
    %397 = vset.pattern.permute.xlu0 1
    %398 = vperm.xlu0 %397, %v153
    %v399 = vpop.permute.xlu0 %398
    %v401 = vadd.f32 %v381, %v387
    %v402 = vadd.f32 %v382, %v391
    %v403 = vadd.f32 %v383, %v395
    %v404 = vadd.f32 %v384, %v399
    %v405 = vld [vmem:[#allocation7] sm:$0xff]
    %v406 = vld [vmem:[#allocation7 + $0x8] sm:$0xff]
    %v407 = vld [vmem:[#allocation7 + $0x10] sm:$0xff]
    %v408 = vld [vmem:[#allocation7 + $0x18] sm:$0xff]
    %v409 = vld [vmem:[#allocation7 + $0x20] sm:$0xff]
    %v410 = vld [vmem:[#allocation7 + $0x28] sm:$0xff]
    %v411 = vld [vmem:[#allocation7 + $0x30] sm:$0xff]
    %v412 = vld [vmem:[#allocation7 + $0x38] sm:$0xff]
    %v413 = vld [vmem:[#allocation7 + $0x40] sm:$0xff]
    %v414 = vld [vmem:[#allocation7 + $0x48] sm:$0xff]
    %v415 = vld [vmem:[#allocation7 + $0x50] sm:$0xff]
    %v416 = vld [vmem:[#allocation7 + $0x58] sm:$0xff]
    %v417 = vld [vmem:[#allocation7 + $0x60] sm:$0xff]
    %v418 = vld [vmem:[#allocation7 + $0x68] sm:$0xff]
    %v419 = vld [vmem:[#allocation7 + $0x70] sm:$0xff]
    %v420 = vld [vmem:[#allocation7 + $0x78] sm:$0xff]
    %421 = vmatprep.subr.mxu0 0.0
    %422 = vmatpush1.msra.mxu0 %v405
    %423 = vmatprep.subr.mxu0 0.0
    %424 = vmatpush1.msra.mxu0 %v406
    %425 = vmatprep.subr.mxu0 0.0
    %426 = vmatpush1.msra.mxu0 %v407
    %427 = vmatprep.subr.mxu0 0.0
    %428 = vmatpush1.msra.mxu0 %v408
    %429 = vmatprep.subr.mxu0 0.0
    %430 = vmatpush1.msra.mxu0 %v409
    %431 = vmatprep.subr.mxu0 0.0
    %432 = vmatpush1.msra.mxu0 %v410
    %433 = vmatprep.subr.mxu0 0.0
    %434 = vmatpush1.msra.mxu0 %v411
    %435 = vmatprep.subr.mxu0 0.0
    %436 = vmatpush1.msra.mxu0 %v412
    %437 = vmatprep.subr.mxu0 0.0
    %438 = vmatpush1.msra.mxu0 %v413
    %439 = vmatprep.subr.mxu0 0.0
    %440 = vmatpush1.msra.mxu0 %v414
    %441 = vmatprep.subr.mxu0 0.0
    %442 = vmatpush1.msra.mxu0 %v415
    %443 = vmatprep.subr.mxu0 0.0
    %444 = vmatpush1.msra.mxu0 %v416
    %445 = vmatprep.subr.mxu0 0.0
    %446 = vmatpush1.msra.mxu0 %v417
    %447 = vmatprep.subr.mxu0 0.0
    %448 = vmatpush1.msra.mxu0 %v418
    %449 = vmatprep.subr.mxu0 0.0
    %450 = vmatpush1.msra.mxu0 %v419
    %451 = vmatprep.subr.mxu0 0.0
    %452 = vmatpush1.msra.mxu0 %v420
    %453 = vmatprep.subr.mxu0 0.0
    %454 = vmatpush1.msra.mxu0 0.0
    %455 = vmatprep.subr.mxu0 0.0
    %456 = vmatpush1.msra.mxu0 0.0
    %457 = vmatprep.subr.mxu0 0.0
    %458 = vmatpush1.msra.mxu0 0.0
    %459 = vmatprep.subr.mxu0 0.0
    %460 = vmatpush1.msra.mxu0 0.0
    %461 = vmatprep.subr.mxu0 0.0
    %462 = vmatpush1.msra.mxu0 0.0
    %463 = vmatprep.subr.mxu0 0.0
    %464 = vmatpush1.msra.mxu0 0.0
    %465 = vmatprep.subr.mxu0 0.0
    %466 = vmatpush1.msra.mxu0 0.0
    %467 = vmatprep.subr.mxu0 0.0
    %468 = vmatpush1.msra.mxu0 0.0
    %469 = vmatprep.subr.mxu0 0.0
    %470 = vmatpush1.msra.mxu0 0.0
    %471 = vmatprep.subr.mxu0 0.0
    %472 = vmatpush1.msra.mxu0 0.0
    %473 = vmatprep.subr.mxu0 0.0
    %474 = vmatpush1.msra.mxu0 0.0
    %475 = vmatprep.subr.mxu0 0.0
    %476 = vmatpush1.msra.mxu0 0.0
    %477 = vmatprep.subr.mxu0 0.0
    %478 = vmatpush1.msra.mxu0 0.0
    %479 = vmatprep.subr.mxu0 0.0
    %480 = vmatpush1.msra.mxu0 0.0
    %481 = vmatprep.subr.mxu0 0.0
    %482 = vmatpush1.msra.mxu0 0.0
    %483 = vmatprep.subr.mxu0 0.0
    %484 = vmatpush1.msra.mxu0 0.0
    %485 = vmatprep.mubr.f32.mxu0 0.0
    %486 = vmatmul.mubr.f32.gmra.mrb[0].mxu0 %v401
    %v487 = vpop.f32.mrb[0].mxu0
    %v488 = vadd.f32 0.0, %v487
    %v489 = vpop.f32.mrb[0].mxu0
    %490 = vmatprep.mubr.f32.mxu0 0.0
    %491 = vmatmul.mubr.f32.gmra.mrb[0].mxu0 %v402
    %v492 = vpop.f32.mrb[0].mxu0
    %v493 = vadd.f32 0.0, %v492
    %v494 = vpop.f32.mrb[0].mxu0
    %495 = vmatprep.mubr.f32.mxu0 0.0
    %496 = vmatmul.mubr.f32.gmra.mrb[0].mxu0 %v403
    %v497 = vpop.f32.mrb[0].mxu0
    %v498 = vadd.f32 0.0, %v497
    %v499 = vpop.f32.mrb[0].mxu0
    %500 = vmatprep.mubr.f32.mxu0 0.0
    %501 = vmatmul.mubr.f32.gmra.mrb[0].mxu0 %v404
    %v502 = vpop.f32.mrb[0].mxu0
    %v503 = vadd.f32 0.0, %v502
    %v504 = vpop.f32.mrb[0].mxu0
    %505 = vdwg.mxu0
    %vm506 = vcmp.gt.f32.partialorder %v401, %v488
    %vm507 = vcmp.gt.f32.partialorder %v402, %v493
    %vm508 = vcmp.gt.f32.partialorder %v403, %v498
    %vm509 = vcmp.gt.f32.partialorder %v404, %v503
    %v510 = vmul.f32 %v401, 1.9516308
    %v511 = vmul.f32 %v402, 1.9516308
    %v512 = vmul.f32 %v403, 1.9516308
    %v513 = vmul.f32 %v404, 1.9516308
    %v514 = vmul.f32 %v401, 0.7516383
    %v515 = vmul.f32 %v402, 0.7516383
    %v516 = vmul.f32 %v403, 0.7516383
    %v517 = vmul.f32 %v404, 0.7516383
    %v518 = vsel %vm506, %v510, %v514
    %v519 = vsel %vm507, %v511, %v515
    %v520 = vsel %vm508, %v512, %v516
    %v521 = vsel %vm509, %v513, %v517
    %v522 = vld [vmem:[#allocation8] sm:$0xff]
    %v523 = vld [vmem:[#allocation8 + $0x8] sm:$0xff]
    %v524 = vld [vmem:[#allocation8 + $0x10] sm:$0xff]
    %v525 = vld [vmem:[#allocation8 + $0x18] sm:$0xff]
    %v526 = vld [vmem:[#allocation8 + $0x20] sm:$0xff]
    %v527 = vld [vmem:[#allocation8 + $0x28] sm:$0xff]
    %v528 = vld [vmem:[#allocation8 + $0x30] sm:$0xff]
    %v529 = vld [vmem:[#allocation8 + $0x38] sm:$0xff]
    %v530 = vld [vmem:[#allocation8 + $0x40] sm:$0xff]
    %v531 = vld [vmem:[#allocation8 + $0x48] sm:$0xff]
    %v532 = vld [vmem:[#allocation8 + $0x50] sm:$0xff]
    %v533 = vld [vmem:[#allocation8 + $0x58] sm:$0xff]
    %v534 = vld [vmem:[#allocation8 + $0x60] sm:$0xff]
    %v535 = vld [vmem:[#allocation8 + $0x68] sm:$0xff]
    %v536 = vld [vmem:[#allocation8 + $0x70] sm:$0xff]
    %v537 = vld [vmem:[#allocation8 + $0x78] sm:$0xff]
    %538 = vmatprep.subr.mxu0 0.0
    %539 = vmatpush1.msra.mxu0 %v522
    %540 = vmatprep.subr.mxu0 0.0
    %541 = vmatpush1.msra.mxu0 %v523
    %542 = vmatprep.subr.mxu0 0.0
    %543 = vmatpush1.msra.mxu0 %v524
    %544 = vmatprep.subr.mxu0 0.0
    %545 = vmatpush1.msra.mxu0 %v525
    %546 = vmatprep.subr.mxu0 0.0
    %547 = vmatpush1.msra.mxu0 %v526
    %548 = vmatprep.subr.mxu0 0.0
    %549 = vmatpush1.msra.mxu0 %v527
    %550 = vmatprep.subr.mxu0 0.0
    %551 = vmatpush1.msra.mxu0 %v528
    %552 = vmatprep.subr.mxu0 0.0
    %553 = vmatpush1.msra.mxu0 %v529
    %554 = vmatprep.subr.mxu0 0.0
    %555 = vmatpush1.msra.mxu0 %v530
    %556 = vmatprep.subr.mxu0 0.0
    %557 = vmatpush1.msra.mxu0 %v531
    %558 = vmatprep.subr.mxu0 0.0
    %559 = vmatpush1.msra.mxu0 %v532
    %560 = vmatprep.subr.mxu0 0.0
    %561 = vmatpush1.msra.mxu0 %v533
    %562 = vmatprep.subr.mxu0 0.0
    %563 = vmatpush1.msra.mxu0 %v534
    %564 = vmatprep.subr.mxu0 0.0
    %565 = vmatpush1.msra.mxu0 %v535
    %566 = vmatprep.subr.mxu0 0.0
    %567 = vmatpush1.msra.mxu0 %v536
    %568 = vmatprep.subr.mxu0 0.0
    %569 = vmatpush1.msra.mxu0 %v537
    %570 = vmatprep.subr.mxu0 0.0
    %571 = vmatpush1.msra.mxu0 0.0
    %572 = vmatprep.subr.mxu0 0.0
    %573 = vmatpush1.msra.mxu0 0.0
    %574 = vmatprep.subr.mxu0 0.0
    %575 = vmatpush1.msra.mxu0 0.0
    %576 = vmatprep.subr.mxu0 0.0
    %577 = vmatpush1.msra.mxu0 0.0
    %578 = vmatprep.subr.mxu0 0.0
    %579 = vmatpush1.msra.mxu0 0.0
    %580 = vmatprep.subr.mxu0 0.0
    %581 = vmatpush1.msra.mxu0 0.0
    %582 = vmatprep.subr.mxu0 0.0
    %583 = vmatpush1.msra.mxu0 0.0
    %584 = vmatprep.subr.mxu0 0.0
    %585 = vmatpush1.msra.mxu0 0.0
    %586 = vmatprep.subr.mxu0 0.0
    %587 = vmatpush1.msra.mxu0 0.0
    %588 = vmatprep.subr.mxu0 0.0
    %589 = vmatpush1.msra.mxu0 0.0
    %590 = vmatprep.subr.mxu0 0.0
    %591 = vmatpush1.msra.mxu0 0.0
    %592 = vmatprep.subr.mxu0 0.0
    %593 = vmatpush1.msra.mxu0 0.0
    %594 = vmatprep.subr.mxu0 0.0
    %595 = vmatpush1.msra.mxu0 0.0
    %596 = vmatprep.subr.mxu0 0.0
    %597 = vmatpush1.msra.mxu0 0.0
    %598 = vmatprep.subr.mxu0 0.0
    %599 = vmatpush1.msra.mxu0 0.0
    %600 = vmatprep.subr.mxu0 0.0
    %601 = vmatpush1.msra.mxu0 0.0
    %602 = vmatprep.mubr.f32.mxu0 0.0
    %603 = vmatmul.mubr.f32.gmra.mrb[0].mxu0 %v518
    %v604 = vpop.f32.mrb[0].mxu0
    %v605 = vadd.f32 0.0, %v604
    %v606 = vpop.f32.mrb[0].mxu0
    %607 = vmatprep.mubr.f32.mxu0 0.0
    %608 = vmatmul.mubr.f32.gmra.mrb[0].mxu0 %v519
    %v609 = vpop.f32.mrb[0].mxu0
    %v610 = vadd.f32 0.0, %v609
    %v611 = vpop.f32.mrb[0].mxu0
    %612 = vmatprep.mubr.f32.mxu0 0.0
    %613 = vmatmul.mubr.f32.gmra.mrb[0].mxu0 %v520
    %v614 = vpop.f32.mrb[0].mxu0
    %v615 = vadd.f32 0.0, %v614
    %v616 = vpop.f32.mrb[0].mxu0
    %617 = vmatprep.mubr.f32.mxu0 0.0
    %618 = vmatmul.mubr.f32.gmra.mrb[0].mxu0 %v521
    %v619 = vpop.f32.mrb[0].mxu0
    %v620 = vadd.f32 0.0, %v619
    %v621 = vpop.f32.mrb[0].mxu0
    %622 = vdwg.mxu0
    %s623 = scalar_lea.vmem [#allocation8], 128
    %v624 = vld [vmem:[%s623] sm:$0xff]
    %v625 = vld [vmem:[%s623 + $0x8] sm:$0xff]
    %v626 = vld [vmem:[%s623 + $0x10] sm:$0xff]
    %v627 = vld [vmem:[%s623 + $0x18] sm:$0xff]
    %v628 = vld [vmem:[%s623 + $0x20] sm:$0xff]
    %v629 = vld [vmem:[%s623 + $0x28] sm:$0xff]
    %v630 = vld [vmem:[%s623 + $0x30] sm:$0xff]
    %v631 = vld [vmem:[%s623 + $0x38] sm:$0xff]
    %v632 = vld [vmem:[%s623 + $0x40] sm:$0xff]
    %v633 = vld [vmem:[%s623 + $0x48] sm:$0xff]
    %v634 = vld [vmem:[%s623 + $0x50] sm:$0xff]
    %v635 = vld [vmem:[%s623 + $0x58] sm:$0xff]
    %v636 = vld [vmem:[%s623 + $0x60] sm:$0xff]
    %v637 = vld [vmem:[%s623 + $0x68] sm:$0xff]
    %v638 = vld [vmem:[%s623 + $0x70] sm:$0xff]
    %v639 = vld [vmem:[%s623 + $0x78] sm:$0xff]
    %640 = vmatprep.subr.mxu0 0.0
    %641 = vmatpush1.msra.mxu0 %v624
    %642 = vmatprep.subr.mxu0 0.0
    %643 = vmatpush1.msra.mxu0 %v625
    %644 = vmatprep.subr.mxu0 0.0
    %645 = vmatpush1.msra.mxu0 %v626
    %646 = vmatprep.subr.mxu0 0.0
    %647 = vmatpush1.msra.mxu0 %v627
    %648 = vmatprep.subr.mxu0 0.0
    %649 = vmatpush1.msra.mxu0 %v628
    %650 = vmatprep.subr.mxu0 0.0
    %651 = vmatpush1.msra.mxu0 %v629
    %652 = vmatprep.subr.mxu0 0.0
    %653 = vmatpush1.msra.mxu0 %v630
    %654 = vmatprep.subr.mxu0 0.0
    %655 = vmatpush1.msra.mxu0 %v631
    %656 = vmatprep.subr.mxu0 0.0
    %657 = vmatpush1.msra.mxu0 %v632
    %658 = vmatprep.subr.mxu0 0.0
    %659 = vmatpush1.msra.mxu0 %v633
    %660 = vmatprep.subr.mxu0 0.0
    %661 = vmatpush1.msra.mxu0 %v634
    %662 = vmatprep.subr.mxu0 0.0
    %663 = vmatpush1.msra.mxu0 %v635
    %664 = vmatprep.subr.mxu0 0.0
    %665 = vmatpush1.msra.mxu0 %v636
    %666 = vmatprep.subr.mxu0 0.0
    %667 = vmatpush1.msra.mxu0 %v637
    %668 = vmatprep.subr.mxu0 0.0
    %669 = vmatpush1.msra.mxu0 %v638
    %670 = vmatprep.subr.mxu0 0.0
    %671 = vmatpush1.msra.mxu0 %v639
    %672 = vmatprep.subr.mxu0 0.0
    %673 = vmatpush1.msra.mxu0 0.0
    %674 = vmatprep.subr.mxu0 0.0
    %675 = vmatpush1.msra.mxu0 0.0
    %676 = vmatprep.subr.mxu0 0.0
    %677 = vmatpush1.msra.mxu0 0.0
    %678 = vmatprep.subr.mxu0 0.0
    %679 = vmatpush1.msra.mxu0 0.0
    %680 = vmatprep.subr.mxu0 0.0
    %681 = vmatpush1.msra.mxu0 0.0
    %682 = vmatprep.subr.mxu0 0.0
    %683 = vmatpush1.msra.mxu0 0.0
    %684 = vmatprep.subr.mxu0 0.0
    %685 = vmatpush1.msra.mxu0 0.0
    %686 = vmatprep.subr.mxu0 0.0
    %687 = vmatpush1.msra.mxu0 0.0
    %688 = vmatprep.subr.mxu0 0.0
    %689 = vmatpush1.msra.mxu0 0.0
    %690 = vmatprep.subr.mxu0 0.0
    %691 = vmatpush1.msra.mxu0 0.0
    %692 = vmatprep.subr.mxu0 0.0
    %693 = vmatpush1.msra.mxu0 0.0
    %694 = vmatprep.subr.mxu0 0.0
    %695 = vmatpush1.msra.mxu0 0.0
    %696 = vmatprep.subr.mxu0 0.0
    %697 = vmatpush1.msra.mxu0 0.0
    %698 = vmatprep.subr.mxu0 0.0
    %699 = vmatpush1.msra.mxu0 0.0
    %700 = vmatprep.subr.mxu0 0.0
    %701 = vmatpush1.msra.mxu0 0.0
    %702 = vmatprep.subr.mxu0 0.0
    %703 = vmatpush1.msra.mxu0 0.0
    %704 = vmatprep.mubr.f32.mxu0 0.0
    %705 = vmatmul.mubr.f32.gmra.mrb[0].mxu0 %v518
    %v706 = vpop.f32.mrb[0].mxu0
    %v707 = vadd.f32 0.0, %v706
    %v708 = vpop.f32.mrb[0].mxu0
    %709 = vmatprep.mubr.f32.mxu0 0.0
    %710 = vmatmul.mubr.f32.gmra.mrb[0].mxu0 %v519
    %v711 = vpop.f32.mrb[0].mxu0
    %v712 = vadd.f32 0.0, %v711
    %v713 = vpop.f32.mrb[0].mxu0
    %714 = vmatprep.mubr.f32.mxu0 0.0
    %715 = vmatmul.mubr.f32.gmra.mrb[0].mxu0 %v520
    %v716 = vpop.f32.mrb[0].mxu0
    %v717 = vadd.f32 0.0, %v716
    %v718 = vpop.f32.mrb[0].mxu0
    %719 = vmatprep.mubr.f32.mxu0 0.0
    %720 = vmatmul.mubr.f32.gmra.mrb[0].mxu0 %v521
    %v721 = vpop.f32.mrb[0].mxu0
    %v722 = vadd.f32 0.0, %v721
    %v723 = vpop.f32.mrb[0].mxu0
    %724 = vdwg.mxu0
    %725 = vset.pattern.permute.xlu0 4
    %726 = vperm.xlu0 %725, %v150
    %v727 = vpop.permute.xlu0 %726
    %729 = vset.pattern.permute.xlu0 4
    %730 = vperm.xlu0 %729, %v151
    %v731 = vpop.permute.xlu0 %730
    %733 = vset.pattern.permute.xlu0 4
    %734 = vperm.xlu0 %733, %v152
    %v735 = vpop.permute.xlu0 %734
    %737 = vset.pattern.permute.xlu0 4
    %738 = vperm.xlu0 %737, %v153
    %v739 = vpop.permute.xlu0 %738
    %v741 = vmul.f32 %v605, %v727
    %v742 = vmul.f32 %v610, %v731
    %v743 = vmul.f32 %v615, %v735
    %v744 = vmul.f32 %v620, %v739
    %745 = vset.pattern.permute.xlu0 5
    %746 = vperm.xlu0 %745, %v150
    %v747 = vpop.permute.xlu0 %746
    %749 = vset.pattern.permute.xlu0 5
    %750 = vperm.xlu0 %749, %v151
    %v751 = vpop.permute.xlu0 %750
    %753 = vset.pattern.permute.xlu0 5
    %754 = vperm.xlu0 %753, %v152
    %v755 = vpop.permute.xlu0 %754
    %757 = vset.pattern.permute.xlu0 5
    %758 = vperm.xlu0 %757, %v153
    %v759 = vpop.permute.xlu0 %758
    %v761 = vmul.f32 %v707, %v747
    %v762 = vmul.f32 %v712, %v751
    %v763 = vmul.f32 %v717, %v755
    %v764 = vmul.f32 %v722, %v759
    %v765 = vsub.f32 %v741, %v761
    %v766 = vsub.f32 %v742, %v762
    %v767 = vsub.f32 %v743, %v763
    %v768 = vsub.f32 %v744, %v764
    %v769 = vmul.f32 %v605, %v747
    %v770 = vmul.f32 %v610, %v751
    %v771 = vmul.f32 %v615, %v755
    %v772 = vmul.f32 %v620, %v759
    %v773 = vmul.f32 %v707, %v727
    %v774 = vmul.f32 %v712, %v731
    %v775 = vmul.f32 %v717, %v735
    %v776 = vmul.f32 %v722, %v739
    %v777 = vadd.f32 %v769, %v773
    %v778 = vadd.f32 %v770, %v774
    %v779 = vadd.f32 %v771, %v775
    %v780 = vadd.f32 %v772, %v776
    %v781 = vmul.f32 %v605, %v605
    %v782 = vmul.f32 %v610, %v610
    %v783 = vmul.f32 %v615, %v615
    %v784 = vmul.f32 %v620, %v620
    %v785 = vmul.f32 %v707, %v707
    %v786 = vmul.f32 %v712, %v712
    %v787 = vmul.f32 %v717, %v717
    %v788 = vmul.f32 %v722, %v722
    %v789 = vadd.f32 %v781, %v785
    %v790 = vadd.f32 %v782, %v786
    %v791 = vadd.f32 %v783, %v787
    %v792 = vadd.f32 %v784, %v788
    %v793 = vld [vmem:[%s5] sm:$0x3]
    %v795 = vsel %vm162, %v793, 0
    %797 = vmatprep.subr.mxu0 0.0
    %798 = vmatpush1.msra.mxu0 %v789
    %799 = vmatprep.subr.mxu0 0.0
    %800 = vmatpush1.msra.mxu0 %v790
    %801 = vmatprep.subr.mxu0 0.0
    %802 = vmatpush1.msra.mxu0 %v791
    %803 = vmatprep.subr.mxu0 0.0
    %804 = vmatpush1.msra.mxu0 %v792
    %805 = vmatprep.subr.mxu0 0.0
    %806 = vmatpush1.msra.mxu0 0.0
    %807 = vmatprep.subr.mxu0 0.0
    %808 = vmatpush1.msra.mxu0 0.0
    %809 = vmatprep.subr.mxu0 0.0
    %810 = vmatpush1.msra.mxu0 0.0
    %811 = vmatprep.subr.mxu0 0.0
    %812 = vmatpush1.msra.mxu0 0.0
    %813 = vmatprep.subr.mxu0 0.0
    %814 = vmatpush1.msra.mxu0 0.0
    %815 = vmatprep.subr.mxu0 0.0
    %816 = vmatpush1.msra.mxu0 0.0
    %817 = vmatprep.subr.mxu0 0.0
    %818 = vmatpush1.msra.mxu0 0.0
    %819 = vmatprep.subr.mxu0 0.0
    %820 = vmatpush1.msra.mxu0 0.0
    %821 = vmatprep.subr.mxu0 0.0
    %822 = vmatpush1.msra.mxu0 0.0
    %823 = vmatprep.subr.mxu0 0.0
    %824 = vmatpush1.msra.mxu0 0.0
    %825 = vmatprep.subr.mxu0 0.0
    %826 = vmatpush1.msra.mxu0 0.0
    %827 = vmatprep.subr.mxu0 0.0
    %828 = vmatpush1.msra.mxu0 0.0
    %829 = vmatprep.subr.mxu0 0.0
    %830 = vmatpush1.msra.mxu0 0.0
    %831 = vmatprep.subr.mxu0 0.0
    %832 = vmatpush1.msra.mxu0 0.0
    %833 = vmatprep.subr.mxu0 0.0
    %834 = vmatpush1.msra.mxu0 0.0
    %835 = vmatprep.subr.mxu0 0.0
    %836 = vmatpush1.msra.mxu0 0.0
    %837 = vmatprep.subr.mxu0 0.0
    %838 = vmatpush1.msra.mxu0 0.0
    %839 = vmatprep.subr.mxu0 0.0
    %840 = vmatpush1.msra.mxu0 0.0
    %841 = vmatprep.subr.mxu0 0.0
    %842 = vmatpush1.msra.mxu0 0.0
    %843 = vmatprep.subr.mxu0 0.0
    %844 = vmatpush1.msra.mxu0 0.0
    %845 = vmatprep.subr.mxu0 0.0
    %846 = vmatpush1.msra.mxu0 0.0
    %847 = vmatprep.subr.mxu0 0.0
    %848 = vmatpush1.msra.mxu0 0.0
    %849 = vmatprep.subr.mxu0 0.0
    %850 = vmatpush1.msra.mxu0 0.0
    %851 = vmatprep.subr.mxu0 0.0
    %852 = vmatpush1.msra.mxu0 0.0
    %853 = vmatprep.subr.mxu0 0.0
    %854 = vmatpush1.msra.mxu0 0.0
    %855 = vmatprep.subr.mxu0 0.0
    %856 = vmatpush1.msra.mxu0 0.0
    %857 = vmatprep.subr.mxu0 0.0
    %858 = vmatpush1.msra.mxu0 0.0
    %859 = vmatprep.subr.mxu0 0.0
    %860 = vmatpush1.msra.mxu0 0.0
    %861 = vmatprep.mubr.f32.mxu0 0.0
    %862 = vmatmul.mubr.f32.gmra.mrb[0].mxu0 %v795
    %v863 = vpop.f32.mrb[0].mxu0
    %v864 = vadd.f32 0.0, %v863
    %v865 = vpop.f32.mrb[0].mxu0
    %866 = vdwg.mxu0
    %v867 = vlaneseq
    %v868 = vshrl.u32 %v867, 7
    %v869 = vadd.s32 %v868, 8
    %v870 = vadd.s32 %v868, 16
    %v871 = vadd.s32 %v868, 24
    %v872 = vadd.s32 %v868, 32
    %v873 = vadd.s32 %v868, 40
    %v874 = vadd.s32 %v868, 48
    %v875 = vadd.s32 %v868, 56
    %v876 = vlaneseq
    %v877 = vand.u32 %v876, 127
    %vm878 = vcmp.eq.s32.totalorder %v868, %v877
    %vm879 = vcmp.eq.s32.totalorder %v869, %v877
    %vm880 = vcmp.eq.s32.totalorder %v870, %v877
    %vm881 = vcmp.eq.s32.totalorder %v871, %v877
    %vm882 = vcmp.eq.s32.totalorder %v872, %v877
    %vm883 = vcmp.eq.s32.totalorder %v873, %v877
    %vm884 = vcmp.eq.s32.totalorder %v874, %v877
    %vm885 = vcmp.eq.s32.totalorder %v875, %v877
    %v886 = vlaneseq
    %v887 = vshrl.u32 %v886, 7
    %v888 = vsub.s32 0, %v887
    %v889 = vrot.slane %v864, %v888
    %v890 = vsel %vm878, %v889, 0.0
    %v891 = vsel %vm879, %v889, 0.0
    %v892 = vsel %vm880, %v889, 0.0
    %v893 = vsel %vm881, %v889, 0.0
    %v894 = vsel %vm882, %v889, 0.0
    %v895 = vsel %vm883, %v889, 0.0
    %v896 = vsel %vm884, %v889, 0.0
    %v897 = vsel %vm885, %v889, 0.0
    %vm898 = vcmask 523264
    %v900 = vsel %vm898, %v890, 0
    %v903 = vsel %vm898, %v891, 0
    %v906 = vsel %vm898, %v892, 0
    %v909 = vsel %vm898, %v893, 0
    %v912 = vsel %vm898, %v894, 0
    %v915 = vsel %vm898, %v895, 0
    %v918 = vsel %vm898, %v896, 0
    %v921 = vsel %vm898, %v897, 0
    %923 = vmatprep.subr.mxu0 0.0
    %924 = vmatpush1.msra.mxu0 1.0
    %925 = vmatprep.subr.mxu0 0.0
    %926 = vmatpush1.msra.mxu0 1.0
    %927 = vmatprep.subr.mxu0 0.0
    %928 = vmatpush1.msra.mxu0 1.0
    %929 = vmatprep.subr.mxu0 0.0
    %930 = vmatpush1.msra.mxu0 1.0
    %931 = vmatprep.subr.mxu0 0.0
    %932 = vmatpush1.msra.mxu0 1.0
    %933 = vmatprep.subr.mxu0 0.0
    %934 = vmatpush1.msra.mxu0 1.0
    %935 = vmatprep.subr.mxu0 0.0
    %936 = vmatpush1.msra.mxu0 1.0
    %937 = vmatprep.subr.mxu0 0.0
    %938 = vmatpush1.msra.mxu0 1.0
    %939 = vmatprep.subr.mxu0 0.0
    %940 = vmatpush1.msra.mxu0 0.0
    %941 = vmatprep.subr.mxu0 0.0
    %942 = vmatpush1.msra.mxu0 0.0
    %943 = vmatprep.subr.mxu0 0.0
    %944 = vmatpush1.msra.mxu0 0.0
    %945 = vmatprep.subr.mxu0 0.0
    %946 = vmatpush1.msra.mxu0 0.0
    %947 = vmatprep.subr.mxu0 0.0
    %948 = vmatpush1.msra.mxu0 0.0
    %949 = vmatprep.subr.mxu0 0.0
    %950 = vmatpush1.msra.mxu0 0.0
    %951 = vmatprep.subr.mxu0 0.0
    %952 = vmatpush1.msra.mxu0 0.0
    %953 = vmatprep.subr.mxu0 0.0
    %954 = vmatpush1.msra.mxu0 0.0
    %955 = vmatprep.subr.mxu0 0.0
    %956 = vmatpush1.msra.mxu0 0.0
    %957 = vmatprep.subr.mxu0 0.0
    %958 = vmatpush1.msra.mxu0 0.0
    %959 = vmatprep.subr.mxu0 0.0
    %960 = vmatpush1.msra.mxu0 0.0
    %961 = vmatprep.subr.mxu0 0.0
    %962 = vmatpush1.msra.mxu0 0.0
    %963 = vmatprep.subr.mxu0 0.0
    %964 = vmatpush1.msra.mxu0 0.0
    %965 = vmatprep.subr.mxu0 0.0
    %966 = vmatpush1.msra.mxu0 0.0
    %967 = vmatprep.subr.mxu0 0.0
    %968 = vmatpush1.msra.mxu0 0.0
    %969 = vmatprep.subr.mxu0 0.0
    %970 = vmatpush1.msra.mxu0 0.0
    %971 = vmatprep.subr.mxu0 0.0
    %972 = vmatpush1.msra.mxu0 0.0
    %973 = vmatprep.subr.mxu0 0.0
    %974 = vmatpush1.msra.mxu0 0.0
    %975 = vmatprep.subr.mxu0 0.0
    %976 = vmatpush1.msra.mxu0 0.0
    %977 = vmatprep.subr.mxu0 0.0
    %978 = vmatpush1.msra.mxu0 0.0
    %979 = vmatprep.subr.mxu0 0.0
    %980 = vmatpush1.msra.mxu0 0.0
    %981 = vmatprep.subr.mxu0 0.0
    %982 = vmatpush1.msra.mxu0 0.0
    %983 = vmatprep.subr.mxu0 0.0
    %984 = vmatpush1.msra.mxu0 0.0
    %985 = vmatprep.subr.mxu0 0.0
    %986 = vmatpush1.msra.mxu0 0.0
    %987 = vmatprep.mubr.f32.mxu0 0.0
    %988 = vmatmul.mubr.f32.gmra.mrb[0].mxu0 %v900
    %v989 = vpop.f32.mrb[0].mxu0
    %v990 = vadd.f32 0.0, %v989
    %v991 = vpop.f32.mrb[0].mxu0
    %992 = vmatprep.mubr.f32.mxu0 0.0
    %993 = vmatmul.mubr.f32.gmra.mrb[0].mxu0 %v903
    %v994 = vpop.f32.mrb[0].mxu0
    %v995 = vadd.f32 0.0, %v994
    %v996 = vpop.f32.mrb[0].mxu0
    %997 = vmatprep.mubr.f32.mxu0 0.0
    %998 = vmatmul.mubr.f32.gmra.mrb[0].mxu0 %v906
    %v999 = vpop.f32.mrb[0].mxu0
    %v1000 = vadd.f32 0.0, %v999
    %v1001 = vpop.f32.mrb[0].mxu0
    %1002 = vmatprep.mubr.f32.mxu0 0.0
    %1003 = vmatmul.mubr.f32.gmra.mrb[0].mxu0 %v909
    %v1004 = vpop.f32.mrb[0].mxu0
    %v1005 = vadd.f32 0.0, %v1004
    %v1006 = vpop.f32.mrb[0].mxu0
    %1007 = vmatprep.mubr.f32.mxu0 0.0
    %1008 = vmatmul.mubr.f32.gmra.mrb[0].mxu0 %v912
    %v1009 = vpop.f32.mrb[0].mxu0
    %v1010 = vadd.f32 0.0, %v1009
    %v1011 = vpop.f32.mrb[0].mxu0
    %1012 = vmatprep.mubr.f32.mxu0 0.0
    %1013 = vmatmul.mubr.f32.gmra.mrb[0].mxu0 %v915
    %v1014 = vpop.f32.mrb[0].mxu0
    %v1015 = vadd.f32 0.0, %v1014
    %v1016 = vpop.f32.mrb[0].mxu0
    %1017 = vmatprep.mubr.f32.mxu0 0.0
    %1018 = vmatmul.mubr.f32.gmra.mrb[0].mxu0 %v918
    %v1019 = vpop.f32.mrb[0].mxu0
    %v1020 = vadd.f32 0.0, %v1019
    %v1021 = vpop.f32.mrb[0].mxu0
    %1022 = vmatprep.mubr.f32.mxu0 0.0
    %1023 = vmatmul.mubr.f32.gmra.mrb[0].mxu0 %v921
    %v1024 = vpop.f32.mrb[0].mxu0
    %v1025 = vadd.f32 0.0, %v1024
    %v1026 = vpop.f32.mrb[0].mxu0
    %1027 = vdwg.mxu0
    %vm1028 = vcmp.lt.f32.partialorder %v990, %v889
    %vm1029 = vcmp.lt.f32.partialorder %v995, %v889
    %vm1030 = vcmp.lt.f32.partialorder %v1000, %v889
    %vm1031 = vcmp.lt.f32.partialorder %v1005, %v889
    %vm1032 = vcmp.lt.f32.partialorder %v1010, %v889
    %vm1033 = vcmp.lt.f32.partialorder %v1015, %v889
    %vm1034 = vcmp.lt.f32.partialorder %v1020, %v889
    %vm1035 = vcmp.lt.f32.partialorder %v1025, %v889
    %v1036 = vsel %vm1028, 1, 0
    %v1037 = vsel %vm1029, 1, 0
    %v1038 = vsel %vm1030, 1, 0
    %v1039 = vsel %vm1031, 1, 0
    %v1040 = vsel %vm1032, 1, 0
    %v1041 = vsel %vm1033, 1, 0
    %v1042 = vsel %vm1034, 1, 0
    %v1043 = vsel %vm1035, 1, 0
    %v1044 = vcvt.s32.f32 %v1036
    %v1045 = vcvt.s32.f32 %v1037
    %v1046 = vcvt.s32.f32 %v1038
    %v1047 = vcvt.s32.f32 %v1039
    %v1048 = vcvt.s32.f32 %v1040
    %v1049 = vcvt.s32.f32 %v1041
    %v1050 = vcvt.s32.f32 %v1042
    %v1051 = vcvt.s32.f32 %v1043
    %v1053 = vsel %vm898, 1.0, 0
    %1055 = vmatprep.subr.mxu0 0.0
    %1056 = vmatpush1.msra.mxu0 %v1044
    %1057 = vmatprep.subr.mxu0 0.0
    %1058 = vmatpush1.msra.mxu0 %v1045
    %1059 = vmatprep.subr.mxu0 0.0
    %1060 = vmatpush1.msra.mxu0 %v1046
    %1061 = vmatprep.subr.mxu0 0.0
    %1062 = vmatpush1.msra.mxu0 %v1047
    %1063 = vmatprep.subr.mxu0 0.0
    %1064 = vmatpush1.msra.mxu0 %v1048
    %1065 = vmatprep.subr.mxu0 0.0
    %1066 = vmatpush1.msra.mxu0 %v1049
    %1067 = vmatprep.subr.mxu0 0.0
    %1068 = vmatpush1.msra.mxu0 %v1050
    %1069 = vmatprep.subr.mxu0 0.0
    %1070 = vmatpush1.msra.mxu0 %v1051
    %1071 = vmatprep.subr.mxu0 0.0
    %1072 = vmatpush1.msra.mxu0 0.0
    %1073 = vmatprep.subr.mxu0 0.0
    %1074 = vmatpush1.msra.mxu0 0.0
    %1075 = vmatprep.subr.mxu0 0.0
    %1076 = vmatpush1.msra.mxu0 0.0
    %1077 = vmatprep.subr.mxu0 0.0
    %1078 = vmatpush1.msra.mxu0 0.0
    %1079 = vmatprep.subr.mxu0 0.0
    %1080 = vmatpush1.msra.mxu0 0.0
    %1081 = vmatprep.subr.mxu0 0.0
    %1082 = vmatpush1.msra.mxu0 0.0
    %1083 = vmatprep.subr.mxu0 0.0
    %1084 = vmatpush1.msra.mxu0 0.0
    %1085 = vmatprep.subr.mxu0 0.0
    %1086 = vmatpush1.msra.mxu0 0.0
    %1087 = vmatprep.subr.mxu0 0.0
    %1088 = vmatpush1.msra.mxu0 0.0
    %1089 = vmatprep.subr.mxu0 0.0
    %1090 = vmatpush1.msra.mxu0 0.0
    %1091 = vmatprep.subr.mxu0 0.0
    %1092 = vmatpush1.msra.mxu0 0.0
    %1093 = vmatprep.subr.mxu0 0.0
    %1094 = vmatpush1.msra.mxu0 0.0
    %1095 = vmatprep.subr.mxu0 0.0
    %1096 = vmatpush1.msra.mxu0 0.0
    %1097 = vmatprep.subr.mxu0 0.0
    %1098 = vmatpush1.msra.mxu0 0.0
    %1099 = vmatprep.subr.mxu0 0.0
    %1100 = vmatpush1.msra.mxu0 0.0
    %1101 = vmatprep.subr.mxu0 0.0
    %1102 = vmatpush1.msra.mxu0 0.0
    %1103 = vmatprep.subr.mxu0 0.0
    %1104 = vmatpush1.msra.mxu0 0.0
    %1105 = vmatprep.subr.mxu0 0.0
    %1106 = vmatpush1.msra.mxu0 0.0
    %1107 = vmatprep.subr.mxu0 0.0
    %1108 = vmatpush1.msra.mxu0 0.0
    %1109 = vmatprep.subr.mxu0 0.0
    %1110 = vmatpush1.msra.mxu0 0.0
    %1111 = vmatprep.subr.mxu0 0.0
    %1112 = vmatpush1.msra.mxu0 0.0
    %1113 = vmatprep.subr.mxu0 0.0
    %1114 = vmatpush1.msra.mxu0 0.0
    %1115 = vmatprep.subr.mxu0 0.0
    %1116 = vmatpush1.msra.mxu0 0.0
    %1117 = vmatprep.subr.mxu0 0.0
    %1118 = vmatpush1.msra.mxu0 0.0
    %1119 = vmatprep.mubr.f32.mxu0 0.0
    %1120 = vmatmul.mubr.f32.gmra.mrb[0].mxu0 %v1053
    %v1121 = vpop.f32.mrb[0].mxu0
    %v1122 = vadd.f32 0.0, %v1121
    %v1123 = vpop.f32.mrb[0].mxu0
    %1124 = vdwg.mxu0
    %vm1125 = vcmp.le.f32.partialorder %v990, %v889
    %vm1126 = vcmp.le.f32.partialorder %v995, %v889
    %vm1127 = vcmp.le.f32.partialorder %v1000, %v889
    %vm1128 = vcmp.le.f32.partialorder %v1005, %v889
    %vm1129 = vcmp.le.f32.partialorder %v1010, %v889
    %vm1130 = vcmp.le.f32.partialorder %v1015, %v889
    %vm1131 = vcmp.le.f32.partialorder %v1020, %v889
    %vm1132 = vcmp.le.f32.partialorder %v1025, %v889
    %v1133 = vsel %vm1125, 1, 0
    %v1134 = vsel %vm1126, 1, 0
    %v1135 = vsel %vm1127, 1, 0
    %v1136 = vsel %vm1128, 1, 0
    %v1137 = vsel %vm1129, 1, 0
    %v1138 = vsel %vm1130, 1, 0
    %v1139 = vsel %vm1131, 1, 0
    %v1140 = vsel %vm1132, 1, 0
    %v1141 = vcvt.s32.f32 %v1133
    %v1142 = vcvt.s32.f32 %v1134
    %v1143 = vcvt.s32.f32 %v1135
    %v1144 = vcvt.s32.f32 %v1136
    %v1145 = vcvt.s32.f32 %v1137
    %v1146 = vcvt.s32.f32 %v1138
    %v1147 = vcvt.s32.f32 %v1139
    %v1148 = vcvt.s32.f32 %v1140
    %1149 = vmatprep.subr.mxu0 0.0
    %1150 = vmatpush1.msra.mxu0 %v1141
    %1151 = vmatprep.subr.mxu0 0.0
    %1152 = vmatpush1.msra.mxu0 %v1142
    %1153 = vmatprep.subr.mxu0 0.0
    %1154 = vmatpush1.msra.mxu0 %v1143
    %1155 = vmatprep.subr.mxu0 0.0
    %1156 = vmatpush1.msra.mxu0 %v1144
    %1157 = vmatprep.subr.mxu0 0.0
    %1158 = vmatpush1.msra.mxu0 %v1145
    %1159 = vmatprep.subr.mxu0 0.0
    %1160 = vmatpush1.msra.mxu0 %v1146
    %1161 = vmatprep.subr.mxu0 0.0
    %1162 = vmatpush1.msra.mxu0 %v1147
    %1163 = vmatprep.subr.mxu0 0.0
    %1164 = vmatpush1.msra.mxu0 %v1148
    %1165 = vmatprep.subr.mxu0 0.0
    %1166 = vmatpush1.msra.mxu0 0.0
    %1167 = vmatprep.subr.mxu0 0.0
    %1168 = vmatpush1.msra.mxu0 0.0
    %1169 = vmatprep.subr.mxu0 0.0
    %1170 = vmatpush1.msra.mxu0 0.0
    %1171 = vmatprep.subr.mxu0 0.0
    %1172 = vmatpush1.msra.mxu0 0.0
    %1173 = vmatprep.subr.mxu0 0.0
    %1174 = vmatpush1.msra.mxu0 0.0
    %1175 = vmatprep.subr.mxu0 0.0
    %1176 = vmatpush1.msra.mxu0 0.0
    %1177 = vmatprep.subr.mxu0 0.0
    %1178 = vmatpush1.msra.mxu0 0.0
    %1179 = vmatprep.subr.mxu0 0.0
    %1180 = vmatpush1.msra.mxu0 0.0
    %1181 = vmatprep.subr.mxu0 0.0
    %1182 = vmatpush1.msra.mxu0 0.0
    %1183 = vmatprep.subr.mxu0 0.0
    %1184 = vmatpush1.msra.mxu0 0.0
    %1185 = vmatprep.subr.mxu0 0.0
    %1186 = vmatpush1.msra.mxu0 0.0
    %1187 = vmatprep.subr.mxu0 0.0
    %1188 = vmatpush1.msra.mxu0 0.0
    %1189 = vmatprep.subr.mxu0 0.0
    %1190 = vmatpush1.msra.mxu0 0.0
    %1191 = vmatprep.subr.mxu0 0.0
    %1192 = vmatpush1.msra.mxu0 0.0
    %1193 = vmatprep.subr.mxu0 0.0
    %1194 = vmatpush1.msra.mxu0 0.0
    %1195 = vmatprep.subr.mxu0 0.0
    %1196 = vmatpush1.msra.mxu0 0.0
    %1197 = vmatprep.subr.mxu0 0.0
    %1198 = vmatpush1.msra.mxu0 0.0
    %1199 = vmatprep.subr.mxu0 0.0
    %1200 = vmatpush1.msra.mxu0 0.0
    %1201 = vmatprep.subr.mxu0 0.0
    %1202 = vmatpush1.msra.mxu0 0.0
    %1203 = vmatprep.subr.mxu0 0.0
    %1204 = vmatpush1.msra.mxu0 0.0
    %1205 = vmatprep.subr.mxu0 0.0
    %1206 = vmatpush1.msra.mxu0 0.0
    %1207 = vmatprep.subr.mxu0 0.0
    %1208 = vmatpush1.msra.mxu0 0.0
    %1209 = vmatprep.subr.mxu0 0.0
    %1210 = vmatpush1.msra.mxu0 0.0
    %1211 = vmatprep.subr.mxu0 0.0
    %1212 = vmatpush1.msra.mxu0 0.0
    %1213 = vmatprep.mubr.f32.mxu0 0.0
    %1214 = vmatmul.mubr.f32.gmra.mrb[0].mxu0 %v1053
    %v1215 = vpop.f32.mrb[0].mxu0
    %v1216 = vadd.f32 0.0, %v1215
    %v1217 = vpop.f32.mrb[0].mxu0
    %1218 = vdwg.mxu0
    %vm1219 = vcmp.le.f32.partialorder %v1122, 31.0
    %vm1220 = vcmp.ge.f32.partialorder %v1216, 32.0
    %vm1221 = vmand %vm1219, %vm1220
    %v1222 = vsel %vm1221, %v864, -1.0
    %vm1223 = vcmask 516096
    %v1224 = vsel %vm1223, %v1222, -inf
    %1225 = vmax.xlane.f32.xlu0 %v1224
    %v1226 = vpop.xlane.xlu0 %1225
    %v1227 = vadd.f32 %v1226, 1e-06
    %v1228 = vmul.f32 %v1227, 0.7578764
    %vm1229 = vcmp.gt.f32.partialorder %v864, %v1228
    %v1230 = vsel %vm1229, 1, 0
    %v1231 = vcvt.s32.f32 %v1230
    %v1232 = vlaneseq
    %v1233 = vshrl.u32 %v1232, 7
    %v1234 = vsub.s32 0, %v1233
    %v1235 = vrot.slane %v1231, %v1234
    %v1236 = vlaneseq
    %v1237 = vshrl.u32 %v1236, 7
    %v1238 = vsub.s32 1, %v1237
    %v1239 = vrot.slane %v864, %v1238
    %v1240 = vsel %vm878, %v1239, 0.0
    %v1241 = vsel %vm879, %v1239, 0.0
    %v1242 = vsel %vm880, %v1239, 0.0
    %v1243 = vsel %vm881, %v1239, 0.0
    %v1244 = vsel %vm882, %v1239, 0.0
    %v1245 = vsel %vm883, %v1239, 0.0
    %v1246 = vsel %vm884, %v1239, 0.0
    %v1247 = vsel %vm885, %v1239, 0.0
    %v1249 = vsel %vm898, %v1240, 0
    %v1252 = vsel %vm898, %v1241, 0
    %v1255 = vsel %vm898, %v1242, 0
    %v1258 = vsel %vm898, %v1243, 0
    %v1261 = vsel %vm898, %v1244, 0
    %v1264 = vsel %vm898, %v1245, 0
    %v1267 = vsel %vm898, %v1246, 0
    %v1270 = vsel %vm898, %v1247, 0
    %1272 = vmatprep.subr.mxu0 0.0
    %1273 = vmatpush1.msra.mxu0 1.0
    %1274 = vmatprep.subr.mxu0 0.0
    %1275 = vmatpush1.msra.mxu0 1.0
    %1276 = vmatprep.subr.mxu0 0.0
    %1277 = vmatpush1.msra.mxu0 1.0
    %1278 = vmatprep.subr.mxu0 0.0
    %1279 = vmatpush1.msra.mxu0 1.0
    %1280 = vmatprep.subr.mxu0 0.0
    %1281 = vmatpush1.msra.mxu0 1.0
    %1282 = vmatprep.subr.mxu0 0.0
    %1283 = vmatpush1.msra.mxu0 1.0
    %1284 = vmatprep.subr.mxu0 0.0
    %1285 = vmatpush1.msra.mxu0 1.0
    %1286 = vmatprep.subr.mxu0 0.0
    %1287 = vmatpush1.msra.mxu0 1.0
    %1288 = vmatprep.subr.mxu0 0.0
    %1289 = vmatpush1.msra.mxu0 0.0
    %1290 = vmatprep.subr.mxu0 0.0
    %1291 = vmatpush1.msra.mxu0 0.0
    %1292 = vmatprep.subr.mxu0 0.0
    %1293 = vmatpush1.msra.mxu0 0.0
    %1294 = vmatprep.subr.mxu0 0.0
    %1295 = vmatpush1.msra.mxu0 0.0
    %1296 = vmatprep.subr.mxu0 0.0
    %1297 = vmatpush1.msra.mxu0 0.0
    %1298 = vmatprep.subr.mxu0 0.0
    %1299 = vmatpush1.msra.mxu0 0.0
    %1300 = vmatprep.subr.mxu0 0.0
    %1301 = vmatpush1.msra.mxu0 0.0
    %1302 = vmatprep.subr.mxu0 0.0
    %1303 = vmatpush1.msra.mxu0 0.0
    %1304 = vmatprep.subr.mxu0 0.0
    %1305 = vmatpush1.msra.mxu0 0.0
    %1306 = vmatprep.subr.mxu0 0.0
    %1307 = vmatpush1.msra.mxu0 0.0
    %1308 = vmatprep.subr.mxu0 0.0
    %1309 = vmatpush1.msra.mxu0 0.0
    %1310 = vmatprep.subr.mxu0 0.0
    %1311 = vmatpush1.msra.mxu0 0.0
    %1312 = vmatprep.subr.mxu0 0.0
    %1313 = vmatpush1.msra.mxu0 0.0
    %1314 = vmatprep.subr.mxu0 0.0
    %1315 = vmatpush1.msra.mxu0 0.0
    %1316 = vmatprep.subr.mxu0 0.0
    %1317 = vmatpush1.msra.mxu0 0.0
    %1318 = vmatprep.subr.mxu0 0.0
    %1319 = vmatpush1.msra.mxu0 0.0
    %1320 = vmatprep.subr.mxu0 0.0
    %1321 = vmatpush1.msra.mxu0 0.0
    %1322 = vmatprep.subr.mxu0 0.0
    %1323 = vmatpush1.msra.mxu0 0.0
    %1324 = vmatprep.subr.mxu0 0.0
    %1325 = vmatpush1.msra.mxu0 0.0
    %1326 = vmatprep.subr.mxu0 0.0
    %1327 = vmatpush1.msra.mxu0 0.0
    %1328 = vmatprep.subr.mxu0 0.0
    %1329 = vmatpush1.msra.mxu0 0.0
    %1330 = vmatprep.subr.mxu0 0.0
    %1331 = vmatpush1.msra.mxu0 0.0
    %1332 = vmatprep.subr.mxu0 0.0
    %1333 = vmatpush1.msra.mxu0 0.0
    %1334 = vmatprep.subr.mxu0 0.0
    %1335 = vmatpush1.msra.mxu0 0.0
    %1336 = vmatprep.mubr.f32.mxu0 0.0
    %1337 = vmatmul.mubr.f32.gmra.mrb[0].mxu0 %v1249
    %v1338 = vpop.f32.mrb[0].mxu0
    %v1339 = vadd.f32 0.0, %v1338
    %v1340 = vpop.f32.mrb[0].mxu0
    %1341 = vmatprep.mubr.f32.mxu0 0.0
    %1342 = vmatmul.mubr.f32.gmra.mrb[0].mxu0 %v1252
    %v1343 = vpop.f32.mrb[0].mxu0
    %v1344 = vadd.f32 0.0, %v1343
    %v1345 = vpop.f32.mrb[0].mxu0
    %1346 = vmatprep.mubr.f32.mxu0 0.0
    %1347 = vmatmul.mubr.f32.gmra.mrb[0].mxu0 %v1255
    %v1348 = vpop.f32.mrb[0].mxu0
    %v1349 = vadd.f32 0.0, %v1348
    %v1350 = vpop.f32.mrb[0].mxu0
    %1351 = vmatprep.mubr.f32.mxu0 0.0
    %1352 = vmatmul.mubr.f32.gmra.mrb[0].mxu0 %v1258
    %v1353 = vpop.f32.mrb[0].mxu0
    %v1354 = vadd.f32 0.0, %v1353
    %v1355 = vpop.f32.mrb[0].mxu0
    %1356 = vmatprep.mubr.f32.mxu0 0.0
    %1357 = vmatmul.mubr.f32.gmra.mrb[0].mxu0 %v1261
    %v1358 = vpop.f32.mrb[0].mxu0
    %v1359 = vadd.f32 0.0, %v1358
    %v1360 = vpop.f32.mrb[0].mxu0
    %1361 = vmatprep.mubr.f32.mxu0 0.0
    %1362 = vmatmul.mubr.f32.gmra.mrb[0].mxu0 %v1264
    %v1363 = vpop.f32.mrb[0].mxu0
    %v1364 = vadd.f32 0.0, %v1363
    %v1365 = vpop.f32.mrb[0].mxu0
    %1366 = vmatprep.mubr.f32.mxu0 0.0
    %1367 = vmatmul.mubr.f32.gmra.mrb[0].mxu0 %v1267
    %v1368 = vpop.f32.mrb[0].mxu0
    %v1369 = vadd.f32 0.0, %v1368
    %v1370 = vpop.f32.mrb[0].mxu0
    %1371 = vmatprep.mubr.f32.mxu0 0.0
    %1372 = vmatmul.mubr.f32.gmra.mrb[0].mxu0 %v1270
    %v1373 = vpop.f32.mrb[0].mxu0
    %v1374 = vadd.f32 0.0, %v1373
    %v1375 = vpop.f32.mrb[0].mxu0
    %1376 = vdwg.mxu0
    %vm1377 = vcmp.lt.f32.partialorder %v1339, %v1239
    %vm1378 = vcmp.lt.f32.partialorder %v1344, %v1239
    %vm1379 = vcmp.lt.f32.partialorder %v1349, %v1239
    %vm1380 = vcmp.lt.f32.partialorder %v1354, %v1239
    %vm1381 = vcmp.lt.f32.partialorder %v1359, %v1239
    %vm1382 = vcmp.lt.f32.partialorder %v1364, %v1239
    %vm1383 = vcmp.lt.f32.partialorder %v1369, %v1239
    %vm1384 = vcmp.lt.f32.partialorder %v1374, %v1239
    %v1385 = vsel %vm1377, 1, 0
    %v1386 = vsel %vm1378, 1, 0
    %v1387 = vsel %vm1379, 1, 0
    %v1388 = vsel %vm1380, 1, 0
    %v1389 = vsel %vm1381, 1, 0
    %v1390 = vsel %vm1382, 1, 0
    %v1391 = vsel %vm1383, 1, 0
    %v1392 = vsel %vm1384, 1, 0
    %v1393 = vcvt.s32.f32 %v1385
    %v1394 = vcvt.s32.f32 %v1386
    %v1395 = vcvt.s32.f32 %v1387
    %v1396 = vcvt.s32.f32 %v1388
    %v1397 = vcvt.s32.f32 %v1389
    %v1398 = vcvt.s32.f32 %v1390
    %v1399 = vcvt.s32.f32 %v1391
    %v1400 = vcvt.s32.f32 %v1392
    %1401 = vmatprep.subr.mxu0 0.0
    %1402 = vmatpush1.msra.mxu0 %v1393
    %1403 = vmatprep.subr.mxu0 0.0
    %1404 = vmatpush1.msra.mxu0 %v1394
    %1405 = vmatprep.subr.mxu0 0.0
    %1406 = vmatpush1.msra.mxu0 %v1395
    %1407 = vmatprep.subr.mxu0 0.0
    %1408 = vmatpush1.msra.mxu0 %v1396
    %1409 = vmatprep.subr.mxu0 0.0
    %1410 = vmatpush1.msra.mxu0 %v1397
    %1411 = vmatprep.subr.mxu0 0.0
    %1412 = vmatpush1.msra.mxu0 %v1398
    %1413 = vmatprep.subr.mxu0 0.0
    %1414 = vmatpush1.msra.mxu0 %v1399
    %1415 = vmatprep.subr.mxu0 0.0
    %1416 = vmatpush1.msra.mxu0 %v1400
    %1417 = vmatprep.subr.mxu0 0.0
    %1418 = vmatpush1.msra.mxu0 0.0
    %1419 = vmatprep.subr.mxu0 0.0
    %1420 = vmatpush1.msra.mxu0 0.0
    %1421 = vmatprep.subr.mxu0 0.0
    %1422 = vmatpush1.msra.mxu0 0.0
    %1423 = vmatprep.subr.mxu0 0.0
    %1424 = vmatpush1.msra.mxu0 0.0
    %1425 = vmatprep.subr.mxu0 0.0
    %1426 = vmatpush1.msra.mxu0 0.0
    %1427 = vmatprep.subr.mxu0 0.0
    %1428 = vmatpush1.msra.mxu0 0.0
    %1429 = vmatprep.subr.mxu0 0.0
    %1430 = vmatpush1.msra.mxu0 0.0
    %1431 = vmatprep.subr.mxu0 0.0
    %1432 = vmatpush1.msra.mxu0 0.0
    %1433 = vmatprep.subr.mxu0 0.0
    %1434 = vmatpush1.msra.mxu0 0.0
    %1435 = vmatprep.subr.mxu0 0.0
    %1436 = vmatpush1.msra.mxu0 0.0
    %1437 = vmatprep.subr.mxu0 0.0
    %1438 = vmatpush1.msra.mxu0 0.0
    %1439 = vmatprep.subr.mxu0 0.0
    %1440 = vmatpush1.msra.mxu0 0.0
    %1441 = vmatprep.subr.mxu0 0.0
    %1442 = vmatpush1.msra.mxu0 0.0
    %1443 = vmatprep.subr.mxu0 0.0
    %1444 = vmatpush1.msra.mxu0 0.0
    %1445 = vmatprep.subr.mxu0 0.0
    %1446 = vmatpush1.msra.mxu0 0.0
    %1447 = vmatprep.subr.mxu0 0.0
    %1448 = vmatpush1.msra.mxu0 0.0
    %1449 = vmatprep.subr.mxu0 0.0
    %1450 = vmatpush1.msra.mxu0 0.0
    %1451 = vmatprep.subr.mxu0 0.0
    %1452 = vmatpush1.msra.mxu0 0.0
    %1453 = vmatprep.subr.mxu0 0.0
    %1454 = vmatpush1.msra.mxu0 0.0
    %1455 = vmatprep.subr.mxu0 0.0
    %1456 = vmatpush1.msra.mxu0 0.0
    %1457 = vmatprep.subr.mxu0 0.0
    %1458 = vmatpush1.msra.mxu0 0.0
    %1459 = vmatprep.subr.mxu0 0.0
    %1460 = vmatpush1.msra.mxu0 0.0
    %1461 = vmatprep.subr.mxu0 0.0
    %1462 = vmatpush1.msra.mxu0 0.0
    %1463 = vmatprep.subr.mxu0 0.0
    %1464 = vmatpush1.msra.mxu0 0.0
    %1465 = vmatprep.mubr.f32.mxu0 0.0
    %1466 = vmatmul.mubr.f32.gmra.mrb[0].mxu0 %v1053
    %v1467 = vpop.f32.mrb[0].mxu0
    %v1468 = vadd.f32 0.0, %v1467
    %v1469 = vpop.f32.mrb[0].mxu0
    %1470 = vdwg.mxu0
    %vm1471 = vcmp.le.f32.partialorder %v1339, %v1239
    %vm1472 = vcmp.le.f32.partialorder %v1344, %v1239
    %vm1473 = vcmp.le.f32.partialorder %v1349, %v1239
    %vm1474 = vcmp.le.f32.partialorder %v1354, %v1239
    %vm1475 = vcmp.le.f32.partialorder %v1359, %v1239
    %vm1476 = vcmp.le.f32.partialorder %v1364, %v1239
    %vm1477 = vcmp.le.f32.partialorder %v1369, %v1239
    %vm1478 = vcmp.le.f32.partialorder %v1374, %v1239
    %v1479 = vsel %vm1471, 1, 0
    %v1480 = vsel %vm1472, 1, 0
    %v1481 = vsel %vm1473, 1, 0
    %v1482 = vsel %vm1474, 1, 0
    %v1483 = vsel %vm1475, 1, 0
    %v1484 = vsel %vm1476, 1, 0
    %v1485 = vsel %vm1477, 1, 0
    %v1486 = vsel %vm1478, 1, 0
    %v1487 = vcvt.s32.f32 %v1479
    %v1488 = vcvt.s32.f32 %v1480
    %v1489 = vcvt.s32.f32 %v1481
    %v1490 = vcvt.s32.f32 %v1482
    %v1491 = vcvt.s32.f32 %v1483
    %v1492 = vcvt.s32.f32 %v1484
    %v1493 = vcvt.s32.f32 %v1485
    %v1494 = vcvt.s32.f32 %v1486
    %1495 = vmatprep.subr.mxu0 0.0
    %1496 = vmatpush1.msra.mxu0 %v1487
    %1497 = vmatprep.subr.mxu0 0.0
    %1498 = vmatpush1.msra.mxu0 %v1488
    %1499 = vmatprep.subr.mxu0 0.0
    %1500 = vmatpush1.msra.mxu0 %v1489
    %1501 = vmatprep.subr.mxu0 0.0
    %1502 = vmatpush1.msra.mxu0 %v1490
    %1503 = vmatprep.subr.mxu0 0.0
    %1504 = vmatpush1.msra.mxu0 %v1491
    %1505 = vmatprep.subr.mxu0 0.0
    %1506 = vmatpush1.msra.mxu0 %v1492
    %1507 = vmatprep.subr.mxu0 0.0
    %1508 = vmatpush1.msra.mxu0 %v1493
    %1509 = vmatprep.subr.mxu0 0.0
    %1510 = vmatpush1.msra.mxu0 %v1494
    %1511 = vmatprep.subr.mxu0 0.0
    %1512 = vmatpush1.msra.mxu0 0.0
    %1513 = vmatprep.subr.mxu0 0.0
    %1514 = vmatpush1.msra.mxu0 0.0
    %1515 = vmatprep.subr.mxu0 0.0
    %1516 = vmatpush1.msra.mxu0 0.0
    %1517 = vmatprep.subr.mxu0 0.0
    %1518 = vmatpush1.msra.mxu0 0.0
    %1519 = vmatprep.subr.mxu0 0.0
    %1520 = vmatpush1.msra.mxu0 0.0
    %1521 = vmatprep.subr.mxu0 0.0
    %1522 = vmatpush1.msra.mxu0 0.0
    %1523 = vmatprep.subr.mxu0 0.0
    %1524 = vmatpush1.msra.mxu0 0.0
    %1525 = vmatprep.subr.mxu0 0.0
    %1526 = vmatpush1.msra.mxu0 0.0
    %1527 = vmatprep.subr.mxu0 0.0
    %1528 = vmatpush1.msra.mxu0 0.0
    %1529 = vmatprep.subr.mxu0 0.0
    %1530 = vmatpush1.msra.mxu0 0.0
    %1531 = vmatprep.subr.mxu0 0.0
    %1532 = vmatpush1.msra.mxu0 0.0
    %1533 = vmatprep.subr.mxu0 0.0
    %1534 = vmatpush1.msra.mxu0 0.0
    %1535 = vmatprep.subr.mxu0 0.0
    %1536 = vmatpush1.msra.mxu0 0.0
    %1537 = vmatprep.subr.mxu0 0.0
    %1538 = vmatpush1.msra.mxu0 0.0
    %1539 = vmatprep.subr.mxu0 0.0
    %1540 = vmatpush1.msra.mxu0 0.0
    %1541 = vmatprep.subr.mxu0 0.0
    %1542 = vmatpush1.msra.mxu0 0.0
    %1543 = vmatprep.subr.mxu0 0.0
    %1544 = vmatpush1.msra.mxu0 0.0
    %1545 = vmatprep.subr.mxu0 0.0
    %1546 = vmatpush1.msra.mxu0 0.0
    %1547 = vmatprep.subr.mxu0 0.0
    %1548 = vmatpush1.msra.mxu0 0.0
    %1549 = vmatprep.subr.mxu0 0.0
    %1550 = vmatpush1.msra.mxu0 0.0
    %1551 = vmatprep.subr.mxu0 0.0
    %1552 = vmatpush1.msra.mxu0 0.0
    %1553 = vmatprep.subr.mxu0 0.0
    %1554 = vmatpush1.msra.mxu0 0.0
    %1555 = vmatprep.subr.mxu0 0.0
    %1556 = vmatpush1.msra.mxu0 0.0
    %1557 = vmatprep.subr.mxu0 0.0
    %1558 = vmatpush1.msra.mxu0 0.0
    %1559 = vmatprep.mubr.f32.mxu0 0.0
    %1560 = vmatmul.mubr.f32.gmra.mrb[0].mxu0 %v1053
    %v1561 = vpop.f32.mrb[0].mxu0
    %v1562 = vadd.f32 0.0, %v1561
    %v1563 = vpop.f32.mrb[0].mxu0
    %1564 = vdwg.mxu0
    %vm1565 = vcmp.le.f32.partialorder %v1468, 31.0
    %vm1566 = vcmp.ge.f32.partialorder %v1562, 32.0
    %vm1567 = vmand %vm1565, %vm1566
    %v1569 = vrot.slane %v864, 1
    %v1571 = vsel %vm1567, %v1569, -1.0
    %v1572 = vsel %vm1223, %v1571, -inf
    %1573 = vmax.xlane.f32.xlu0 %v1572
    %v1574 = vpop.xlane.xlu0 %1573
    %v1575 = vadd.f32 %v1574, 1e-06
    %v1576 = vmul.f32 %v1575, 0.7578764
    %v1578 = vrot.slane %v1576, 7
    %vm1580 = vcmp.gt.f32.partialorder %v864, %v1578
    %v1581 = vsel %vm1580, 1, 0
    %v1582 = vcvt.s32.f32 %v1581
    %v1583 = vlaneseq
    %v1584 = vshrl.u32 %v1583, 7
    %v1585 = vsub.s32 1, %v1584
    %v1586 = vrot.slane %v1582, %v1585
    %v1587 = vmul.f32 %v605, %v1235
    %v1588 = vmul.f32 %v610, %v1235
    %v1589 = vmul.f32 %v615, %v1586
    %v1590 = vmul.f32 %v620, %v1586
    %v1591 = vmul.f32 %v707, %v1235
    %v1592 = vmul.f32 %v712, %v1235
    %v1593 = vmul.f32 %v717, %v1586
    %v1594 = vmul.f32 %v722, %v1586
    %1595 = vset.pattern.permute.xlu0 6
    %1596 = vperm.xlu0 %1595, %v150
    %v1597 = vpop.permute.xlu0 %1596
    %1599 = vset.pattern.permute.xlu0 6
    %1600 = vperm.xlu0 %1599, %v151
    %v1601 = vpop.permute.xlu0 %1600
    %1603 = vset.pattern.permute.xlu0 6
    %1604 = vperm.xlu0 %1603, %v152
    %v1605 = vpop.permute.xlu0 %1604
    %1607 = vset.pattern.permute.xlu0 6
    %1608 = vperm.xlu0 %1607, %v153
    %v1609 = vpop.permute.xlu0 %1608
    %v1611 = vmul.f32 %v1587, %v1597
    %v1612 = vmul.f32 %v1588, %v1601
    %v1613 = vmul.f32 %v1589, %v1605
    %v1614 = vmul.f32 %v1590, %v1609
    %v1615 = vadd.f32 %v765, %v1611
    %v1616 = vadd.f32 %v766, %v1612
    %v1617 = vadd.f32 %v767, %v1613
    %v1618 = vadd.f32 %v768, %v1614
    %1619 = vset.pattern.permute.xlu0 7
    %1620 = vperm.xlu0 %1619, %v150
    %v1621 = vpop.permute.xlu0 %1620
    %1623 = vset.pattern.permute.xlu0 7
    %1624 = vperm.xlu0 %1623, %v151
    %v1625 = vpop.permute.xlu0 %1624
    %1627 = vset.pattern.permute.xlu0 7
    %1628 = vperm.xlu0 %1627, %v152
    %v1629 = vpop.permute.xlu0 %1628
    %1631 = vset.pattern.permute.xlu0 7
    %1632 = vperm.xlu0 %1631, %v153
    %v1633 = vpop.permute.xlu0 %1632
    %v1635 = vmul.f32 %v1591, %v1621
    %v1636 = vmul.f32 %v1592, %v1625
    %v1637 = vmul.f32 %v1593, %v1629
    %v1638 = vmul.f32 %v1594, %v1633
    %v1639 = vsub.f32 %v1615, %v1635
    %v1640 = vsub.f32 %v1616, %v1636
    %v1641 = vsub.f32 %v1617, %v1637
    %v1642 = vsub.f32 %v1618, %v1638
    %v1643 = vmul.f32 %v1587, %v1621
    %v1644 = vmul.f32 %v1588, %v1625
    %v1645 = vmul.f32 %v1589, %v1629
    %v1646 = vmul.f32 %v1590, %v1633
    %v1647 = vadd.f32 %v777, %v1643
    %v1648 = vadd.f32 %v778, %v1644
    %v1649 = vadd.f32 %v779, %v1645
    %v1650 = vadd.f32 %v780, %v1646
    %v1651 = vmul.f32 %v1591, %v1597
    %v1652 = vmul.f32 %v1592, %v1601
    %v1653 = vmul.f32 %v1593, %v1605
    %v1654 = vmul.f32 %v1594, %v1609
    %v1655 = vadd.f32 %v1647, %v1651
    %v1656 = vadd.f32 %v1648, %v1652
    %v1657 = vadd.f32 %v1649, %v1653
    %v1658 = vadd.f32 %v1650, %v1654
    %v1659 = vld [vmem:[#allocation10] sm:$0xff]
    %v1660 = vld [vmem:[#allocation10 + $0x8] sm:$0xff]
    %v1661 = vld [vmem:[#allocation10 + $0x10] sm:$0xff]
    %v1662 = vld [vmem:[#allocation10 + $0x18] sm:$0xff]
    %v1663 = vld [vmem:[#allocation10 + $0x20] sm:$0xff]
    %v1664 = vld [vmem:[#allocation10 + $0x28] sm:$0xff]
    %v1665 = vld [vmem:[#allocation10 + $0x30] sm:$0xff]
    %v1666 = vld [vmem:[#allocation10 + $0x38] sm:$0xff]
    %s1667 = scalar_lea.vmem [#allocation10], 64
    %v1668 = vld [vmem:[%s1667] sm:$0xff]
    %v1669 = vld [vmem:[%s1667 + $0x8] sm:$0xff]
    %v1670 = vld [vmem:[%s1667 + $0x10] sm:$0xff]
    %v1671 = vld [vmem:[%s1667 + $0x18] sm:$0xff]
    %v1672 = vld [vmem:[%s1667 + $0x20] sm:$0xff]
    %v1673 = vld [vmem:[%s1667 + $0x28] sm:$0xff]
    %v1674 = vld [vmem:[%s1667 + $0x30] sm:$0xff]
    %v1675 = vld [vmem:[%s1667 + $0x38] sm:$0xff]
    %v1677 = vsel %vm898, %v1655, 0
    %v1680 = vsel %vm898, %v1656, 0
    %v1683 = vsel %vm898, %v1657, 0
    %v1686 = vsel %vm898, %v1658, 0
    %1688 = vmatprep.subr.mxu0 0.0
    %1689 = vmatpush1.msra.mxu0 %v1668
    %1690 = vmatprep.subr.mxu0 0.0
    %1691 = vmatpush1.msra.mxu0 %v1669
    %1692 = vmatprep.subr.mxu0 0.0
    %1693 = vmatpush1.msra.mxu0 %v1670
    %1694 = vmatprep.subr.mxu0 0.0
    %1695 = vmatpush1.msra.mxu0 %v1671
    %1696 = vmatprep.subr.mxu0 0.0
    %1697 = vmatpush1.msra.mxu0 %v1672
    %1698 = vmatprep.subr.mxu0 0.0
    %1699 = vmatpush1.msra.mxu0 %v1673
    %1700 = vmatprep.subr.mxu0 0.0
    %1701 = vmatpush1.msra.mxu0 %v1674
    %1702 = vmatprep.subr.mxu0 0.0
    %1703 = vmatpush1.msra.mxu0 %v1675
    %1704 = vmatprep.subr.mxu0 0.0
    %1705 = vmatpush1.msra.mxu0 0.0
    %1706 = vmatprep.subr.mxu0 0.0
    %1707 = vmatpush1.msra.mxu0 0.0
    %1708 = vmatprep.subr.mxu0 0.0
    %1709 = vmatpush1.msra.mxu0 0.0
    %1710 = vmatprep.subr.mxu0 0.0
    %1711 = vmatpush1.msra.mxu0 0.0
    %1712 = vmatprep.subr.mxu0 0.0
    %1713 = vmatpush1.msra.mxu0 0.0
    %1714 = vmatprep.subr.mxu0 0.0
    %1715 = vmatpush1.msra.mxu0 0.0
    %1716 = vmatprep.subr.mxu0 0.0
    %1717 = vmatpush1.msra.mxu0 0.0
    %1718 = vmatprep.subr.mxu0 0.0
    %1719 = vmatpush1.msra.mxu0 0.0
    %1720 = vmatprep.subr.mxu0 0.0
    %1721 = vmatpush1.msra.mxu0 0.0
    %1722 = vmatprep.subr.mxu0 0.0
    %1723 = vmatpush1.msra.mxu0 0.0
    %1724 = vmatprep.subr.mxu0 0.0
    %1725 = vmatpush1.msra.mxu0 0.0
    %1726 = vmatprep.subr.mxu0 0.0
    %1727 = vmatpush1.msra.mxu0 0.0
    %1728 = vmatprep.subr.mxu0 0.0
    %1729 = vmatpush1.msra.mxu0 0.0
    %1730 = vmatprep.subr.mxu0 0.0
    %1731 = vmatpush1.msra.mxu0 0.0
    %1732 = vmatprep.subr.mxu0 0.0
    %1733 = vmatpush1.msra.mxu0 0.0
    %1734 = vmatprep.subr.mxu0 0.0
    %1735 = vmatpush1.msra.mxu0 0.0
    %1736 = vmatprep.subr.mxu0 0.0
    %1737 = vmatpush1.msra.mxu0 0.0
    %1738 = vmatprep.subr.mxu0 0.0
    %1739 = vmatpush1.msra.mxu0 0.0
    %1740 = vmatprep.subr.mxu0 0.0
    %1741 = vmatpush1.msra.mxu0 0.0
    %1742 = vmatprep.subr.mxu0 0.0
    %1743 = vmatpush1.msra.mxu0 0.0
    %1744 = vmatprep.subr.mxu0 0.0
    %1745 = vmatpush1.msra.mxu0 0.0
    %1746 = vmatprep.subr.mxu0 0.0
    %1747 = vmatpush1.msra.mxu0 0.0
    %1748 = vmatprep.subr.mxu0 0.0
    %1749 = vmatpush1.msra.mxu0 0.0
    %1750 = vmatprep.subr.mxu0 0.0
    %1751 = vmatpush1.msra.mxu0 0.0
    %1752 = vmatprep.mubr.f32.mxu0 0.0
    %1753 = vmatmul.mubr.f32.gmra.mrb[0].mxu0 %v1677
    %v1754 = vpop.f32.mrb[0].mxu0
    %v1755 = vadd.f32 0.0, %v1754
    %v1756 = vpop.f32.mrb[0].mxu0
    %1757 = vmatprep.mubr.f32.mxu0 0.0
    %1758 = vmatmul.mubr.f32.gmra.mrb[0].mxu0 %v1680
    %v1759 = vpop.f32.mrb[0].mxu0
    %v1760 = vadd.f32 0.0, %v1759
    %v1761 = vpop.f32.mrb[0].mxu0
    %1762 = vmatprep.mubr.f32.mxu0 0.0
    %1763 = vmatmul.mubr.f32.gmra.mrb[0].mxu0 %v1683
    %v1764 = vpop.f32.mrb[0].mxu0
    %v1765 = vadd.f32 0.0, %v1764
    %v1766 = vpop.f32.mrb[0].mxu0
    %1767 = vmatprep.mubr.f32.mxu0 0.0
    %1768 = vmatmul.mubr.f32.gmra.mrb[0].mxu0 %v1686
    %v1769 = vpop.f32.mrb[0].mxu0
    %v1770 = vadd.f32 0.0, %v1769
    %v1771 = vpop.f32.mrb[0].mxu0
    %1772 = vdwg.mxu0
    %v1774 = vsel %vm898, %v1639, 0
    %v1777 = vsel %vm898, %v1640, 0
    %v1780 = vsel %vm898, %v1641, 0
    %v1783 = vsel %vm898, %v1642, 0
    %1785 = vmatprep.subr.mxu0 0.0
    %1786 = vmatpush1.msra.mxu0 %v1659
    %1787 = vmatprep.subr.mxu0 0.0
    %1788 = vmatpush1.msra.mxu0 %v1660
    %1789 = vmatprep.subr.mxu0 0.0
    %1790 = vmatpush1.msra.mxu0 %v1661
    %1791 = vmatprep.subr.mxu0 0.0
    %1792 = vmatpush1.msra.mxu0 %v1662
    %1793 = vmatprep.subr.mxu0 0.0
    %1794 = vmatpush1.msra.mxu0 %v1663
    %1795 = vmatprep.subr.mxu0 0.0
    %1796 = vmatpush1.msra.mxu0 %v1664
    %1797 = vmatprep.subr.mxu0 0.0
    %1798 = vmatpush1.msra.mxu0 %v1665
    %1799 = vmatprep.subr.mxu0 0.0
    %1800 = vmatpush1.msra.mxu0 %v1666
    %1801 = vmatprep.subr.mxu0 0.0
    %1802 = vmatpush1.msra.mxu0 0.0
    %1803 = vmatprep.subr.mxu0 0.0
    %1804 = vmatpush1.msra.mxu0 0.0
    %1805 = vmatprep.subr.mxu0 0.0
    %1806 = vmatpush1.msra.mxu0 0.0
    %1807 = vmatprep.subr.mxu0 0.0
    %1808 = vmatpush1.msra.mxu0 0.0
    %1809 = vmatprep.subr.mxu0 0.0
    %1810 = vmatpush1.msra.mxu0 0.0
    %1811 = vmatprep.subr.mxu0 0.0
    %1812 = vmatpush1.msra.mxu0 0.0
    %1813 = vmatprep.subr.mxu0 0.0
    %1814 = vmatpush1.msra.mxu0 0.0
    %1815 = vmatprep.subr.mxu0 0.0
    %1816 = vmatpush1.msra.mxu0 0.0
    %1817 = vmatprep.subr.mxu0 0.0
    %1818 = vmatpush1.msra.mxu0 0.0
    %1819 = vmatprep.subr.mxu0 0.0
    %1820 = vmatpush1.msra.mxu0 0.0
    %1821 = vmatprep.subr.mxu0 0.0
    %1822 = vmatpush1.msra.mxu0 0.0
    %1823 = vmatprep.subr.mxu0 0.0
    %1824 = vmatpush1.msra.mxu0 0.0
    %1825 = vmatprep.subr.mxu0 0.0
    %1826 = vmatpush1.msra.mxu0 0.0
    %1827 = vmatprep.subr.mxu0 0.0
    %1828 = vmatpush1.msra.mxu0 0.0
    %1829 = vmatprep.subr.mxu0 0.0
    %1830 = vmatpush1.msra.mxu0 0.0
    %1831 = vmatprep.subr.mxu0 0.0
    %1832 = vmatpush1.msra.mxu0 0.0
    %1833 = vmatprep.subr.mxu0 0.0
    %1834 = vmatpush1.msra.mxu0 0.0
    %1835 = vmatprep.subr.mxu0 0.0
    %1836 = vmatpush1.msra.mxu0 0.0
    %1837 = vmatprep.subr.mxu0 0.0
    %1838 = vmatpush1.msra.mxu0 0.0
    %1839 = vmatprep.subr.mxu0 0.0
    %1840 = vmatpush1.msra.mxu0 0.0
    %1841 = vmatprep.subr.mxu0 0.0
    %1842 = vmatpush1.msra.mxu0 0.0
    %1843 = vmatprep.subr.mxu0 0.0
    %1844 = vmatpush1.msra.mxu0 0.0
    %1845 = vmatprep.subr.mxu0 0.0
    %1846 = vmatpush1.msra.mxu0 0.0
    %1847 = vmatprep.subr.mxu0 0.0
    %1848 = vmatpush1.msra.mxu0 0.0
    %1849 = vmatprep.mubr.f32.mxu0 0.0
    %1850 = vmatmul.mubr.f32.gmra.mrb[0].mxu0 %v1774
    %v1851 = vpop.f32.mrb[0].mxu0
    %v1852 = vadd.f32 %v1755, %v1851
    %v1853 = vpop.f32.mrb[0].mxu0
    %1854 = vmatprep.mubr.f32.mxu0 0.0
    %1855 = vmatmul.mubr.f32.gmra.mrb[0].mxu0 %v1777
    %v1856 = vpop.f32.mrb[0].mxu0
    %v1857 = vadd.f32 %v1760, %v1856
    %v1858 = vpop.f32.mrb[0].mxu0
    %1859 = vmatprep.mubr.f32.mxu0 0.0
    %1860 = vmatmul.mubr.f32.gmra.mrb[0].mxu0 %v1780
    %v1861 = vpop.f32.mrb[0].mxu0
    %v1862 = vadd.f32 %v1765, %v1861
    %v1863 = vpop.f32.mrb[0].mxu0
    %1864 = vmatprep.mubr.f32.mxu0 0.0
    %1865 = vmatmul.mubr.f32.gmra.mrb[0].mxu0 %v1783
    %v1866 = vpop.f32.mrb[0].mxu0
    %v1867 = vadd.f32 %v1770, %v1866
    %v1868 = vpop.f32.mrb[0].mxu0
    %1869 = vdwg.mxu0
    %1870 = vmatprep.subr.mxu0 0.0
    %1871 = vmatpush1.msra.mxu0 %v1852
    %1872 = vmatprep.subr.mxu0 0.0
    %1873 = vmatpush1.msra.mxu0 %v1857
    %1874 = vmatprep.subr.mxu0 0.0
    %1875 = vmatpush1.msra.mxu0 %v1862
    %1876 = vmatprep.subr.mxu0 0.0
    %1877 = vmatpush1.msra.mxu0 %v1867
    %1878 = vmatprep.subr.mxu0 0.0
    %1879 = vmatpush1.msra.mxu0 0.0
    %1880 = vmatprep.subr.mxu0 0.0
    %1881 = vmatpush1.msra.mxu0 0.0
    %1882 = vmatprep.subr.mxu0 0.0
    %1883 = vmatpush1.msra.mxu0 0.0
    %1884 = vmatprep.subr.mxu0 0.0
    %1885 = vmatpush1.msra.mxu0 0.0
    %1886 = vmatprep.subr.mxu0 0.0
    %1887 = vmatpush1.msra.mxu0 0.0
    %1888 = vmatprep.subr.mxu0 0.0
    %1889 = vmatpush1.msra.mxu0 0.0
    %1890 = vmatprep.subr.mxu0 0.0
    %1891 = vmatpush1.msra.mxu0 0.0
    %1892 = vmatprep.subr.mxu0 0.0
    %1893 = vmatpush1.msra.mxu0 0.0
    %1894 = vmatprep.subr.mxu0 0.0
    %1895 = vmatpush1.msra.mxu0 0.0
    %1896 = vmatprep.subr.mxu0 0.0
    %1897 = vmatpush1.msra.mxu0 0.0
    %1898 = vmatprep.subr.mxu0 0.0
    %1899 = vmatpush1.msra.mxu0 0.0
    %1900 = vmatprep.subr.mxu0 0.0
    %1901 = vmatpush1.msra.mxu0 0.0
    %1902 = vmatprep.subr.mxu0 0.0
    %1903 = vmatpush1.msra.mxu0 0.0
    %1904 = vmatprep.subr.mxu0 0.0
    %1905 = vmatpush1.msra.mxu0 0.0
    %1906 = vmatprep.subr.mxu0 0.0
    %1907 = vmatpush1.msra.mxu0 0.0
    %1908 = vmatprep.subr.mxu0 0.0
    %1909 = vmatpush1.msra.mxu0 0.0
    %1910 = vmatprep.subr.mxu0 0.0
    %1911 = vmatpush1.msra.mxu0 0.0
    %1912 = vmatprep.subr.mxu0 0.0
    %1913 = vmatpush1.msra.mxu0 0.0
    %1914 = vmatprep.subr.mxu0 0.0
    %1915 = vmatpush1.msra.mxu0 0.0
    %1916 = vmatprep.subr.mxu0 0.0
    %1917 = vmatpush1.msra.mxu0 0.0
    %1918 = vmatprep.subr.mxu0 0.0
    %1919 = vmatpush1.msra.mxu0 0.0
    %1920 = vmatprep.subr.mxu0 0.0
    %1921 = vmatpush1.msra.mxu0 0.0
    %1922 = vmatprep.subr.mxu0 0.0
    %1923 = vmatpush1.msra.mxu0 0.0
    %1924 = vmatprep.subr.mxu0 0.0
    %1925 = vmatpush1.msra.mxu0 0.0
    %1926 = vmatprep.subr.mxu0 0.0
    %1927 = vmatpush1.msra.mxu0 0.0
    %1928 = vmatprep.subr.mxu0 0.0
    %1929 = vmatpush1.msra.mxu0 0.0
    %1930 = vmatprep.subr.mxu0 0.0
    %1931 = vmatpush1.msra.mxu0 0.0
    %1932 = vmatprep.subr.mxu0 0.0
    %1933 = vmatpush1.msra.mxu0 0.0
    %1934 = vmatprep.mubr.f32.mxu0 0.0
    %1935 = vmatmul.mubr.f32.gmra.mrb[0].mxu0 %v164
    %v1936 = vpop.f32.mrb[0].mxu0
    %v1937 = vadd.f32 0.0, %v1936
    %v1938 = vpop.f32.mrb[0].mxu0
    %1939 = vmatprep.mubr.f32.mxu0 0.0
    %1940 = vmatmul.mubr.f32.gmra.mrb[0].mxu0 %v167
    %v1941 = vpop.f32.mrb[0].mxu0
    %v1942 = vadd.f32 0.0, %v1941
    %v1943 = vpop.f32.mrb[0].mxu0
    %1944 = vmatprep.mubr.f32.mxu0 0.0
    %1945 = vmatmul.mubr.f32.gmra.mrb[0].mxu0 %v170
    %v1946 = vpop.f32.mrb[0].mxu0
    %v1947 = vadd.f32 0.0, %v1946
    %v1948 = vpop.f32.mrb[0].mxu0
    %1949 = vmatprep.mubr.f32.mxu0 0.0
    %1950 = vmatmul.mubr.f32.gmra.mrb[0].mxu0 %v173
    %v1951 = vpop.f32.mrb[0].mxu0
    %v1952 = vadd.f32 0.0, %v1951
    %v1953 = vpop.f32.mrb[0].mxu0
    %1954 = vdwg.mxu0
    %v1955 = vsub.f32 %v1852, %v1937
    %v1956 = vsub.f32 %v1857, %v1942
    %v1957 = vsub.f32 %v1862, %v1947
    %v1958 = vsub.f32 %v1867, %v1952
    %v1959 = vmul.f32 %v1955, %v1955
    %v1960 = vmul.f32 %v1956, %v1956
    %v1961 = vmul.f32 %v1957, %v1957
    %v1962 = vmul.f32 %v1958, %v1958
    %1963 = vmatprep.subr.mxu0 0.0
    %1964 = vmatpush1.msra.mxu0 %v1959
    %1965 = vmatprep.subr.mxu0 0.0
    %1966 = vmatpush1.msra.mxu0 %v1960
    %1967 = vmatprep.subr.mxu0 0.0
    %1968 = vmatpush1.msra.mxu0 %v1961
    %1969 = vmatprep.subr.mxu0 0.0
    %1970 = vmatpush1.msra.mxu0 %v1962
    %1971 = vmatprep.subr.mxu0 0.0
    %1972 = vmatpush1.msra.mxu0 0.0
    %1973 = vmatprep.subr.mxu0 0.0
    %1974 = vmatpush1.msra.mxu0 0.0
    %1975 = vmatprep.subr.mxu0 0.0
    %1976 = vmatpush1.msra.mxu0 0.0
    %1977 = vmatprep.subr.mxu0 0.0
    %1978 = vmatpush1.msra.mxu0 0.0
    %1979 = vmatprep.subr.mxu0 0.0
    %1980 = vmatpush1.msra.mxu0 0.0
    %1981 = vmatprep.subr.mxu0 0.0
    %1982 = vmatpush1.msra.mxu0 0.0
    %1983 = vmatprep.subr.mxu0 0.0
    %1984 = vmatpush1.msra.mxu0 0.0
    %1985 = vmatprep.subr.mxu0 0.0
    %1986 = vmatpush1.msra.mxu0 0.0
    %1987 = vmatprep.subr.mxu0 0.0
    %1988 = vmatpush1.msra.mxu0 0.0
    %1989 = vmatprep.subr.mxu0 0.0
    %1990 = vmatpush1.msra.mxu0 0.0
    %1991 = vmatprep.subr.mxu0 0.0
    %1992 = vmatpush1.msra.mxu0 0.0
    %1993 = vmatprep.subr.mxu0 0.0
    %1994 = vmatpush1.msra.mxu0 0.0
    %1995 = vmatprep.subr.mxu0 0.0
    %1996 = vmatpush1.msra.mxu0 0.0
    %1997 = vmatprep.subr.mxu0 0.0
    %1998 = vmatpush1.msra.mxu0 0.0
    %1999 = vmatprep.subr.mxu0 0.0
    %2000 = vmatpush1.msra.mxu0 0.0
    %2001 = vmatprep.subr.mxu0 0.0
    %2002 = vmatpush1.msra.mxu0 0.0
    %2003 = vmatprep.subr.mxu0 0.0
    %2004 = vmatpush1.msra.mxu0 0.0
    %2005 = vmatprep.subr.mxu0 0.0
    %2006 = vmatpush1.msra.mxu0 0.0
    %2007 = vmatprep.subr.mxu0 0.0
    %2008 = vmatpush1.msra.mxu0 0.0
    %2009 = vmatprep.subr.mxu0 0.0
    %2010 = vmatpush1.msra.mxu0 0.0
    %2011 = vmatprep.subr.mxu0 0.0
    %2012 = vmatpush1.msra.mxu0 0.0
    %2013 = vmatprep.subr.mxu0 0.0
    %2014 = vmatpush1.msra.mxu0 0.0
    %2015 = vmatprep.subr.mxu0 0.0
    %2016 = vmatpush1.msra.mxu0 0.0
    %2017 = vmatprep.subr.mxu0 0.0
    %2018 = vmatpush1.msra.mxu0 0.0
    %2019 = vmatprep.subr.mxu0 0.0
    %2020 = vmatpush1.msra.mxu0 0.0
    %2021 = vmatprep.subr.mxu0 0.0
    %2022 = vmatpush1.msra.mxu0 0.0
    %2023 = vmatprep.subr.mxu0 0.0
    %2024 = vmatpush1.msra.mxu0 0.0
    %2025 = vmatprep.subr.mxu0 0.0
    %2026 = vmatpush1.msra.mxu0 0.0
    %2027 = vmatprep.mubr.f32.mxu0 0.0
    %2028 = vmatmul.mubr.f32.gmra.mrb[0].mxu0 %v164
    %v2029 = vpop.f32.mrb[0].mxu0
    %v2030 = vadd.f32 1e-05, %v2029
    %v2031 = vpop.f32.mrb[0].mxu0
    %2032 = vmatprep.mubr.f32.mxu0 0.0
    %2033 = vmatmul.mubr.f32.gmra.mrb[0].mxu0 %v167
    %v2034 = vpop.f32.mrb[0].mxu0
    %v2035 = vadd.f32 1e-05, %v2034
    %v2036 = vpop.f32.mrb[0].mxu0
    %2037 = vmatprep.mubr.f32.mxu0 0.0
    %2038 = vmatmul.mubr.f32.gmra.mrb[0].mxu0 %v170
    %v2039 = vpop.f32.mrb[0].mxu0
    %v2040 = vadd.f32 1e-05, %v2039
    %v2041 = vpop.f32.mrb[0].mxu0
    %2042 = vmatprep.mubr.f32.mxu0 0.0
    %2043 = vmatmul.mubr.f32.gmra.mrb[0].mxu0 %v173
    %v2044 = vpop.f32.mrb[0].mxu0
    %v2045 = vadd.f32 1e-05, %v2044
    %v2046 = vpop.f32.mrb[0].mxu0
    %2047 = vdwg.mxu0
    %v2048 = vrsqrt.pop %v2030
    %v2049 = vrsqrt.pop %v2035
    %v2050 = vrsqrt.pop %v2040
    %v2051 = vrsqrt.pop %v2045
    %v2052 = vmul.f32 %v1955, %v2048
    %v2053 = vmul.f32 %v1956, %v2049
    %v2054 = vmul.f32 %v1957, %v2050
    %v2055 = vmul.f32 %v1958, %v2051
    %2056 = vset.pattern.permute.xlu0 2
    %2057 = vperm.xlu0 %2056, %v150
    %v2058 = vpop.permute.xlu0 %2057
    %2060 = vset.pattern.permute.xlu0 2
    %2061 = vperm.xlu0 %2060, %v151
    %v2062 = vpop.permute.xlu0 %2061
    %2064 = vset.pattern.permute.xlu0 2
    %2065 = vperm.xlu0 %2064, %v152
    %v2066 = vpop.permute.xlu0 %2065
    %2068 = vset.pattern.permute.xlu0 2
    %2069 = vperm.xlu0 %2068, %v153
    %v2070 = vpop.permute.xlu0 %2069
    %v2072 = vmul.f32 %v2052, %v2058
    %v2073 = vmul.f32 %v2053, %v2062
    %v2074 = vmul.f32 %v2054, %v2066
    %v2075 = vmul.f32 %v2055, %v2070
    %2076 = vset.pattern.permute.xlu0 3
    %2077 = vperm.xlu0 %2076, %v150
    %v2078 = vpop.permute.xlu0 %2077
    %2080 = vset.pattern.permute.xlu0 3
    %2081 = vperm.xlu0 %2080, %v151
    %v2082 = vpop.permute.xlu0 %2081
    %2084 = vset.pattern.permute.xlu0 3
    %2085 = vperm.xlu0 %2084, %v152
    %v2086 = vpop.permute.xlu0 %2085
    %2088 = vset.pattern.permute.xlu0 3
    %2089 = vperm.xlu0 %2088, %v153
    %v2090 = vpop.permute.xlu0 %2089
    %v2092 = vadd.f32 %v2072, %v2078
    %v2093 = vadd.f32 %v2073, %v2082
    %v2094 = vadd.f32 %v2074, %v2086
    %v2095 = vadd.f32 %v2075, %v2090
    %s2096 = scalar_lea.vmem [#allocation7], 128
    %v2097 = vld [vmem:[%s2096] sm:$0xff]
    %v2098 = vld [vmem:[%s2096 + $0x8] sm:$0xff]
    %v2099 = vld [vmem:[%s2096 + $0x10] sm:$0xff]
    %v2100 = vld [vmem:[%s2096 + $0x18] sm:$0xff]
    %v2101 = vld [vmem:[%s2096 + $0x20] sm:$0xff]
    %v2102 = vld [vmem:[%s2096 + $0x28] sm:$0xff]
    %v2103 = vld [vmem:[%s2096 + $0x30] sm:$0xff]
    %v2104 = vld [vmem:[%s2096 + $0x38] sm:$0xff]
    %v2105 = vld [vmem:[%s2096 + $0x40] sm:$0xff]
    %v2106 = vld [vmem:[%s2096 + $0x48] sm:$0xff]
    %v2107 = vld [vmem:[%s2096 + $0x50] sm:$0xff]
    %v2108 = vld [vmem:[%s2096 + $0x58] sm:$0xff]
    %v2109 = vld [vmem:[%s2096 + $0x60] sm:$0xff]
    %v2110 = vld [vmem:[%s2096 + $0x68] sm:$0xff]
    %v2111 = vld [vmem:[%s2096 + $0x70] sm:$0xff]
    %v2112 = vld [vmem:[%s2096 + $0x78] sm:$0xff]
    %2113 = vmatprep.subr.mxu0 0.0
    %2114 = vmatpush1.msra.mxu0 %v2097
    %2115 = vmatprep.subr.mxu0 0.0
    %2116 = vmatpush1.msra.mxu0 %v2098
    %2117 = vmatprep.subr.mxu0 0.0
    %2118 = vmatpush1.msra.mxu0 %v2099
    %2119 = vmatprep.subr.mxu0 0.0
    %2120 = vmatpush1.msra.mxu0 %v2100
    %2121 = vmatprep.subr.mxu0 0.0
    %2122 = vmatpush1.msra.mxu0 %v2101
    %2123 = vmatprep.subr.mxu0 0.0
    %2124 = vmatpush1.msra.mxu0 %v2102
    %2125 = vmatprep.subr.mxu0 0.0
    %2126 = vmatpush1.msra.mxu0 %v2103
    %2127 = vmatprep.subr.mxu0 0.0
    %2128 = vmatpush1.msra.mxu0 %v2104
    %2129 = vmatprep.subr.mxu0 0.0
    %2130 = vmatpush1.msra.mxu0 %v2105
    %2131 = vmatprep.subr.mxu0 0.0
    %2132 = vmatpush1.msra.mxu0 %v2106
    %2133 = vmatprep.subr.mxu0 0.0
    %2134 = vmatpush1.msra.mxu0 %v2107
    %2135 = vmatprep.subr.mxu0 0.0
    %2136 = vmatpush1.msra.mxu0 %v2108
    %2137 = vmatprep.subr.mxu0 0.0
    %2138 = vmatpush1.msra.mxu0 %v2109
    %2139 = vmatprep.subr.mxu0 0.0
    %2140 = vmatpush1.msra.mxu0 %v2110
    %2141 = vmatprep.subr.mxu0 0.0
    %2142 = vmatpush1.msra.mxu0 %v2111
    %2143 = vmatprep.subr.mxu0 0.0
    %2144 = vmatpush1.msra.mxu0 %v2112
    %2145 = vmatprep.subr.mxu0 0.0
    %2146 = vmatpush1.msra.mxu0 0.0
    %2147 = vmatprep.subr.mxu0 0.0
    %2148 = vmatpush1.msra.mxu0 0.0
    %2149 = vmatprep.subr.mxu0 0.0
    %2150 = vmatpush1.msra.mxu0 0.0
    %2151 = vmatprep.subr.mxu0 0.0
    %2152 = vmatpush1.msra.mxu0 0.0
    %2153 = vmatprep.subr.mxu0 0.0
    %2154 = vmatpush1.msra.mxu0 0.0
    %2155 = vmatprep.subr.mxu0 0.0
    %2156 = vmatpush1.msra.mxu0 0.0
    %2157 = vmatprep.subr.mxu0 0.0
    %2158 = vmatpush1.msra.mxu0 0.0
    %2159 = vmatprep.subr.mxu0 0.0
    %2160 = vmatpush1.msra.mxu0 0.0
    %2161 = vmatprep.subr.mxu0 0.0
    %2162 = vmatpush1.msra.mxu0 0.0
    %2163 = vmatprep.subr.mxu0 0.0
    %2164 = vmatpush1.msra.mxu0 0.0
    %2165 = vmatprep.subr.mxu0 0.0
    %2166 = vmatpush1.msra.mxu0 0.0
    %2167 = vmatprep.subr.mxu0 0.0
    %2168 = vmatpush1.msra.mxu0 0.0
    %2169 = vmatprep.subr.mxu0 0.0
    %2170 = vmatpush1.msra.mxu0 0.0
    %2171 = vmatprep.subr.mxu0 0.0
    %2172 = vmatpush1.msra.mxu0 0.0
    %2173 = vmatprep.subr.mxu0 0.0
    %2174 = vmatpush1.msra.mxu0 0.0
    %2175 = vmatprep.subr.mxu0 0.0
    %2176 = vmatpush1.msra.mxu0 0.0
    %2177 = vmatprep.mubr.f32.mxu0 0.0
    %2178 = vmatmul.mubr.f32.gmra.mrb[0].mxu0 %v2092
    %v2179 = vpop.f32.mrb[0].mxu0
    %v2180 = vadd.f32 0.0, %v2179
    %v2181 = vpop.f32.mrb[0].mxu0
    %2182 = vmatprep.mubr.f32.mxu0 0.0
    %2183 = vmatmul.mubr.f32.gmra.mrb[0].mxu0 %v2093
    %v2184 = vpop.f32.mrb[0].mxu0
    %v2185 = vadd.f32 0.0, %v2184
    %v2186 = vpop.f32.mrb[0].mxu0
    %2187 = vmatprep.mubr.f32.mxu0 0.0
    %2188 = vmatmul.mubr.f32.gmra.mrb[0].mxu0 %v2094
    %v2189 = vpop.f32.mrb[0].mxu0
    %v2190 = vadd.f32 0.0, %v2189
    %v2191 = vpop.f32.mrb[0].mxu0
    %2192 = vmatprep.mubr.f32.mxu0 0.0
    %2193 = vmatmul.mubr.f32.gmra.mrb[0].mxu0 %v2095
    %v2194 = vpop.f32.mrb[0].mxu0
    %v2195 = vadd.f32 0.0, %v2194
    %v2196 = vpop.f32.mrb[0].mxu0
    %2197 = vdwg.mxu0
    %s2198 = scalar_lea.vmem [#allocation7], 256
    %v2199 = vld [vmem:[%s2198] sm:$0xff]
    %v2200 = vld [vmem:[%s2198 + $0x8] sm:$0xff]
    %v2201 = vld [vmem:[%s2198 + $0x10] sm:$0xff]
    %v2202 = vld [vmem:[%s2198 + $0x18] sm:$0xff]
    %v2203 = vld [vmem:[%s2198 + $0x20] sm:$0xff]
    %v2204 = vld [vmem:[%s2198 + $0x28] sm:$0xff]
    %v2205 = vld [vmem:[%s2198 + $0x30] sm:$0xff]
    %v2206 = vld [vmem:[%s2198 + $0x38] sm:$0xff]
    %v2207 = vld [vmem:[%s2198 + $0x40] sm:$0xff]
    %v2208 = vld [vmem:[%s2198 + $0x48] sm:$0xff]
    %v2209 = vld [vmem:[%s2198 + $0x50] sm:$0xff]
    %v2210 = vld [vmem:[%s2198 + $0x58] sm:$0xff]
    %v2211 = vld [vmem:[%s2198 + $0x60] sm:$0xff]
    %v2212 = vld [vmem:[%s2198 + $0x68] sm:$0xff]
    %v2213 = vld [vmem:[%s2198 + $0x70] sm:$0xff]
    %v2214 = vld [vmem:[%s2198 + $0x78] sm:$0xff]
    %2215 = vmatprep.subr.mxu0 0.0
    %2216 = vmatpush1.msra.mxu0 %v2199
    %2217 = vmatprep.subr.mxu0 0.0
    %2218 = vmatpush1.msra.mxu0 %v2200
    %2219 = vmatprep.subr.mxu0 0.0
    %2220 = vmatpush1.msra.mxu0 %v2201
    %2221 = vmatprep.subr.mxu0 0.0
    %2222 = vmatpush1.msra.mxu0 %v2202
    %2223 = vmatprep.subr.mxu0 0.0
    %2224 = vmatpush1.msra.mxu0 %v2203
    %2225 = vmatprep.subr.mxu0 0.0
    %2226 = vmatpush1.msra.mxu0 %v2204
    %2227 = vmatprep.subr.mxu0 0.0
    %2228 = vmatpush1.msra.mxu0 %v2205
    %2229 = vmatprep.subr.mxu0 0.0
    %2230 = vmatpush1.msra.mxu0 %v2206
    %2231 = vmatprep.subr.mxu0 0.0
    %2232 = vmatpush1.msra.mxu0 %v2207
    %2233 = vmatprep.subr.mxu0 0.0
    %2234 = vmatpush1.msra.mxu0 %v2208
    %2235 = vmatprep.subr.mxu0 0.0
    %2236 = vmatpush1.msra.mxu0 %v2209
    %2237 = vmatprep.subr.mxu0 0.0
    %2238 = vmatpush1.msra.mxu0 %v2210
    %2239 = vmatprep.subr.mxu0 0.0
    %2240 = vmatpush1.msra.mxu0 %v2211
    %2241 = vmatprep.subr.mxu0 0.0
    %2242 = vmatpush1.msra.mxu0 %v2212
    %2243 = vmatprep.subr.mxu0 0.0
    %2244 = vmatpush1.msra.mxu0 %v2213
    %2245 = vmatprep.subr.mxu0 0.0
    %2246 = vmatpush1.msra.mxu0 %v2214
    %2247 = vmatprep.subr.mxu0 0.0
    %2248 = vmatpush1.msra.mxu0 0.0
    %2249 = vmatprep.subr.mxu0 0.0
    %2250 = vmatpush1.msra.mxu0 0.0
    %2251 = vmatprep.subr.mxu0 0.0
    %2252 = vmatpush1.msra.mxu0 0.0
    %2253 = vmatprep.subr.mxu0 0.0
    %2254 = vmatpush1.msra.mxu0 0.0
    %2255 = vmatprep.subr.mxu0 0.0
    %2256 = vmatpush1.msra.mxu0 0.0
    %2257 = vmatprep.subr.mxu0 0.0
    %2258 = vmatpush1.msra.mxu0 0.0
    %2259 = vmatprep.subr.mxu0 0.0
    %2260 = vmatpush1.msra.mxu0 0.0
    %2261 = vmatprep.subr.mxu0 0.0
    %2262 = vmatpush1.msra.mxu0 0.0
    %2263 = vmatprep.subr.mxu0 0.0
    %2264 = vmatpush1.msra.mxu0 0.0
    %2265 = vmatprep.subr.mxu0 0.0
    %2266 = vmatpush1.msra.mxu0 0.0
    %2267 = vmatprep.subr.mxu0 0.0
    %2268 = vmatpush1.msra.mxu0 0.0
    %2269 = vmatprep.subr.mxu0 0.0
    %2270 = vmatpush1.msra.mxu0 0.0
    %2271 = vmatprep.subr.mxu0 0.0
    %2272 = vmatpush1.msra.mxu0 0.0
    %2273 = vmatprep.subr.mxu0 0.0
    %2274 = vmatpush1.msra.mxu0 0.0
    %2275 = vmatprep.subr.mxu0 0.0
    %2276 = vmatpush1.msra.mxu0 0.0
    %2277 = vmatprep.subr.mxu0 0.0
    %2278 = vmatpush1.msra.mxu0 0.0
    %2279 = vmatprep.mubr.f32.mxu0 0.0
    %2280 = vmatmul.mubr.f32.gmra.mrb[0].mxu0 %v2092
    %v2281 = vpop.f32.mrb[0].mxu0
    %v2282 = vadd.f32 0.0, %v2281
    %v2283 = vpop.f32.mrb[0].mxu0
    %2284 = vmatprep.mubr.f32.mxu0 0.0
    %2285 = vmatmul.mubr.f32.gmra.mrb[0].mxu0 %v2093
    %v2286 = vpop.f32.mrb[0].mxu0
    %v2287 = vadd.f32 0.0, %v2286
    %v2288 = vpop.f32.mrb[0].mxu0
    %2289 = vmatprep.mubr.f32.mxu0 0.0
    %2290 = vmatmul.mubr.f32.gmra.mrb[0].mxu0 %v2094
    %v2291 = vpop.f32.mrb[0].mxu0
    %v2292 = vadd.f32 0.0, %v2291
    %v2293 = vpop.f32.mrb[0].mxu0
    %2294 = vmatprep.mubr.f32.mxu0 0.0
    %2295 = vmatmul.mubr.f32.gmra.mrb[0].mxu0 %v2095
    %v2296 = vpop.f32.mrb[0].mxu0
    %v2297 = vadd.f32 0.0, %v2296
    %v2298 = vpop.f32.mrb[0].mxu0
    %2299 = vdwg.mxu0
    %v2300 = vld [vmem:[#allocation11] sm:$0xff]
    %v2301 = vld [vmem:[#allocation11 + $0x8] sm:$0xff]
    %v2302 = vld [vmem:[#allocation11 + $0x10] sm:$0xff]
    %v2303 = vld [vmem:[#allocation11 + $0x18] sm:$0xff]
    %v2304 = vld [vmem:[#allocation11 + $0x20] sm:$0xff]
    %v2305 = vld [vmem:[#allocation11 + $0x28] sm:$0xff]
    %v2306 = vld [vmem:[#allocation11 + $0x30] sm:$0xff]
    %v2307 = vld [vmem:[#allocation11 + $0x38] sm:$0xff]
    %v2308 = vld [vmem:[#allocation11 + $0x40] sm:$0xff]
    %v2309 = vld [vmem:[#allocation11 + $0x48] sm:$0xff]
    %v2310 = vld [vmem:[#allocation11 + $0x50] sm:$0xff]
    %v2311 = vld [vmem:[#allocation11 + $0x58] sm:$0xff]
    %2312 = vset.pattern.permute.xlu0 9
    %2313 = vperm.xlu0 %2312, %v150
    %v2314 = vpop.permute.xlu0 %2313
    %2316 = vset.pattern.permute.xlu0 9
    %2317 = vperm.xlu0 %2316, %v151
    %v2318 = vpop.permute.xlu0 %2317
    %2320 = vset.pattern.permute.xlu0 9
    %2321 = vperm.xlu0 %2320, %v152
    %v2322 = vpop.permute.xlu0 %2321
    %2324 = vset.pattern.permute.xlu0 9
    %2325 = vperm.xlu0 %2324, %v153
    %v2326 = vpop.permute.xlu0 %2325
    %2329 = vset.pattern.permute.xlu0 9
    %2330 = vperm.xlu0 %2329, %v154
    %v2331 = vpop.permute.xlu0 %2330
    %2334 = vset.pattern.permute.xlu0 9
    %2335 = vperm.xlu0 %2334, %v155
    %v2336 = vpop.permute.xlu0 %2335
    %2339 = vset.pattern.permute.xlu0 9
    %2340 = vperm.xlu0 %2339, %v156
    %v2341 = vpop.permute.xlu0 %2340
    %2344 = vset.pattern.permute.xlu0 9
    %2345 = vperm.xlu0 %2344, %v157
    %v2346 = vpop.permute.xlu0 %2345
    %2349 = vset.pattern.permute.xlu0 9
    %2350 = vperm.xlu0 %2349, %v158
    %v2351 = vpop.permute.xlu0 %2350
    %2354 = vset.pattern.permute.xlu0 9
    %2355 = vperm.xlu0 %2354, %v159
    %v2356 = vpop.permute.xlu0 %2355
    %2359 = vset.pattern.permute.xlu0 9
    %2360 = vperm.xlu0 %2359, %v160
    %v2361 = vpop.permute.xlu0 %2360
    %2364 = vset.pattern.permute.xlu0 9
    %2365 = vperm.xlu0 %2364, %v161
    %v2366 = vpop.permute.xlu0 %2365
    %v2369 = vsel %vm162, %v2300, 0
    %v2372 = vsel %vm162, %v2301, 0
    %v2375 = vsel %vm162, %v2302, 0
    %v2378 = vsel %vm162, %v2303, 0
    %v2381 = vsel %vm162, %v2304, 0
    %v2384 = vsel %vm162, %v2305, 0
    %v2387 = vsel %vm162, %v2306, 0
    %v2390 = vsel %vm162, %v2307, 0
    %v2393 = vsel %vm162, %v2308, 0
    %v2396 = vsel %vm162, %v2309, 0
    %v2399 = vsel %vm162, %v2310, 0
    %v2402 = vsel %vm162, %v2311, 0
    %2404 = vmatprep.subr.mxu0 0.0
    %2405 = vmatpush1.msra.mxu0 %v2092
    %2406 = vmatprep.subr.mxu0 0.0
    %2407 = vmatpush1.msra.mxu0 %v2093
    %2408 = vmatprep.subr.mxu0 0.0
    %2409 = vmatpush1.msra.mxu0 %v2094
    %2410 = vmatprep.subr.mxu0 0.0
    %2411 = vmatpush1.msra.mxu0 %v2095
    %2412 = vmatprep.subr.mxu0 0.0
    %2413 = vmatpush1.msra.mxu0 0.0
    %2414 = vmatprep.subr.mxu0 0.0
    %2415 = vmatpush1.msra.mxu0 0.0
    %2416 = vmatprep.subr.mxu0 0.0
    %2417 = vmatpush1.msra.mxu0 0.0
    %2418 = vmatprep.subr.mxu0 0.0
    %2419 = vmatpush1.msra.mxu0 0.0
    %2420 = vmatprep.subr.mxu0 0.0
    %2421 = vmatpush1.msra.mxu0 0.0
    %2422 = vmatprep.subr.mxu0 0.0
    %2423 = vmatpush1.msra.mxu0 0.0
    %2424 = vmatprep.subr.mxu0 0.0
    %2425 = vmatpush1.msra.mxu0 0.0
    %2426 = vmatprep.subr.mxu0 0.0
    %2427 = vmatpush1.msra.mxu0 0.0
    %2428 = vmatprep.subr.mxu0 0.0
    %2429 = vmatpush1.msra.mxu0 0.0
    %2430 = vmatprep.subr.mxu0 0.0
    %2431 = vmatpush1.msra.mxu0 0.0
    %2432 = vmatprep.subr.mxu0 0.0
    %2433 = vmatpush1.msra.mxu0 0.0
    %2434 = vmatprep.subr.mxu0 0.0
    %2435 = vmatpush1.msra.mxu0 0.0
    %2436 = vmatprep.subr.mxu0 0.0
    %2437 = vmatpush1.msra.mxu0 0.0
    %2438 = vmatprep.subr.mxu0 0.0
    %2439 = vmatpush1.msra.mxu0 0.0
    %2440 = vmatprep.subr.mxu0 0.0
    %2441 = vmatpush1.msra.mxu0 0.0
    %2442 = vmatprep.subr.mxu0 0.0
    %2443 = vmatpush1.msra.mxu0 0.0
    %2444 = vmatprep.subr.mxu0 0.0
    %2445 = vmatpush1.msra.mxu0 0.0
    %2446 = vmatprep.subr.mxu0 0.0
    %2447 = vmatpush1.msra.mxu0 0.0
    %2448 = vmatprep.subr.mxu0 0.0
    %2449 = vmatpush1.msra.mxu0 0.0
    %2450 = vmatprep.subr.mxu0 0.0
    %2451 = vmatpush1.msra.mxu0 0.0
    %2452 = vmatprep.subr.mxu0 0.0
    %2453 = vmatpush1.msra.mxu0 0.0
    %2454 = vmatprep.subr.mxu0 0.0
    %2455 = vmatpush1.msra.mxu0 0.0
    %2456 = vmatprep.subr.mxu0 0.0
    %2457 = vmatpush1.msra.mxu0 0.0
    %2458 = vmatprep.subr.mxu0 0.0
    %2459 = vmatpush1.msra.mxu0 0.0
    %2460 = vmatprep.subr.mxu0 0.0
    %2461 = vmatpush1.msra.mxu0 0.0
    %2462 = vmatprep.subr.mxu0 0.0
    %2463 = vmatpush1.msra.mxu0 0.0
    %2464 = vmatprep.subr.mxu0 0.0
    %2465 = vmatpush1.msra.mxu0 0.0
    %2466 = vmatprep.subr.mxu0 0.0
    %2467 = vmatpush1.msra.mxu0 0.0
    %2468 = vmatprep.mubr.f32.mxu0 0.0
    %2469 = vmatmul.mubr.f32.gmra.mrb[0].mxu0 %v2369
    %v2470 = vpop.f32.mrb[0].mxu0
    %v2471 = vadd.f32 %v2314, %v2470
    %v2472 = vpop.f32.mrb[0].mxu0
    %2473 = vmatprep.mubr.f32.mxu0 0.0
    %2474 = vmatmul.mubr.f32.gmra.mrb[0].mxu0 %v2372
    %v2475 = vpop.f32.mrb[0].mxu0
    %v2476 = vadd.f32 %v2318, %v2475
    %v2477 = vpop.f32.mrb[0].mxu0
    %2478 = vmatprep.mubr.f32.mxu0 0.0
    %2479 = vmatmul.mubr.f32.gmra.mrb[0].mxu0 %v2375
    %v2480 = vpop.f32.mrb[0].mxu0
    %v2481 = vadd.f32 %v2322, %v2480
    %v2482 = vpop.f32.mrb[0].mxu0
    %2483 = vmatprep.mubr.f32.mxu0 0.0
    %2484 = vmatmul.mubr.f32.gmra.mrb[0].mxu0 %v2378
    %v2485 = vpop.f32.mrb[0].mxu0
    %v2486 = vadd.f32 %v2326, %v2485
    %v2487 = vpop.f32.mrb[0].mxu0
    %2488 = vmatprep.mubr.f32.mxu0 0.0
    %2489 = vmatmul.mubr.f32.gmra.mrb[0].mxu0 %v2381
    %v2490 = vpop.f32.mrb[0].mxu0
    %v2491 = vadd.f32 %v2331, %v2490
    %v2492 = vpop.f32.mrb[0].mxu0
    %2493 = vmatprep.mubr.f32.mxu0 0.0
    %2494 = vmatmul.mubr.f32.gmra.mrb[0].mxu0 %v2384
    %v2495 = vpop.f32.mrb[0].mxu0
    %v2496 = vadd.f32 %v2336, %v2495
    %v2497 = vpop.f32.mrb[0].mxu0
    %2498 = vmatprep.mubr.f32.mxu0 0.0
    %2499 = vmatmul.mubr.f32.gmra.mrb[0].mxu0 %v2387
    %v2500 = vpop.f32.mrb[0].mxu0
    %v2501 = vadd.f32 %v2341, %v2500
    %v2502 = vpop.f32.mrb[0].mxu0
    %2503 = vmatprep.mubr.f32.mxu0 0.0
    %2504 = vmatmul.mubr.f32.gmra.mrb[0].mxu0 %v2390
    %v2505 = vpop.f32.mrb[0].mxu0
    %v2506 = vadd.f32 %v2346, %v2505
    %v2507 = vpop.f32.mrb[0].mxu0
    %2508 = vmatprep.mubr.f32.mxu0 0.0
    %2509 = vmatmul.mubr.f32.gmra.mrb[0].mxu0 %v2393
    %v2510 = vpop.f32.mrb[0].mxu0
    %v2511 = vadd.f32 %v2351, %v2510
    %v2512 = vpop.f32.mrb[0].mxu0
    %2513 = vmatprep.mubr.f32.mxu0 0.0
    %2514 = vmatmul.mubr.f32.gmra.mrb[0].mxu0 %v2396
    %v2515 = vpop.f32.mrb[0].mxu0
    %v2516 = vadd.f32 %v2356, %v2515
    %v2517 = vpop.f32.mrb[0].mxu0
    %2518 = vmatprep.mubr.f32.mxu0 0.0
    %2519 = vmatmul.mubr.f32.gmra.mrb[0].mxu0 %v2399
    %v2520 = vpop.f32.mrb[0].mxu0
    %v2521 = vadd.f32 %v2361, %v2520
    %v2522 = vpop.f32.mrb[0].mxu0
    %2523 = vmatprep.mubr.f32.mxu0 0.0
    %2524 = vmatmul.mubr.f32.gmra.mrb[0].mxu0 %v2402
    %v2525 = vpop.f32.mrb[0].mxu0
    %v2526 = vadd.f32 %v2366, %v2525
    %v2527 = vpop.f32.mrb[0].mxu0
    %2528 = vdwg.mxu0
    %s2529 = scalar_lea.vmem [#allocation11], 96
    %v2530 = vld [vmem:[%s2529] sm:$0xff]
    %v2531 = vld [vmem:[%s2529 + $0x8] sm:$0xff]
    %v2532 = vld [vmem:[%s2529 + $0x10] sm:$0xff]
    %v2533 = vld [vmem:[%s2529 + $0x18] sm:$0xff]
    %v2534 = vld [vmem:[%s2529 + $0x20] sm:$0xff]
    %v2535 = vld [vmem:[%s2529 + $0x28] sm:$0xff]
    %v2536 = vld [vmem:[%s2529 + $0x30] sm:$0xff]
    %v2537 = vld [vmem:[%s2529 + $0x38] sm:$0xff]
    %v2538 = vld [vmem:[%s2529 + $0x40] sm:$0xff]
    %v2539 = vld [vmem:[%s2529 + $0x48] sm:$0xff]
    %v2540 = vld [vmem:[%s2529 + $0x50] sm:$0xff]
    %v2541 = vld [vmem:[%s2529 + $0x58] sm:$0xff]
    %s2542 = scalar_lea.vmem [#allocation11], 192
    %v2543 = vld [vmem:[%s2542] sm:$0xff]
    %v2544 = vld [vmem:[%s2542 + $0x8] sm:$0xff]
    %v2545 = vld [vmem:[%s2542 + $0x10] sm:$0xff]
    %v2546 = vld [vmem:[%s2542 + $0x18] sm:$0xff]
    %v2547 = vld [vmem:[%s2542 + $0x20] sm:$0xff]
    %v2548 = vld [vmem:[%s2542 + $0x28] sm:$0xff]
    %v2549 = vld [vmem:[%s2542 + $0x30] sm:$0xff]
    %v2550 = vld [vmem:[%s2542 + $0x38] sm:$0xff]
    %v2551 = vld [vmem:[%s2542 + $0x40] sm:$0xff]
    %v2552 = vld [vmem:[%s2542 + $0x48] sm:$0xff]
    %v2553 = vld [vmem:[%s2542 + $0x50] sm:$0xff]
    %v2554 = vld [vmem:[%s2542 + $0x58] sm:$0xff]
    %v2556 = vsel %vm162, %v2543, 0
    %v2559 = vsel %vm162, %v2544, 0
    %v2562 = vsel %vm162, %v2545, 0
    %v2565 = vsel %vm162, %v2546, 0
    %v2568 = vsel %vm162, %v2547, 0
    %v2571 = vsel %vm162, %v2548, 0
    %v2574 = vsel %vm162, %v2549, 0
    %v2577 = vsel %vm162, %v2550, 0
    %v2580 = vsel %vm162, %v2551, 0
    %v2583 = vsel %vm162, %v2552, 0
    %v2586 = vsel %vm162, %v2553, 0
    %v2589 = vsel %vm162, %v2554, 0
    %2591 = vmatprep.subr.mxu0 0.0
    %2592 = vmatpush1.msra.mxu0 %v2092
    %2593 = vmatprep.subr.mxu0 0.0
    %2594 = vmatpush1.msra.mxu0 %v2093
    %2595 = vmatprep.subr.mxu0 0.0
    %2596 = vmatpush1.msra.mxu0 %v2094
    %2597 = vmatprep.subr.mxu0 0.0
    %2598 = vmatpush1.msra.mxu0 %v2095
    %2599 = vmatprep.subr.mxu0 0.0
    %2600 = vmatpush1.msra.mxu0 0.0
    %2601 = vmatprep.subr.mxu0 0.0
    %2602 = vmatpush1.msra.mxu0 0.0
    %2603 = vmatprep.subr.mxu0 0.0
    %2604 = vmatpush1.msra.mxu0 0.0
    %2605 = vmatprep.subr.mxu0 0.0
    %2606 = vmatpush1.msra.mxu0 0.0
    %2607 = vmatprep.subr.mxu0 0.0
    %2608 = vmatpush1.msra.mxu0 0.0
    %2609 = vmatprep.subr.mxu0 0.0
    %2610 = vmatpush1.msra.mxu0 0.0
    %2611 = vmatprep.subr.mxu0 0.0
    %2612 = vmatpush1.msra.mxu0 0.0
    %2613 = vmatprep.subr.mxu0 0.0
    %2614 = vmatpush1.msra.mxu0 0.0
    %2615 = vmatprep.subr.mxu0 0.0
    %2616 = vmatpush1.msra.mxu0 0.0
    %2617 = vmatprep.subr.mxu0 0.0
    %2618 = vmatpush1.msra.mxu0 0.0
    %2619 = vmatprep.subr.mxu0 0.0
    %2620 = vmatpush1.msra.mxu0 0.0
    %2621 = vmatprep.subr.mxu0 0.0
    %2622 = vmatpush1.msra.mxu0 0.0
    %2623 = vmatprep.subr.mxu0 0.0
    %2624 = vmatpush1.msra.mxu0 0.0
    %2625 = vmatprep.subr.mxu0 0.0
    %2626 = vmatpush1.msra.mxu0 0.0
    %2627 = vmatprep.subr.mxu0 0.0
    %2628 = vmatpush1.msra.mxu0 0.0
    %2629 = vmatprep.subr.mxu0 0.0
    %2630 = vmatpush1.msra.mxu0 0.0
    %2631 = vmatprep.subr.mxu0 0.0
    %2632 = vmatpush1.msra.mxu0 0.0
    %2633 = vmatprep.subr.mxu0 0.0
    %2634 = vmatpush1.msra.mxu0 0.0
    %2635 = vmatprep.subr.mxu0 0.0
    %2636 = vmatpush1.msra.mxu0 0.0
    %2637 = vmatprep.subr.mxu0 0.0
    %2638 = vmatpush1.msra.mxu0 0.0
    %2639 = vmatprep.subr.mxu0 0.0
    %2640 = vmatpush1.msra.mxu0 0.0
    %2641 = vmatprep.subr.mxu0 0.0
    %2642 = vmatpush1.msra.mxu0 0.0
    %2643 = vmatprep.subr.mxu0 0.0
    %2644 = vmatpush1.msra.mxu0 0.0
    %2645 = vmatprep.subr.mxu0 0.0
    %2646 = vmatpush1.msra.mxu0 0.0
    %2647 = vmatprep.subr.mxu0 0.0
    %2648 = vmatpush1.msra.mxu0 0.0
    %2649 = vmatprep.subr.mxu0 0.0
    %2650 = vmatpush1.msra.mxu0 0.0
    %2651 = vmatprep.subr.mxu0 0.0
    %2652 = vmatpush1.msra.mxu0 0.0
    %2653 = vmatprep.subr.mxu0 0.0
    %2654 = vmatpush1.msra.mxu0 0.0
    %2655 = vmatprep.mubr.f32.mxu0 0.0
    %2656 = vmatmul.mubr.f32.gmra.mrb[0].mxu0 %v2556
    %v2657 = vpop.f32.mrb[0].mxu0
    %v2658 = vadd.f32 0.0, %v2657
    %v2659 = vpop.f32.mrb[0].mxu0
    %2660 = vmatprep.mubr.f32.mxu0 0.0
    %2661 = vmatmul.mubr.f32.gmra.mrb[0].mxu0 %v2559
    %v2662 = vpop.f32.mrb[0].mxu0
    %v2663 = vadd.f32 0.0, %v2662
    %v2664 = vpop.f32.mrb[0].mxu0
    %2665 = vmatprep.mubr.f32.mxu0 0.0
    %2666 = vmatmul.mubr.f32.gmra.mrb[0].mxu0 %v2562
    %v2667 = vpop.f32.mrb[0].mxu0
    %v2668 = vadd.f32 0.0, %v2667
    %v2669 = vpop.f32.mrb[0].mxu0
    %2670 = vmatprep.mubr.f32.mxu0 0.0
    %2671 = vmatmul.mubr.f32.gmra.mrb[0].mxu0 %v2565
    %v2672 = vpop.f32.mrb[0].mxu0
    %v2673 = vadd.f32 0.0, %v2672
    %v2674 = vpop.f32.mrb[0].mxu0
    %2675 = vmatprep.mubr.f32.mxu0 0.0
    %2676 = vmatmul.mubr.f32.gmra.mrb[0].mxu0 %v2568
    %v2677 = vpop.f32.mrb[0].mxu0
    %v2678 = vadd.f32 0.0, %v2677
    %v2679 = vpop.f32.mrb[0].mxu0
    %2680 = vmatprep.mubr.f32.mxu0 0.0
    %2681 = vmatmul.mubr.f32.gmra.mrb[0].mxu0 %v2571
    %v2682 = vpop.f32.mrb[0].mxu0
    %v2683 = vadd.f32 0.0, %v2682
    %v2684 = vpop.f32.mrb[0].mxu0
    %2685 = vmatprep.mubr.f32.mxu0 0.0
    %2686 = vmatmul.mubr.f32.gmra.mrb[0].mxu0 %v2574
    %v2687 = vpop.f32.mrb[0].mxu0
    %v2688 = vadd.f32 0.0, %v2687
    %v2689 = vpop.f32.mrb[0].mxu0
    %2690 = vmatprep.mubr.f32.mxu0 0.0
    %2691 = vmatmul.mubr.f32.gmra.mrb[0].mxu0 %v2577
    %v2692 = vpop.f32.mrb[0].mxu0
    %v2693 = vadd.f32 0.0, %v2692
    %v2694 = vpop.f32.mrb[0].mxu0
    %2695 = vmatprep.mubr.f32.mxu0 0.0
    %2696 = vmatmul.mubr.f32.gmra.mrb[0].mxu0 %v2580
    %v2697 = vpop.f32.mrb[0].mxu0
    %v2698 = vadd.f32 0.0, %v2697
    %v2699 = vpop.f32.mrb[0].mxu0
    %2700 = vmatprep.mubr.f32.mxu0 0.0
    %2701 = vmatmul.mubr.f32.gmra.mrb[0].mxu0 %v2583
    %v2702 = vpop.f32.mrb[0].mxu0
    %v2703 = vadd.f32 0.0, %v2702
    %v2704 = vpop.f32.mrb[0].mxu0
    %2705 = vmatprep.mubr.f32.mxu0 0.0
    %2706 = vmatmul.mubr.f32.gmra.mrb[0].mxu0 %v2586
    %v2707 = vpop.f32.mrb[0].mxu0
    %v2708 = vadd.f32 0.0, %v2707
    %v2709 = vpop.f32.mrb[0].mxu0
    %2710 = vmatprep.mubr.f32.mxu0 0.0
    %2711 = vmatmul.mubr.f32.gmra.mrb[0].mxu0 %v2589
    %v2712 = vpop.f32.mrb[0].mxu0
    %v2713 = vadd.f32 0.0, %v2712
    %v2714 = vpop.f32.mrb[0].mxu0
    %2715 = vdwg.mxu0
    %v2717 = vsel %vm162, %v2530, 0
    %v2720 = vsel %vm162, %v2531, 0
    %v2723 = vsel %vm162, %v2532, 0
    %v2726 = vsel %vm162, %v2533, 0
    %v2729 = vsel %vm162, %v2534, 0
    %v2732 = vsel %vm162, %v2535, 0
    %v2735 = vsel %vm162, %v2536, 0
    %v2738 = vsel %vm162, %v2537, 0
    %v2741 = vsel %vm162, %v2538, 0
    %v2744 = vsel %vm162, %v2539, 0
    %v2747 = vsel %vm162, %v2540, 0
    %v2750 = vsel %vm162, %v2541, 0
    %2752 = vmatprep.subr.mxu0 0.0
    %2753 = vmatpush1.msra.mxu0 %v2180
    %2754 = vmatprep.subr.mxu0 0.0
    %2755 = vmatpush1.msra.mxu0 %v2185
    %2756 = vmatprep.subr.mxu0 0.0
    %2757 = vmatpush1.msra.mxu0 %v2190
    %2758 = vmatprep.subr.mxu0 0.0
    %2759 = vmatpush1.msra.mxu0 %v2195
    %2760 = vmatprep.subr.mxu0 0.0
    %2761 = vmatpush1.msra.mxu0 0.0
    %2762 = vmatprep.subr.mxu0 0.0
    %2763 = vmatpush1.msra.mxu0 0.0
    %2764 = vmatprep.subr.mxu0 0.0
    %2765 = vmatpush1.msra.mxu0 0.0
    %2766 = vmatprep.subr.mxu0 0.0
    %2767 = vmatpush1.msra.mxu0 0.0
    %2768 = vmatprep.subr.mxu0 0.0
    %2769 = vmatpush1.msra.mxu0 0.0
    %2770 = vmatprep.subr.mxu0 0.0
    %2771 = vmatpush1.msra.mxu0 0.0
    %2772 = vmatprep.subr.mxu0 0.0
    %2773 = vmatpush1.msra.mxu0 0.0
    %2774 = vmatprep.subr.mxu0 0.0
    %2775 = vmatpush1.msra.mxu0 0.0
    %2776 = vmatprep.subr.mxu0 0.0
    %2777 = vmatpush1.msra.mxu0 0.0
    %2778 = vmatprep.subr.mxu0 0.0
    %2779 = vmatpush1.msra.mxu0 0.0
    %2780 = vmatprep.subr.mxu0 0.0
    %2781 = vmatpush1.msra.mxu0 0.0
    %2782 = vmatprep.subr.mxu0 0.0
    %2783 = vmatpush1.msra.mxu0 0.0
    %2784 = vmatprep.subr.mxu0 0.0
    %2785 = vmatpush1.msra.mxu0 0.0
    %2786 = vmatprep.subr.mxu0 0.0
    %2787 = vmatpush1.msra.mxu0 0.0
    %2788 = vmatprep.subr.mxu0 0.0
    %2789 = vmatpush1.msra.mxu0 0.0
    %2790 = vmatprep.subr.mxu0 0.0
    %2791 = vmatpush1.msra.mxu0 0.0
    %2792 = vmatprep.subr.mxu0 0.0
    %2793 = vmatpush1.msra.mxu0 0.0
    %2794 = vmatprep.subr.mxu0 0.0
    %2795 = vmatpush1.msra.mxu0 0.0
    %2796 = vmatprep.subr.mxu0 0.0
    %2797 = vmatpush1.msra.mxu0 0.0
    %2798 = vmatprep.subr.mxu0 0.0
    %2799 = vmatpush1.msra.mxu0 0.0
    %2800 = vmatprep.subr.mxu0 0.0
    %2801 = vmatpush1.msra.mxu0 0.0
    %2802 = vmatprep.subr.mxu0 0.0
    %2803 = vmatpush1.msra.mxu0 0.0
    %2804 = vmatprep.subr.mxu0 0.0
    %2805 = vmatpush1.msra.mxu0 0.0
    %2806 = vmatprep.subr.mxu0 0.0
    %2807 = vmatpush1.msra.mxu0 0.0
    %2808 = vmatprep.subr.mxu0 0.0
    %2809 = vmatpush1.msra.mxu0 0.0
    %2810 = vmatprep.subr.mxu0 0.0
    %2811 = vmatpush1.msra.mxu0 0.0
    %2812 = vmatprep.subr.mxu0 0.0
    %2813 = vmatpush1.msra.mxu0 0.0
    %2814 = vmatprep.subr.mxu0 0.0
    %2815 = vmatpush1.msra.mxu0 0.0
    %2816 = vmatprep.mubr.f32.mxu0 0.0
    %2817 = vmatmul.mubr.f32.gmra.mrb[0].mxu0 %v2717
    %v2818 = vpop.f32.mrb[0].mxu0
    %v2819 = vadd.f32 %v2658, %v2818
    %v2820 = vpop.f32.mrb[0].mxu0
    %2821 = vmatprep.mubr.f32.mxu0 0.0
    %2822 = vmatmul.mubr.f32.gmra.mrb[0].mxu0 %v2720
    %v2823 = vpop.f32.mrb[0].mxu0
    %v2824 = vadd.f32 %v2663, %v2823
    %v2825 = vpop.f32.mrb[0].mxu0
    %2826 = vmatprep.mubr.f32.mxu0 0.0
    %2827 = vmatmul.mubr.f32.gmra.mrb[0].mxu0 %v2723
    %v2828 = vpop.f32.mrb[0].mxu0
    %v2829 = vadd.f32 %v2668, %v2828
    %v2830 = vpop.f32.mrb[0].mxu0
    %2831 = vmatprep.mubr.f32.mxu0 0.0
    %2832 = vmatmul.mubr.f32.gmra.mrb[0].mxu0 %v2726
    %v2833 = vpop.f32.mrb[0].mxu0
    %v2834 = vadd.f32 %v2673, %v2833
    %v2835 = vpop.f32.mrb[0].mxu0
    %2836 = vmatprep.mubr.f32.mxu0 0.0
    %2837 = vmatmul.mubr.f32.gmra.mrb[0].mxu0 %v2729
    %v2838 = vpop.f32.mrb[0].mxu0
    %v2839 = vadd.f32 %v2678, %v2838
    %v2840 = vpop.f32.mrb[0].mxu0
    %2841 = vmatprep.mubr.f32.mxu0 0.0
    %2842 = vmatmul.mubr.f32.gmra.mrb[0].mxu0 %v2732
    %v2843 = vpop.f32.mrb[0].mxu0
    %v2844 = vadd.f32 %v2683, %v2843
    %v2845 = vpop.f32.mrb[0].mxu0
    %2846 = vmatprep.mubr.f32.mxu0 0.0
    %2847 = vmatmul.mubr.f32.gmra.mrb[0].mxu0 %v2735
    %v2848 = vpop.f32.mrb[0].mxu0
    %v2849 = vadd.f32 %v2688, %v2848
    %v2850 = vpop.f32.mrb[0].mxu0
    %2851 = vmatprep.mubr.f32.mxu0 0.0
    %2852 = vmatmul.mubr.f32.gmra.mrb[0].mxu0 %v2738
    %v2853 = vpop.f32.mrb[0].mxu0
    %v2854 = vadd.f32 %v2693, %v2853
    %v2855 = vpop.f32.mrb[0].mxu0
    %2856 = vmatprep.mubr.f32.mxu0 0.0
    %2857 = vmatmul.mubr.f32.gmra.mrb[0].mxu0 %v2741
    %v2858 = vpop.f32.mrb[0].mxu0
    %v2859 = vadd.f32 %v2698, %v2858
    %v2860 = vpop.f32.mrb[0].mxu0
    %2861 = vmatprep.mubr.f32.mxu0 0.0
    %2862 = vmatmul.mubr.f32.gmra.mrb[0].mxu0 %v2744
    %v2863 = vpop.f32.mrb[0].mxu0
    %v2864 = vadd.f32 %v2703, %v2863
    %v2865 = vpop.f32.mrb[0].mxu0
    %2866 = vmatprep.mubr.f32.mxu0 0.0
    %2867 = vmatmul.mubr.f32.gmra.mrb[0].mxu0 %v2747
    %v2868 = vpop.f32.mrb[0].mxu0
    %v2869 = vadd.f32 %v2708, %v2868
    %v2870 = vpop.f32.mrb[0].mxu0
    %2871 = vmatprep.mubr.f32.mxu0 0.0
    %2872 = vmatmul.mubr.f32.gmra.mrb[0].mxu0 %v2750
    %v2873 = vpop.f32.mrb[0].mxu0
    %v2874 = vadd.f32 %v2713, %v2873
    %v2875 = vpop.f32.mrb[0].mxu0
    %2876 = vdwg.mxu0
    %s2877 = scalar_lea.vmem [#allocation11], 288
    %v2878 = vld [vmem:[%s2877] sm:$0xff]
    %v2879 = vld [vmem:[%s2877 + $0x8] sm:$0xff]
    %v2880 = vld [vmem:[%s2877 + $0x10] sm:$0xff]
    %v2881 = vld [vmem:[%s2877 + $0x18] sm:$0xff]
    %v2882 = vld [vmem:[%s2877 + $0x20] sm:$0xff]
    %v2883 = vld [vmem:[%s2877 + $0x28] sm:$0xff]
    %v2884 = vld [vmem:[%s2877 + $0x30] sm:$0xff]
    %v2885 = vld [vmem:[%s2877 + $0x38] sm:$0xff]
    %v2886 = vld [vmem:[%s2877 + $0x40] sm:$0xff]
    %v2887 = vld [vmem:[%s2877 + $0x48] sm:$0xff]
    %v2888 = vld [vmem:[%s2877 + $0x50] sm:$0xff]
    %v2889 = vld [vmem:[%s2877 + $0x58] sm:$0xff]
    %v2891 = vsel %vm162, %v2878, 0
    %v2894 = vsel %vm162, %v2879, 0
    %v2897 = vsel %vm162, %v2880, 0
    %v2900 = vsel %vm162, %v2881, 0
    %v2903 = vsel %vm162, %v2882, 0
    %v2906 = vsel %vm162, %v2883, 0
    %v2909 = vsel %vm162, %v2884, 0
    %v2912 = vsel %vm162, %v2885, 0
    %v2915 = vsel %vm162, %v2886, 0
    %v2918 = vsel %vm162, %v2887, 0
    %v2921 = vsel %vm162, %v2888, 0
    %v2924 = vsel %vm162, %v2889, 0
    %2926 = vmatprep.subr.mxu0 0.0
    %2927 = vmatpush1.msra.mxu0 %v2282
    %2928 = vmatprep.subr.mxu0 0.0
    %2929 = vmatpush1.msra.mxu0 %v2287
    %2930 = vmatprep.subr.mxu0 0.0
    %2931 = vmatpush1.msra.mxu0 %v2292
    %2932 = vmatprep.subr.mxu0 0.0
    %2933 = vmatpush1.msra.mxu0 %v2297
    %2934 = vmatprep.subr.mxu0 0.0
    %2935 = vmatpush1.msra.mxu0 0.0
    %2936 = vmatprep.subr.mxu0 0.0
    %2937 = vmatpush1.msra.mxu0 0.0
    %2938 = vmatprep.subr.mxu0 0.0
    %2939 = vmatpush1.msra.mxu0 0.0
    %2940 = vmatprep.subr.mxu0 0.0
    %2941 = vmatpush1.msra.mxu0 0.0
    %2942 = vmatprep.subr.mxu0 0.0
    %2943 = vmatpush1.msra.mxu0 0.0
    %2944 = vmatprep.subr.mxu0 0.0
    %2945 = vmatpush1.msra.mxu0 0.0
    %2946 = vmatprep.subr.mxu0 0.0
    %2947 = vmatpush1.msra.mxu0 0.0
    %2948 = vmatprep.subr.mxu0 0.0
    %2949 = vmatpush1.msra.mxu0 0.0
    %2950 = vmatprep.subr.mxu0 0.0
    %2951 = vmatpush1.msra.mxu0 0.0
    %2952 = vmatprep.subr.mxu0 0.0
    %2953 = vmatpush1.msra.mxu0 0.0
    %2954 = vmatprep.subr.mxu0 0.0
    %2955 = vmatpush1.msra.mxu0 0.0
    %2956 = vmatprep.subr.mxu0 0.0
    %2957 = vmatpush1.msra.mxu0 0.0
    %2958 = vmatprep.subr.mxu0 0.0
    %2959 = vmatpush1.msra.mxu0 0.0
    %2960 = vmatprep.subr.mxu0 0.0
    %2961 = vmatpush1.msra.mxu0 0.0
    %2962 = vmatprep.subr.mxu0 0.0
    %2963 = vmatpush1.msra.mxu0 0.0
    %2964 = vmatprep.subr.mxu0 0.0
    %2965 = vmatpush1.msra.mxu0 0.0
    %2966 = vmatprep.subr.mxu0 0.0
    %2967 = vmatpush1.msra.mxu0 0.0
    %2968 = vmatprep.subr.mxu0 0.0
    %2969 = vmatpush1.msra.mxu0 0.0
    %2970 = vmatprep.subr.mxu0 0.0
    %2971 = vmatpush1.msra.mxu0 0.0
    %2972 = vmatprep.subr.mxu0 0.0
    %2973 = vmatpush1.msra.mxu0 0.0
    %2974 = vmatprep.subr.mxu0 0.0
    %2975 = vmatpush1.msra.mxu0 0.0
    %2976 = vmatprep.subr.mxu0 0.0
    %2977 = vmatpush1.msra.mxu0 0.0
    %2978 = vmatprep.subr.mxu0 0.0
    %2979 = vmatpush1.msra.mxu0 0.0
    %2980 = vmatprep.subr.mxu0 0.0
    %2981 = vmatpush1.msra.mxu0 0.0
    %2982 = vmatprep.subr.mxu0 0.0
    %2983 = vmatpush1.msra.mxu0 0.0
    %2984 = vmatprep.subr.mxu0 0.0
    %2985 = vmatpush1.msra.mxu0 0.0
    %2986 = vmatprep.subr.mxu0 0.0
    %2987 = vmatpush1.msra.mxu0 0.0
    %2988 = vmatprep.subr.mxu0 0.0
    %2989 = vmatpush1.msra.mxu0 0.0
    %2990 = vmatprep.mubr.f32.mxu0 0.0
    %2991 = vmatmul.mubr.f32.gmra.mrb[0].mxu0 %v2891
    %v2992 = vpop.f32.mrb[0].mxu0
    %v2993 = vadd.f32 0.0, %v2992
    %v2994 = vpop.f32.mrb[0].mxu0
    %2995 = vmatprep.mubr.f32.mxu0 0.0
    %2996 = vmatmul.mubr.f32.gmra.mrb[0].mxu0 %v2894
    %v2997 = vpop.f32.mrb[0].mxu0
    %v2998 = vadd.f32 0.0, %v2997
    %v2999 = vpop.f32.mrb[0].mxu0
    %3000 = vmatprep.mubr.f32.mxu0 0.0
    %3001 = vmatmul.mubr.f32.gmra.mrb[0].mxu0 %v2897
    %v3002 = vpop.f32.mrb[0].mxu0
    %v3003 = vadd.f32 0.0, %v3002
    %v3004 = vpop.f32.mrb[0].mxu0
    %3005 = vmatprep.mubr.f32.mxu0 0.0
    %3006 = vmatmul.mubr.f32.gmra.mrb[0].mxu0 %v2900
    %v3007 = vpop.f32.mrb[0].mxu0
    %v3008 = vadd.f32 0.0, %v3007
    %v3009 = vpop.f32.mrb[0].mxu0
    %3010 = vmatprep.mubr.f32.mxu0 0.0
    %3011 = vmatmul.mubr.f32.gmra.mrb[0].mxu0 %v2903
    %v3012 = vpop.f32.mrb[0].mxu0
    %v3013 = vadd.f32 0.0, %v3012
    %v3014 = vpop.f32.mrb[0].mxu0
    %3015 = vmatprep.mubr.f32.mxu0 0.0
    %3016 = vmatmul.mubr.f32.gmra.mrb[0].mxu0 %v2906
    %v3017 = vpop.f32.mrb[0].mxu0
    %v3018 = vadd.f32 0.0, %v3017
    %v3019 = vpop.f32.mrb[0].mxu0
    %3020 = vmatprep.mubr.f32.mxu0 0.0
    %3021 = vmatmul.mubr.f32.gmra.mrb[0].mxu0 %v2909
    %v3022 = vpop.f32.mrb[0].mxu0
    %v3023 = vadd.f32 0.0, %v3022
    %v3024 = vpop.f32.mrb[0].mxu0
    %3025 = vmatprep.mubr.f32.mxu0 0.0
    %3026 = vmatmul.mubr.f32.gmra.mrb[0].mxu0 %v2912
    %v3027 = vpop.f32.mrb[0].mxu0
    %v3028 = vadd.f32 0.0, %v3027
    %v3029 = vpop.f32.mrb[0].mxu0
    %3030 = vmatprep.mubr.f32.mxu0 0.0
    %3031 = vmatmul.mubr.f32.gmra.mrb[0].mxu0 %v2915
    %v3032 = vpop.f32.mrb[0].mxu0
    %v3033 = vadd.f32 0.0, %v3032
    %v3034 = vpop.f32.mrb[0].mxu0
    %3035 = vmatprep.mubr.f32.mxu0 0.0
    %3036 = vmatmul.mubr.f32.gmra.mrb[0].mxu0 %v2918
    %v3037 = vpop.f32.mrb[0].mxu0
    %v3038 = vadd.f32 0.0, %v3037
    %v3039 = vpop.f32.mrb[0].mxu0
    %3040 = vmatprep.mubr.f32.mxu0 0.0
    %3041 = vmatmul.mubr.f32.gmra.mrb[0].mxu0 %v2921
    %v3042 = vpop.f32.mrb[0].mxu0
    %v3043 = vadd.f32 0.0, %v3042
    %v3044 = vpop.f32.mrb[0].mxu0
    %3045 = vmatprep.mubr.f32.mxu0 0.0
    %3046 = vmatmul.mubr.f32.gmra.mrb[0].mxu0 %v2924
    %v3047 = vpop.f32.mrb[0].mxu0
    %v3048 = vadd.f32 0.0, %v3047
    %v3049 = vpop.f32.mrb[0].mxu0
    %3050 = vdwg.mxu0
    %v3051 = vadd.f32 %v2819, %v2993
    %v3052 = vadd.f32 %v2824, %v2998
    %v3053 = vadd.f32 %v2829, %v3003
    %v3054 = vadd.f32 %v2834, %v3008
    %v3055 = vadd.f32 %v2839, %v3013
    %v3056 = vadd.f32 %v2844, %v3018
    %v3057 = vadd.f32 %v2849, %v3023
    %v3058 = vadd.f32 %v2854, %v3028
    %v3059 = vadd.f32 %v2859, %v3033
    %v3060 = vadd.f32 %v2864, %v3038
    %v3061 = vadd.f32 %v2869, %v3043
    %v3062 = vadd.f32 %v2874, %v3048
    %3063 = vset.pattern.permute.xlu0 10
    %3064 = vperm.xlu0 %3063, %v150
    %v3065 = vpop.permute.xlu0 %3064
    %3067 = vset.pattern.permute.xlu0 10
    %3068 = vperm.xlu0 %3067, %v151
    %v3069 = vpop.permute.xlu0 %3068
    %3071 = vset.pattern.permute.xlu0 10
    %3072 = vperm.xlu0 %3071, %v152
    %v3073 = vpop.permute.xlu0 %3072
    %3075 = vset.pattern.permute.xlu0 10
    %3076 = vperm.xlu0 %3075, %v153
    %v3077 = vpop.permute.xlu0 %3076
    %3079 = vset.pattern.permute.xlu0 10
    %3080 = vperm.xlu0 %3079, %v154
    %v3081 = vpop.permute.xlu0 %3080
    %3083 = vset.pattern.permute.xlu0 10
    %3084 = vperm.xlu0 %3083, %v155
    %v3085 = vpop.permute.xlu0 %3084
    %3087 = vset.pattern.permute.xlu0 10
    %3088 = vperm.xlu0 %3087, %v156
    %v3089 = vpop.permute.xlu0 %3088
    %3091 = vset.pattern.permute.xlu0 10
    %3092 = vperm.xlu0 %3091, %v157
    %v3093 = vpop.permute.xlu0 %3092
    %3095 = vset.pattern.permute.xlu0 10
    %3096 = vperm.xlu0 %3095, %v158
    %v3097 = vpop.permute.xlu0 %3096
    %3099 = vset.pattern.permute.xlu0 10
    %3100 = vperm.xlu0 %3099, %v159
    %v3101 = vpop.permute.xlu0 %3100
    %3103 = vset.pattern.permute.xlu0 10
    %3104 = vperm.xlu0 %3103, %v160
    %v3105 = vpop.permute.xlu0 %3104
    %3107 = vset.pattern.permute.xlu0 10
    %3108 = vperm.xlu0 %3107, %v161
    %v3109 = vpop.permute.xlu0 %3108
    %v3111 = vadd.f32 %v3051, %v3065
    %v3112 = vadd.f32 %v3052, %v3069
    %v3113 = vadd.f32 %v3053, %v3073
    %v3114 = vadd.f32 %v3054, %v3077
    %v3115 = vadd.f32 %v3055, %v3081
    %v3116 = vadd.f32 %v3056, %v3085
    %v3117 = vadd.f32 %v3057, %v3089
    %v3118 = vadd.f32 %v3058, %v3093
    %v3119 = vadd.f32 %v3059, %v3097
    %v3120 = vadd.f32 %v3060, %v3101
    %v3121 = vadd.f32 %v3061, %v3105
    %v3122 = vadd.f32 %v3062, %v3109
    %v3123 = vmul.f32 %v2471, 0.5
    %v3124 = vmul.f32 %v2476, 0.5
    %v3125 = vmul.f32 %v2481, 0.5
    %v3126 = vmul.f32 %v2486, 0.5
    %v3127 = vmul.f32 %v2491, 0.5
    %v3128 = vmul.f32 %v2496, 0.5
    %v3129 = vmul.f32 %v2501, 0.5
    %v3130 = vmul.f32 %v2506, 0.5
    %v3131 = vmul.f32 %v2511, 0.5
    %v3132 = vmul.f32 %v2516, 0.5
    %v3133 = vmul.f32 %v2521, 0.5
    %v3134 = vmul.f32 %v2526, 0.5
    %v3135 = vmul.f32 %v2471, 0.70710677
    %v3136 = vmul.f32 %v2476, 0.70710677
    %v3137 = vmul.f32 %v2481, 0.70710677
    %v3138 = vmul.f32 %v2486, 0.70710677
    %v3139 = vmul.f32 %v2491, 0.70710677
    %v3140 = vmul.f32 %v2496, 0.70710677
    %v3141 = vmul.f32 %v2501, 0.70710677
    %v3142 = vmul.f32 %v2506, 0.70710677
    %v3143 = vmul.f32 %v2511, 0.70710677
    %v3144 = vmul.f32 %v2516, 0.70710677
    %v3145 = vmul.f32 %v2521, 0.70710677
    %v3146 = vmul.f32 %v2526, 0.70710677
    %v3147 = vand.u32 2147483647, %v3135
    %v3148 = vand.u32 2147483647, %v3136
    %v3149 = vand.u32 2147483647, %v3137
    %v3150 = vand.u32 2147483647, %v3138
    %v3151 = vand.u32 2147483647, %v3139
    %v3152 = vand.u32 2147483647, %v3140
    %v3153 = vand.u32 2147483647, %v3141
    %v3154 = vand.u32 2147483647, %v3142
    %v3155 = vand.u32 2147483647, %v3143
    %v3156 = vand.u32 2147483647, %v3144
    %v3157 = vand.u32 2147483647, %v3145
    %v3158 = vand.u32 2147483647, %v3146
    %v3159 = vmul.f32 %v3147, 0.5
    %v3160 = vmul.f32 %v3148, 0.5
    %v3161 = vmul.f32 %v3149, 0.5
    %v3162 = vmul.f32 %v3150, 0.5
    %v3163 = vmul.f32 %v3151, 0.5
    %v3164 = vmul.f32 %v3152, 0.5
    %v3165 = vmul.f32 %v3153, 0.5
    %v3166 = vmul.f32 %v3154, 0.5
    %v3167 = vmul.f32 %v3155, 0.5
    %v3168 = vmul.f32 %v3156, 0.5
    %v3169 = vmul.f32 %v3157, 0.5
    %v3170 = vmul.f32 %v3158, 0.5
    %v3171 = vadd.f32 %v3159, 1.0
    %v3172 = vadd.f32 %v3160, 1.0
    %v3173 = vadd.f32 %v3161, 1.0
    %v3174 = vadd.f32 %v3162, 1.0
    %v3175 = vadd.f32 %v3163, 1.0
    %v3176 = vadd.f32 %v3164, 1.0
    %v3177 = vadd.f32 %v3165, 1.0
    %v3178 = vadd.f32 %v3166, 1.0
    %v3179 = vadd.f32 %v3167, 1.0
    %v3180 = vadd.f32 %v3168, 1.0
    %v3181 = vadd.f32 %v3169, 1.0
    %v3182 = vadd.f32 %v3170, 1.0
    %v3183 = vrcp.pop %v3171
    %v3184 = vmul.f32 1.0, %v3183
    %v3185 = vrcp.pop %v3172
    %v3186 = vmul.f32 1.0, %v3185
    %v3187 = vrcp.pop %v3173
    %v3188 = vmul.f32 1.0, %v3187
    %v3189 = vrcp.pop %v3174
    %v3190 = vmul.f32 1.0, %v3189
    %v3191 = vrcp.pop %v3175
    %v3192 = vmul.f32 1.0, %v3191
    %v3193 = vrcp.pop %v3176
    %v3194 = vmul.f32 1.0, %v3193
    %v3195 = vrcp.pop %v3177
    %v3196 = vmul.f32 1.0, %v3195
    %v3197 = vrcp.pop %v3178
    %v3198 = vmul.f32 1.0, %v3197
    %v3199 = vrcp.pop %v3179
    %v3200 = vmul.f32 1.0, %v3199
    %v3201 = vrcp.pop %v3180
    %v3202 = vmul.f32 1.0, %v3201
    %v3203 = vrcp.pop %v3181
    %v3204 = vmul.f32 1.0, %v3203
    %v3205 = vrcp.pop %v3182
    %v3206 = vmul.f32 1.0, %v3205
    %v3207 = vsub.f32 0.0, %v3147
    %v3208 = vsub.f32 0.0, %v3148
    %v3209 = vsub.f32 0.0, %v3149
    %v3210 = vsub.f32 0.0, %v3150
    %v3211 = vsub.f32 0.0, %v3151
    %v3212 = vsub.f32 0.0, %v3152
    %v3213 = vsub.f32 0.0, %v3153
    %v3214 = vsub.f32 0.0, %v3154
    %v3215 = vsub.f32 0.0, %v3155
    %v3216 = vsub.f32 0.0, %v3156
    %v3217 = vsub.f32 0.0, %v3157
    %v3218 = vsub.f32 0.0, %v3158
    %v3219 = vmul.f32 %v3207, %v3147
    %v3220 = vmul.f32 %v3208, %v3148
    %v3221 = vmul.f32 %v3209, %v3149
    %v3222 = vmul.f32 %v3210, %v3150
    %v3223 = vmul.f32 %v3211, %v3151
    %v3224 = vmul.f32 %v3212, %v3152
    %v3225 = vmul.f32 %v3213, %v3153
    %v3226 = vmul.f32 %v3214, %v3154
    %v3227 = vmul.f32 %v3215, %v3155
    %v3228 = vmul.f32 %v3216, %v3156
    %v3229 = vmul.f32 %v3217, %v3157
    %v3230 = vmul.f32 %v3218, %v3158
    %v3231 = vsub.f32 %v3219, 1.2655122
    %v3232 = vsub.f32 %v3220, 1.2655122
    %v3233 = vsub.f32 %v3221, 1.2655122
    %v3234 = vsub.f32 %v3222, 1.2655122
    %v3235 = vsub.f32 %v3223, 1.2655122
    %v3236 = vsub.f32 %v3224, 1.2655122
    %v3237 = vsub.f32 %v3225, 1.2655122
    %v3238 = vsub.f32 %v3226, 1.2655122
    %v3239 = vsub.f32 %v3227, 1.2655122
    %v3240 = vsub.f32 %v3228, 1.2655122
    %v3241 = vsub.f32 %v3229, 1.2655122
    %v3242 = vsub.f32 %v3230, 1.2655122
    %v3243 = vmul.f32 %v3184, 0.17087276
    %v3244 = vmul.f32 %v3186, 0.17087276
    %v3245 = vmul.f32 %v3188, 0.17087276
    %v3246 = vmul.f32 %v3190, 0.17087276
    %v3247 = vmul.f32 %v3192, 0.17087276
    %v3248 = vmul.f32 %v3194, 0.17087276
    %v3249 = vmul.f32 %v3196, 0.17087276
    %v3250 = vmul.f32 %v3198, 0.17087276
    %v3251 = vmul.f32 %v3200, 0.17087276
    %v3252 = vmul.f32 %v3202, 0.17087276
    %v3253 = vmul.f32 %v3204, 0.17087276
    %v3254 = vmul.f32 %v3206, 0.17087276
    %v3255 = vadd.f32 %v3243, -0.82215226
    %v3256 = vadd.f32 %v3244, -0.82215226
    %v3257 = vadd.f32 %v3245, -0.82215226
    %v3258 = vadd.f32 %v3246, -0.82215226
    %v3259 = vadd.f32 %v3247, -0.82215226
    %v3260 = vadd.f32 %v3248, -0.82215226
    %v3261 = vadd.f32 %v3249, -0.82215226
    %v3262 = vadd.f32 %v3250, -0.82215226
    %v3263 = vadd.f32 %v3251, -0.82215226
    %v3264 = vadd.f32 %v3252, -0.82215226
    %v3265 = vadd.f32 %v3253, -0.82215226
    %v3266 = vadd.f32 %v3254, -0.82215226
    %v3267 = vmul.f32 %v3184, %v3255
    %v3268 = vmul.f32 %v3186, %v3256
    %v3269 = vmul.f32 %v3188, %v3257
    %v3270 = vmul.f32 %v3190, %v3258
    %v3271 = vmul.f32 %v3192, %v3259
    %v3272 = vmul.f32 %v3194, %v3260
    %v3273 = vmul.f32 %v3196, %v3261
    %v3274 = vmul.f32 %v3198, %v3262
    %v3275 = vmul.f32 %v3200, %v3263
    %v3276 = vmul.f32 %v3202, %v3264
    %v3277 = vmul.f32 %v3204, %v3265
    %v3278 = vmul.f32 %v3206, %v3266
    %v3279 = vadd.f32 %v3267, 1.4885159
    %v3280 = vadd.f32 %v3268, 1.4885159
    %v3281 = vadd.f32 %v3269, 1.4885159
    %v3282 = vadd.f32 %v3270, 1.4885159
    %v3283 = vadd.f32 %v3271, 1.4885159
    %v3284 = vadd.f32 %v3272, 1.4885159
    %v3285 = vadd.f32 %v3273, 1.4885159
    %v3286 = vadd.f32 %v3274, 1.4885159
    %v3287 = vadd.f32 %v3275, 1.4885159
    %v3288 = vadd.f32 %v3276, 1.4885159
    %v3289 = vadd.f32 %v3277, 1.4885159
    %v3290 = vadd.f32 %v3278, 1.4885159
    %v3291 = vmul.f32 %v3184, %v3279
    %v3292 = vmul.f32 %v3186, %v3280
    %v3293 = vmul.f32 %v3188, %v3281
    %v3294 = vmul.f32 %v3190, %v3282
    %v3295 = vmul.f32 %v3192, %v3283
    %v3296 = vmul.f32 %v3194, %v3284
    %v3297 = vmul.f32 %v3196, %v3285
    %v3298 = vmul.f32 %v3198, %v3286
    %v3299 = vmul.f32 %v3200, %v3287
    %v3300 = vmul.f32 %v3202, %v3288
    %v3301 = vmul.f32 %v3204, %v3289
    %v3302 = vmul.f32 %v3206, %v3290
    %v3303 = vadd.f32 %v3291, -1.135204
    %v3304 = vadd.f32 %v3292, -1.135204
    %v3305 = vadd.f32 %v3293, -1.135204
    %v3306 = vadd.f32 %v3294, -1.135204
    %v3307 = vadd.f32 %v3295, -1.135204
    %v3308 = vadd.f32 %v3296, -1.135204
    %v3309 = vadd.f32 %v3297, -1.135204
    %v3310 = vadd.f32 %v3298, -1.135204
    %v3311 = vadd.f32 %v3299, -1.135204
    %v3312 = vadd.f32 %v3300, -1.135204
    %v3313 = vadd.f32 %v3301, -1.135204
    %v3314 = vadd.f32 %v3302, -1.135204
    %v3315 = vmul.f32 %v3184, %v3303
    %v3316 = vmul.f32 %v3186, %v3304
    %v3317 = vmul.f32 %v3188, %v3305
    %v3318 = vmul.f32 %v3190, %v3306
    %v3319 = vmul.f32 %v3192, %v3307
    %v3320 = vmul.f32 %v3194, %v3308
    %v3321 = vmul.f32 %v3196, %v3309
    %v3322 = vmul.f32 %v3198, %v3310
    %v3323 = vmul.f32 %v3200, %v3311
    %v3324 = vmul.f32 %v3202, %v3312
    %v3325 = vmul.f32 %v3204, %v3313
    %v3326 = vmul.f32 %v3206, %v3314
    %v3327 = vadd.f32 %v3315, 0.27886808
    %v3328 = vadd.f32 %v3316, 0.27886808
    %v3329 = vadd.f32 %v3317, 0.27886808
    %v3330 = vadd.f32 %v3318, 0.27886808
    %v3331 = vadd.f32 %v3319, 0.27886808
    %v3332 = vadd.f32 %v3320, 0.27886808
    %v3333 = vadd.f32 %v3321, 0.27886808
    %v3334 = vadd.f32 %v3322, 0.27886808
    %v3335 = vadd.f32 %v3323, 0.27886808
    %v3336 = vadd.f32 %v3324, 0.27886808
    %v3337 = vadd.f32 %v3325, 0.27886808
    %v3338 = vadd.f32 %v3326, 0.27886808
    %v3339 = vmul.f32 %v3184, %v3327
    %v3340 = vmul.f32 %v3186, %v3328
    %v3341 = vmul.f32 %v3188, %v3329
    %v3342 = vmul.f32 %v3190, %v3330
    %v3343 = vmul.f32 %v3192, %v3331
    %v3344 = vmul.f32 %v3194, %v3332
    %v3345 = vmul.f32 %v3196, %v3333
    %v3346 = vmul.f32 %v3198, %v3334
    %v3347 = vmul.f32 %v3200, %v3335
    %v3348 = vmul.f32 %v3202, %v3336
    %v3349 = vmul.f32 %v3204, %v3337
    %v3350 = vmul.f32 %v3206, %v3338
    %v3351 = vadd.f32 %v3339, -0.18628806
    %v3352 = vadd.f32 %v3340, -0.18628806
    %v3353 = vadd.f32 %v3341, -0.18628806
    %v3354 = vadd.f32 %v3342, -0.18628806
    %v3355 = vadd.f32 %v3343, -0.18628806
    %v3356 = vadd.f32 %v3344, -0.18628806
    %v3357 = vadd.f32 %v3345, -0.18628806
    %v3358 = vadd.f32 %v3346, -0.18628806
    %v3359 = vadd.f32 %v3347, -0.18628806
    %v3360 = vadd.f32 %v3348, -0.18628806
    %v3361 = vadd.f32 %v3349, -0.18628806
    %v3362 = vadd.f32 %v3350, -0.18628806
    %v3363 = vmul.f32 %v3184, %v3351
    %v3364 = vmul.f32 %v3186, %v3352
    %v3365 = vmul.f32 %v3188, %v3353
    %v3366 = vmul.f32 %v3190, %v3354
    %v3367 = vmul.f32 %v3192, %v3355
    %v3368 = vmul.f32 %v3194, %v3356
    %v3369 = vmul.f32 %v3196, %v3357
    %v3370 = vmul.f32 %v3198, %v3358
    %v3371 = vmul.f32 %v3200, %v3359
    %v3372 = vmul.f32 %v3202, %v3360
    %v3373 = vmul.f32 %v3204, %v3361
    %v3374 = vmul.f32 %v3206, %v3362
    %v3375 = vadd.f32 %v3363, 0.09678418
    %v3376 = vadd.f32 %v3364, 0.09678418
    %v3377 = vadd.f32 %v3365, 0.09678418
    %v3378 = vadd.f32 %v3366, 0.09678418
    %v3379 = vadd.f32 %v3367, 0.09678418
    %v3380 = vadd.f32 %v3368, 0.09678418
    %v3381 = vadd.f32 %v3369, 0.09678418
    %v3382 = vadd.f32 %v3370, 0.09678418
    %v3383 = vadd.f32 %v3371, 0.09678418
    %v3384 = vadd.f32 %v3372, 0.09678418
    %v3385 = vadd.f32 %v3373, 0.09678418
    %v3386 = vadd.f32 %v3374, 0.09678418
    %v3387 = vmul.f32 %v3184, %v3375
    %v3388 = vmul.f32 %v3186, %v3376
    %v3389 = vmul.f32 %v3188, %v3377
    %v3390 = vmul.f32 %v3190, %v3378
    %v3391 = vmul.f32 %v3192, %v3379
    %v3392 = vmul.f32 %v3194, %v3380
    %v3393 = vmul.f32 %v3196, %v3381
    %v3394 = vmul.f32 %v3198, %v3382
    %v3395 = vmul.f32 %v3200, %v3383
    %v3396 = vmul.f32 %v3202, %v3384
    %v3397 = vmul.f32 %v3204, %v3385
    %v3398 = vmul.f32 %v3206, %v3386
    %v3399 = vadd.f32 %v3387, 0.37409195
    %v3400 = vadd.f32 %v3388, 0.37409195
    %v3401 = vadd.f32 %v3389, 0.37409195
    %v3402 = vadd.f32 %v3390, 0.37409195
    %v3403 = vadd.f32 %v3391, 0.37409195
    %v3404 = vadd.f32 %v3392, 0.37409195
    %v3405 = vadd.f32 %v3393, 0.37409195
    %v3406 = vadd.f32 %v3394, 0.37409195
    %v3407 = vadd.f32 %v3395, 0.37409195
    %v3408 = vadd.f32 %v3396, 0.37409195
    %v3409 = vadd.f32 %v3397, 0.37409195
    %v3410 = vadd.f32 %v3398, 0.37409195
    %v3411 = vmul.f32 %v3184, %v3399
    %v3412 = vmul.f32 %v3186, %v3400
    %v3413 = vmul.f32 %v3188, %v3401
    %v3414 = vmul.f32 %v3190, %v3402
    %v3415 = vmul.f32 %v3192, %v3403
    %v3416 = vmul.f32 %v3194, %v3404
    %v3417 = vmul.f32 %v3196, %v3405
    %v3418 = vmul.f32 %v3198, %v3406
    %v3419 = vmul.f32 %v3200, %v3407
    %v3420 = vmul.f32 %v3202, %v3408
    %v3421 = vmul.f32 %v3204, %v3409
    %v3422 = vmul.f32 %v3206, %v3410
    %v3423 = vadd.f32 %v3411, 1.0000237
    %v3424 = vadd.f32 %v3412, 1.0000237
    %v3425 = vadd.f32 %v3413, 1.0000237
    %v3426 = vadd.f32 %v3414, 1.0000237
    %v3427 = vadd.f32 %v3415, 1.0000237
    %v3428 = vadd.f32 %v3416, 1.0000237
    %v3429 = vadd.f32 %v3417, 1.0000237
    %v3430 = vadd.f32 %v3418, 1.0000237
    %v3431 = vadd.f32 %v3419, 1.0000237
    %v3432 = vadd.f32 %v3420, 1.0000237
    %v3433 = vadd.f32 %v3421, 1.0000237
    %v3434 = vadd.f32 %v3422, 1.0000237
    %v3435 = vmul.f32 %v3184, %v3423
    %v3436 = vmul.f32 %v3186, %v3424
    %v3437 = vmul.f32 %v3188, %v3425
    %v3438 = vmul.f32 %v3190, %v3426
    %v3439 = vmul.f32 %v3192, %v3427
    %v3440 = vmul.f32 %v3194, %v3428
    %v3441 = vmul.f32 %v3196, %v3429
    %v3442 = vmul.f32 %v3198, %v3430
    %v3443 = vmul.f32 %v3200, %v3431
    %v3444 = vmul.f32 %v3202, %v3432
    %v3445 = vmul.f32 %v3204, %v3433
    %v3446 = vmul.f32 %v3206, %v3434
    %v3447 = vadd.f32 %v3231, %v3435
    %v3448 = vadd.f32 %v3232, %v3436
    %v3449 = vadd.f32 %v3233, %v3437
    %v3450 = vadd.f32 %v3234, %v3438
    %v3451 = vadd.f32 %v3235, %v3439
    %v3452 = vadd.f32 %v3236, %v3440
    %v3453 = vadd.f32 %v3237, %v3441
    %v3454 = vadd.f32 %v3238, %v3442
    %v3455 = vadd.f32 %v3239, %v3443
    %v3456 = vadd.f32 %v3240, %v3444
    %v3457 = vadd.f32 %v3241, %v3445
    %v3458 = vadd.f32 %v3242, %v3446
    %v3459 = vmul.f32 %v3447, 1.442695
    %v3460 = vpow.pop %v3459
    %v3461 = vmul.f32 %v3448, 1.442695
    %v3462 = vpow.pop %v3461
    %v3463 = vmul.f32 %v3449, 1.442695
    %v3464 = vpow.pop %v3463
    %v3465 = vmul.f32 %v3450, 1.442695
    %v3466 = vpow.pop %v3465
    %v3467 = vmul.f32 %v3451, 1.442695
    %v3468 = vpow.pop %v3467
    %v3469 = vmul.f32 %v3452, 1.442695
    %v3470 = vpow.pop %v3469
    %v3471 = vmul.f32 %v3453, 1.442695
    %v3472 = vpow.pop %v3471
    %v3473 = vmul.f32 %v3454, 1.442695
    %v3474 = vpow.pop %v3473
    %v3475 = vmul.f32 %v3455, 1.442695
    %v3476 = vpow.pop %v3475
    %v3477 = vmul.f32 %v3456, 1.442695
    %v3478 = vpow.pop %v3477
    %v3479 = vmul.f32 %v3457, 1.442695
    %v3480 = vpow.pop %v3479
    %v3481 = vmul.f32 %v3458, 1.442695
    %v3482 = vpow.pop %v3481
    %v3483 = vmul.f32 %v3184, %v3460
    %v3484 = vmul.f32 %v3186, %v3462
    %v3485 = vmul.f32 %v3188, %v3464
    %v3486 = vmul.f32 %v3190, %v3466
    %v3487 = vmul.f32 %v3192, %v3468
    %v3488 = vmul.f32 %v3194, %v3470
    %v3489 = vmul.f32 %v3196, %v3472
    %v3490 = vmul.f32 %v3198, %v3474
    %v3491 = vmul.f32 %v3200, %v3476
    %v3492 = vmul.f32 %v3202, %v3478
    %v3493 = vmul.f32 %v3204, %v3480
    %v3494 = vmul.f32 %v3206, %v3482
    %vm3495 = vcmp.ge.f32.partialorder %v3135, 0.0
    %vm3496 = vcmp.ge.f32.partialorder %v3136, 0.0
    %vm3497 = vcmp.ge.f32.partialorder %v3137, 0.0
    %vm3498 = vcmp.ge.f32.partialorder %v3138, 0.0
    %vm3499 = vcmp.ge.f32.partialorder %v3139, 0.0
    %vm3500 = vcmp.ge.f32.partialorder %v3140, 0.0
    %vm3501 = vcmp.ge.f32.partialorder %v3141, 0.0
    %vm3502 = vcmp.ge.f32.partialorder %v3142, 0.0
    %vm3503 = vcmp.ge.f32.partialorder %v3143, 0.0
    %vm3504 = vcmp.ge.f32.partialorder %v3144, 0.0
    %vm3505 = vcmp.ge.f32.partialorder %v3145, 0.0
    %vm3506 = vcmp.ge.f32.partialorder %v3146, 0.0
    %v3507 = vsub.f32 1.0, %v3483
    %v3508 = vsub.f32 1.0, %v3484
    %v3509 = vsub.f32 1.0, %v3485
    %v3510 = vsub.f32 1.0, %v3486
    %v3511 = vsub.f32 1.0, %v3487
    %v3512 = vsub.f32 1.0, %v3488
    %v3513 = vsub.f32 1.0, %v3489
    %v3514 = vsub.f32 1.0, %v3490
    %v3515 = vsub.f32 1.0, %v3491
    %v3516 = vsub.f32 1.0, %v3492
    %v3517 = vsub.f32 1.0, %v3493
    %v3518 = vsub.f32 1.0, %v3494
    %v3519 = vsub.f32 %v3483, 1.0
    %v3520 = vsub.f32 %v3484, 1.0
    %v3521 = vsub.f32 %v3485, 1.0
    %v3522 = vsub.f32 %v3486, 1.0
    %v3523 = vsub.f32 %v3487, 1.0
    %v3524 = vsub.f32 %v3488, 1.0
    %v3525 = vsub.f32 %v3489, 1.0
    %v3526 = vsub.f32 %v3490, 1.0
    %v3527 = vsub.f32 %v3491, 1.0
    %v3528 = vsub.f32 %v3492, 1.0
    %v3529 = vsub.f32 %v3493, 1.0
    %v3530 = vsub.f32 %v3494, 1.0
    %v3531 = vsel %vm3495, %v3507, %v3519
    %v3532 = vsel %vm3496, %v3508, %v3520
    %v3533 = vsel %vm3497, %v3509, %v3521
    %v3534 = vsel %vm3498, %v3510, %v3522
    %v3535 = vsel %vm3499, %v3511, %v3523
    %v3536 = vsel %vm3500, %v3512, %v3524
    %v3537 = vsel %vm3501, %v3513, %v3525
    %v3538 = vsel %vm3502, %v3514, %v3526
    %v3539 = vsel %vm3503, %v3515, %v3527
    %v3540 = vsel %vm3504, %v3516, %v3528
    %v3541 = vsel %vm3505, %v3517, %v3529
    %v3542 = vsel %vm3506, %v3518, %v3530
    %v3543 = vadd.f32 %v3531, 1.0
    %v3544 = vadd.f32 %v3532, 1.0
    %v3545 = vadd.f32 %v3533, 1.0
    %v3546 = vadd.f32 %v3534, 1.0
    %v3547 = vadd.f32 %v3535, 1.0
    %v3548 = vadd.f32 %v3536, 1.0
    %v3549 = vadd.f32 %v3537, 1.0
    %v3550 = vadd.f32 %v3538, 1.0
    %v3551 = vadd.f32 %v3539, 1.0
    %v3552 = vadd.f32 %v3540, 1.0
    %v3553 = vadd.f32 %v3541, 1.0
    %v3554 = vadd.f32 %v3542, 1.0
    %v3555 = vmul.f32 %v3123, %v3543
    %v3556 = vmul.f32 %v3124, %v3544
    %v3557 = vmul.f32 %v3125, %v3545
    %v3558 = vmul.f32 %v3126, %v3546
    %v3559 = vmul.f32 %v3127, %v3547
    %v3560 = vmul.f32 %v3128, %v3548
    %v3561 = vmul.f32 %v3129, %v3549
    %v3562 = vmul.f32 %v3130, %v3550
    %v3563 = vmul.f32 %v3131, %v3551
    %v3564 = vmul.f32 %v3132, %v3552
    %v3565 = vmul.f32 %v3133, %v3553
    %v3566 = vmul.f32 %v3134, %v3554
    %v3567 = vmul.f32 %v3111, 0.5
    %v3568 = vmul.f32 %v3112, 0.5
    %v3569 = vmul.f32 %v3113, 0.5
    %v3570 = vmul.f32 %v3114, 0.5
    %v3571 = vmul.f32 %v3115, 0.5
    %v3572 = vmul.f32 %v3116, 0.5
    %v3573 = vmul.f32 %v3117, 0.5
    %v3574 = vmul.f32 %v3118, 0.5
    %v3575 = vmul.f32 %v3119, 0.5
    %v3576 = vmul.f32 %v3120, 0.5
    %v3577 = vmul.f32 %v3121, 0.5
    %v3578 = vmul.f32 %v3122, 0.5
    %v3579 = vmul.f32 %v3111, 0.70710677
    %v3580 = vmul.f32 %v3112, 0.70710677
    %v3581 = vmul.f32 %v3113, 0.70710677
    %v3582 = vmul.f32 %v3114, 0.70710677
    %v3583 = vmul.f32 %v3115, 0.70710677
    %v3584 = vmul.f32 %v3116, 0.70710677
    %v3585 = vmul.f32 %v3117, 0.70710677
    %v3586 = vmul.f32 %v3118, 0.70710677
    %v3587 = vmul.f32 %v3119, 0.70710677
    %v3588 = vmul.f32 %v3120, 0.70710677
    %v3589 = vmul.f32 %v3121, 0.70710677
    %v3590 = vmul.f32 %v3122, 0.70710677
    %v3591 = vand.u32 2147483647, %v3579
    %v3592 = vand.u32 2147483647, %v3580
    %v3593 = vand.u32 2147483647, %v3581
    %v3594 = vand.u32 2147483647, %v3582
    %v3595 = vand.u32 2147483647, %v3583
    %v3596 = vand.u32 2147483647, %v3584
    %v3597 = vand.u32 2147483647, %v3585
    %v3598 = vand.u32 2147483647, %v3586
    %v3599 = vand.u32 2147483647, %v3587
    %v3600 = vand.u32 2147483647, %v3588
    %v3601 = vand.u32 2147483647, %v3589
    %v3602 = vand.u32 2147483647, %v3590
    %v3603 = vmul.f32 %v3591, 0.5
    %v3604 = vmul.f32 %v3592, 0.5
    %v3605 = vmul.f32 %v3593, 0.5
    %v3606 = vmul.f32 %v3594, 0.5
    %v3607 = vmul.f32 %v3595, 0.5
    %v3608 = vmul.f32 %v3596, 0.5
    %v3609 = vmul.f32 %v3597, 0.5
    %v3610 = vmul.f32 %v3598, 0.5
    %v3611 = vmul.f32 %v3599, 0.5
    %v3612 = vmul.f32 %v3600, 0.5
    %v3613 = vmul.f32 %v3601, 0.5
    %v3614 = vmul.f32 %v3602, 0.5
    %v3615 = vadd.f32 %v3603, 1.0
    %v3616 = vadd.f32 %v3604, 1.0
    %v3617 = vadd.f32 %v3605, 1.0
    %v3618 = vadd.f32 %v3606, 1.0
    %v3619 = vadd.f32 %v3607, 1.0
    %v3620 = vadd.f32 %v3608, 1.0
    %v3621 = vadd.f32 %v3609, 1.0
    %v3622 = vadd.f32 %v3610, 1.0
    %v3623 = vadd.f32 %v3611, 1.0
    %v3624 = vadd.f32 %v3612, 1.0
    %v3625 = vadd.f32 %v3613, 1.0
    %v3626 = vadd.f32 %v3614, 1.0
    %v3627 = vrcp.pop %v3615
    %v3628 = vmul.f32 1.0, %v3627
    %v3629 = vrcp.pop %v3616
    %v3630 = vmul.f32 1.0, %v3629
    %v3631 = vrcp.pop %v3617
    %v3632 = vmul.f32 1.0, %v3631
    %v3633 = vrcp.pop %v3618
    %v3634 = vmul.f32 1.0, %v3633
    %v3635 = vrcp.pop %v3619
    %v3636 = vmul.f32 1.0, %v3635
    %v3637 = vrcp.pop %v3620
    %v3638 = vmul.f32 1.0, %v3637
    %v3639 = vrcp.pop %v3621
    %v3640 = vmul.f32 1.0, %v3639
    %v3641 = vrcp.pop %v3622
    %v3642 = vmul.f32 1.0, %v3641
    %v3643 = vrcp.pop %v3623
    %v3644 = vmul.f32 1.0, %v3643
    %v3645 = vrcp.pop %v3624
    %v3646 = vmul.f32 1.0, %v3645
    %v3647 = vrcp.pop %v3625
    %v3648 = vmul.f32 1.0, %v3647
    %v3649 = vrcp.pop %v3626
    %v3650 = vmul.f32 1.0, %v3649
    %v3651 = vsub.f32 0.0, %v3591
    %v3652 = vsub.f32 0.0, %v3592
    %v3653 = vsub.f32 0.0, %v3593
    %v3654 = vsub.f32 0.0, %v3594
    %v3655 = vsub.f32 0.0, %v3595
    %v3656 = vsub.f32 0.0, %v3596
    %v3657 = vsub.f32 0.0, %v3597
    %v3658 = vsub.f32 0.0, %v3598
    %v3659 = vsub.f32 0.0, %v3599
    %v3660 = vsub.f32 0.0, %v3600
    %v3661 = vsub.f32 0.0, %v3601
    %v3662 = vsub.f32 0.0, %v3602
    %v3663 = vmul.f32 %v3651, %v3591
    %v3664 = vmul.f32 %v3652, %v3592
    %v3665 = vmul.f32 %v3653, %v3593
    %v3666 = vmul.f32 %v3654, %v3594
    %v3667 = vmul.f32 %v3655, %v3595
    %v3668 = vmul.f32 %v3656, %v3596
    %v3669 = vmul.f32 %v3657, %v3597
    %v3670 = vmul.f32 %v3658, %v3598
    %v3671 = vmul.f32 %v3659, %v3599
    %v3672 = vmul.f32 %v3660, %v3600
    %v3673 = vmul.f32 %v3661, %v3601
    %v3674 = vmul.f32 %v3662, %v3602
    %v3675 = vsub.f32 %v3663, 1.2655122
    %v3676 = vsub.f32 %v3664, 1.2655122
    %v3677 = vsub.f32 %v3665, 1.2655122
    %v3678 = vsub.f32 %v3666, 1.2655122
    %v3679 = vsub.f32 %v3667, 1.2655122
    %v3680 = vsub.f32 %v3668, 1.2655122
    %v3681 = vsub.f32 %v3669, 1.2655122
    %v3682 = vsub.f32 %v3670, 1.2655122
    %v3683 = vsub.f32 %v3671, 1.2655122
    %v3684 = vsub.f32 %v3672, 1.2655122
    %v3685 = vsub.f32 %v3673, 1.2655122
    %v3686 = vsub.f32 %v3674, 1.2655122
    %v3687 = vmul.f32 %v3628, 0.17087276
    %v3688 = vmul.f32 %v3630, 0.17087276
    %v3689 = vmul.f32 %v3632, 0.17087276
    %v3690 = vmul.f32 %v3634, 0.17087276
    %v3691 = vmul.f32 %v3636, 0.17087276
    %v3692 = vmul.f32 %v3638, 0.17087276
    %v3693 = vmul.f32 %v3640, 0.17087276
    %v3694 = vmul.f32 %v3642, 0.17087276
    %v3695 = vmul.f32 %v3644, 0.17087276
    %v3696 = vmul.f32 %v3646, 0.17087276
    %v3697 = vmul.f32 %v3648, 0.17087276
    %v3698 = vmul.f32 %v3650, 0.17087276
    %v3699 = vadd.f32 %v3687, -0.82215226
    %v3700 = vadd.f32 %v3688, -0.82215226
    %v3701 = vadd.f32 %v3689, -0.82215226
    %v3702 = vadd.f32 %v3690, -0.82215226
    %v3703 = vadd.f32 %v3691, -0.82215226
    %v3704 = vadd.f32 %v3692, -0.82215226
    %v3705 = vadd.f32 %v3693, -0.82215226
    %v3706 = vadd.f32 %v3694, -0.82215226
    %v3707 = vadd.f32 %v3695, -0.82215226
    %v3708 = vadd.f32 %v3696, -0.82215226
    %v3709 = vadd.f32 %v3697, -0.82215226
    %v3710 = vadd.f32 %v3698, -0.82215226
    %v3711 = vmul.f32 %v3628, %v3699
    %v3712 = vmul.f32 %v3630, %v3700
    %v3713 = vmul.f32 %v3632, %v3701
    %v3714 = vmul.f32 %v3634, %v3702
    %v3715 = vmul.f32 %v3636, %v3703
    %v3716 = vmul.f32 %v3638, %v3704
    %v3717 = vmul.f32 %v3640, %v3705
    %v3718 = vmul.f32 %v3642, %v3706
    %v3719 = vmul.f32 %v3644, %v3707
    %v3720 = vmul.f32 %v3646, %v3708
    %v3721 = vmul.f32 %v3648, %v3709
    %v3722 = vmul.f32 %v3650, %v3710
    %v3723 = vadd.f32 %v3711, 1.4885159
    %v3724 = vadd.f32 %v3712, 1.4885159
    %v3725 = vadd.f32 %v3713, 1.4885159
    %v3726 = vadd.f32 %v3714, 1.4885159
    %v3727 = vadd.f32 %v3715, 1.4885159
    %v3728 = vadd.f32 %v3716, 1.4885159
    %v3729 = vadd.f32 %v3717, 1.4885159
    %v3730 = vadd.f32 %v3718, 1.4885159
    %v3731 = vadd.f32 %v3719, 1.4885159
    %v3732 = vadd.f32 %v3720, 1.4885159
    %v3733 = vadd.f32 %v3721, 1.4885159
    %v3734 = vadd.f32 %v3722, 1.4885159
    %v3735 = vmul.f32 %v3628, %v3723
    %v3736 = vmul.f32 %v3630, %v3724
    %v3737 = vmul.f32 %v3632, %v3725
    %v3738 = vmul.f32 %v3634, %v3726
    %v3739 = vmul.f32 %v3636, %v3727
    %v3740 = vmul.f32 %v3638, %v3728
    %v3741 = vmul.f32 %v3640, %v3729
    %v3742 = vmul.f32 %v3642, %v3730
    %v3743 = vmul.f32 %v3644, %v3731
    %v3744 = vmul.f32 %v3646, %v3732
    %v3745 = vmul.f32 %v3648, %v3733
    %v3746 = vmul.f32 %v3650, %v3734
    %v3747 = vadd.f32 %v3735, -1.135204
    %v3748 = vadd.f32 %v3736, -1.135204
    %v3749 = vadd.f32 %v3737, -1.135204
    %v3750 = vadd.f32 %v3738, -1.135204
    %v3751 = vadd.f32 %v3739, -1.135204
    %v3752 = vadd.f32 %v3740, -1.135204
    %v3753 = vadd.f32 %v3741, -1.135204
    %v3754 = vadd.f32 %v3742, -1.135204
    %v3755 = vadd.f32 %v3743, -1.135204
    %v3756 = vadd.f32 %v3744, -1.135204
    %v3757 = vadd.f32 %v3745, -1.135204
    %v3758 = vadd.f32 %v3746, -1.135204
    %v3759 = vmul.f32 %v3628, %v3747
    %v3760 = vmul.f32 %v3630, %v3748
    %v3761 = vmul.f32 %v3632, %v3749
    %v3762 = vmul.f32 %v3634, %v3750
    %v3763 = vmul.f32 %v3636, %v3751
    %v3764 = vmul.f32 %v3638, %v3752
    %v3765 = vmul.f32 %v3640, %v3753
    %v3766 = vmul.f32 %v3642, %v3754
    %v3767 = vmul.f32 %v3644, %v3755
    %v3768 = vmul.f32 %v3646, %v3756
    %v3769 = vmul.f32 %v3648, %v3757
    %v3770 = vmul.f32 %v3650, %v3758
    %v3771 = vadd.f32 %v3759, 0.27886808
    %v3772 = vadd.f32 %v3760, 0.27886808
    %v3773 = vadd.f32 %v3761, 0.27886808
    %v3774 = vadd.f32 %v3762, 0.27886808
    %v3775 = vadd.f32 %v3763, 0.27886808
    %v3776 = vadd.f32 %v3764, 0.27886808
    %v3777 = vadd.f32 %v3765, 0.27886808
    %v3778 = vadd.f32 %v3766, 0.27886808
    %v3779 = vadd.f32 %v3767, 0.27886808
    %v3780 = vadd.f32 %v3768, 0.27886808
    %v3781 = vadd.f32 %v3769, 0.27886808
    %v3782 = vadd.f32 %v3770, 0.27886808
    %v3783 = vmul.f32 %v3628, %v3771
    %v3784 = vmul.f32 %v3630, %v3772
    %v3785 = vmul.f32 %v3632, %v3773
    %v3786 = vmul.f32 %v3634, %v3774
    %v3787 = vmul.f32 %v3636, %v3775
    %v3788 = vmul.f32 %v3638, %v3776
    %v3789 = vmul.f32 %v3640, %v3777
    %v3790 = vmul.f32 %v3642, %v3778
    %v3791 = vmul.f32 %v3644, %v3779
    %v3792 = vmul.f32 %v3646, %v3780
    %v3793 = vmul.f32 %v3648, %v3781
    %v3794 = vmul.f32 %v3650, %v3782
    %v3795 = vadd.f32 %v3783, -0.18628806
    %v3796 = vadd.f32 %v3784, -0.18628806
    %v3797 = vadd.f32 %v3785, -0.18628806
    %v3798 = vadd.f32 %v3786, -0.18628806
    %v3799 = vadd.f32 %v3787, -0.18628806
    %v3800 = vadd.f32 %v3788, -0.18628806
    %v3801 = vadd.f32 %v3789, -0.18628806
    %v3802 = vadd.f32 %v3790, -0.18628806
    %v3803 = vadd.f32 %v3791, -0.18628806
    %v3804 = vadd.f32 %v3792, -0.18628806
    %v3805 = vadd.f32 %v3793, -0.18628806
    %v3806 = vadd.f32 %v3794, -0.18628806
    %v3807 = vmul.f32 %v3628, %v3795
    %v3808 = vmul.f32 %v3630, %v3796
    %v3809 = vmul.f32 %v3632, %v3797
    %v3810 = vmul.f32 %v3634, %v3798
    %v3811 = vmul.f32 %v3636, %v3799
    %v3812 = vmul.f32 %v3638, %v3800
    %v3813 = vmul.f32 %v3640, %v3801
    %v3814 = vmul.f32 %v3642, %v3802
    %v3815 = vmul.f32 %v3644, %v3803
    %v3816 = vmul.f32 %v3646, %v3804
    %v3817 = vmul.f32 %v3648, %v3805
    %v3818 = vmul.f32 %v3650, %v3806
    %v3819 = vadd.f32 %v3807, 0.09678418
    %v3820 = vadd.f32 %v3808, 0.09678418
    %v3821 = vadd.f32 %v3809, 0.09678418
    %v3822 = vadd.f32 %v3810, 0.09678418
    %v3823 = vadd.f32 %v3811, 0.09678418
    %v3824 = vadd.f32 %v3812, 0.09678418
    %v3825 = vadd.f32 %v3813, 0.09678418
    %v3826 = vadd.f32 %v3814, 0.09678418
    %v3827 = vadd.f32 %v3815, 0.09678418
    %v3828 = vadd.f32 %v3816, 0.09678418
    %v3829 = vadd.f32 %v3817, 0.09678418
    %v3830 = vadd.f32 %v3818, 0.09678418
    %v3831 = vmul.f32 %v3628, %v3819
    %v3832 = vmul.f32 %v3630, %v3820
    %v3833 = vmul.f32 %v3632, %v3821
    %v3834 = vmul.f32 %v3634, %v3822
    %v3835 = vmul.f32 %v3636, %v3823
    %v3836 = vmul.f32 %v3638, %v3824
    %v3837 = vmul.f32 %v3640, %v3825
    %v3838 = vmul.f32 %v3642, %v3826
    %v3839 = vmul.f32 %v3644, %v3827
    %v3840 = vmul.f32 %v3646, %v3828
    %v3841 = vmul.f32 %v3648, %v3829
    %v3842 = vmul.f32 %v3650, %v3830
    %v3843 = vadd.f32 %v3831, 0.37409195
    %v3844 = vadd.f32 %v3832, 0.37409195
    %v3845 = vadd.f32 %v3833, 0.37409195
    %v3846 = vadd.f32 %v3834, 0.37409195
    %v3847 = vadd.f32 %v3835, 0.37409195
    %v3848 = vadd.f32 %v3836, 0.37409195
    %v3849 = vadd.f32 %v3837, 0.37409195
    %v3850 = vadd.f32 %v3838, 0.37409195
    %v3851 = vadd.f32 %v3839, 0.37409195
    %v3852 = vadd.f32 %v3840, 0.37409195
    %v3853 = vadd.f32 %v3841, 0.37409195
    %v3854 = vadd.f32 %v3842, 0.37409195
    %v3855 = vmul.f32 %v3628, %v3843
    %v3856 = vmul.f32 %v3630, %v3844
    %v3857 = vmul.f32 %v3632, %v3845
    %v3858 = vmul.f32 %v3634, %v3846
    %v3859 = vmul.f32 %v3636, %v3847
    %v3860 = vmul.f32 %v3638, %v3848
    %v3861 = vmul.f32 %v3640, %v3849
    %v3862 = vmul.f32 %v3642, %v3850
    %v3863 = vmul.f32 %v3644, %v3851
    %v3864 = vmul.f32 %v3646, %v3852
    %v3865 = vmul.f32 %v3648, %v3853
    %v3866 = vmul.f32 %v3650, %v3854
    %v3867 = vadd.f32 %v3855, 1.0000237
    %v3868 = vadd.f32 %v3856, 1.0000237
    %v3869 = vadd.f32 %v3857, 1.0000237
    %v3870 = vadd.f32 %v3858, 1.0000237
    %v3871 = vadd.f32 %v3859, 1.0000237
    %v3872 = vadd.f32 %v3860, 1.0000237
    %v3873 = vadd.f32 %v3861, 1.0000237
    %v3874 = vadd.f32 %v3862, 1.0000237
    %v3875 = vadd.f32 %v3863, 1.0000237
    %v3876 = vadd.f32 %v3864, 1.0000237
    %v3877 = vadd.f32 %v3865, 1.0000237
    %v3878 = vadd.f32 %v3866, 1.0000237
    %v3879 = vmul.f32 %v3628, %v3867
    %v3880 = vmul.f32 %v3630, %v3868
    %v3881 = vmul.f32 %v3632, %v3869
    %v3882 = vmul.f32 %v3634, %v3870
    %v3883 = vmul.f32 %v3636, %v3871
    %v3884 = vmul.f32 %v3638, %v3872
    %v3885 = vmul.f32 %v3640, %v3873
    %v3886 = vmul.f32 %v3642, %v3874
    %v3887 = vmul.f32 %v3644, %v3875
    %v3888 = vmul.f32 %v3646, %v3876
    %v3889 = vmul.f32 %v3648, %v3877
    %v3890 = vmul.f32 %v3650, %v3878
    %v3891 = vadd.f32 %v3675, %v3879
    %v3892 = vadd.f32 %v3676, %v3880
    %v3893 = vadd.f32 %v3677, %v3881
    %v3894 = vadd.f32 %v3678, %v3882
    %v3895 = vadd.f32 %v3679, %v3883
    %v3896 = vadd.f32 %v3680, %v3884
    %v3897 = vadd.f32 %v3681, %v3885
    %v3898 = vadd.f32 %v3682, %v3886
    %v3899 = vadd.f32 %v3683, %v3887
    %v3900 = vadd.f32 %v3684, %v3888
    %v3901 = vadd.f32 %v3685, %v3889
    %v3902 = vadd.f32 %v3686, %v3890
    %v3903 = vmul.f32 %v3891, 1.442695
    %v3904 = vpow.pop %v3903
    %v3905 = vmul.f32 %v3892, 1.442695
    %v3906 = vpow.pop %v3905
    %v3907 = vmul.f32 %v3893, 1.442695
    %v3908 = vpow.pop %v3907
    %v3909 = vmul.f32 %v3894, 1.442695
    %v3910 = vpow.pop %v3909
    %v3911 = vmul.f32 %v3895, 1.442695
    %v3912 = vpow.pop %v3911
    %v3913 = vmul.f32 %v3896, 1.442695
    %v3914 = vpow.pop %v3913
    %v3915 = vmul.f32 %v3897, 1.442695
    %v3916 = vpow.pop %v3915
    %v3917 = vmul.f32 %v3898, 1.442695
    %v3918 = vpow.pop %v3917
    %v3919 = vmul.f32 %v3899, 1.442695
    %v3920 = vpow.pop %v3919
    %v3921 = vmul.f32 %v3900, 1.442695
    %v3922 = vpow.pop %v3921
    %v3923 = vmul.f32 %v3901, 1.442695
    %v3924 = vpow.pop %v3923
    %v3925 = vmul.f32 %v3902, 1.442695
    %v3926 = vpow.pop %v3925
    %v3927 = vmul.f32 %v3628, %v3904
    %v3928 = vmul.f32 %v3630, %v3906
    %v3929 = vmul.f32 %v3632, %v3908
    %v3930 = vmul.f32 %v3634, %v3910
    %v3931 = vmul.f32 %v3636, %v3912
    %v3932 = vmul.f32 %v3638, %v3914
    %v3933 = vmul.f32 %v3640, %v3916
    %v3934 = vmul.f32 %v3642, %v3918
    %v3935 = vmul.f32 %v3644, %v3920
    %v3936 = vmul.f32 %v3646, %v3922
    %v3937 = vmul.f32 %v3648, %v3924
    %v3938 = vmul.f32 %v3650, %v3926
    %vm3939 = vcmp.ge.f32.partialorder %v3579, 0.0
    %vm3940 = vcmp.ge.f32.partialorder %v3580, 0.0
    %vm3941 = vcmp.ge.f32.partialorder %v3581, 0.0
    %vm3942 = vcmp.ge.f32.partialorder %v3582, 0.0
    %vm3943 = vcmp.ge.f32.partialorder %v3583, 0.0
    %vm3944 = vcmp.ge.f32.partialorder %v3584, 0.0
    %vm3945 = vcmp.ge.f32.partialorder %v3585, 0.0
    %vm3946 = vcmp.ge.f32.partialorder %v3586, 0.0
    %vm3947 = vcmp.ge.f32.partialorder %v3587, 0.0
    %vm3948 = vcmp.ge.f32.partialorder %v3588, 0.0
    %vm3949 = vcmp.ge.f32.partialorder %v3589, 0.0
    %vm3950 = vcmp.ge.f32.partialorder %v3590, 0.0
    %v3951 = vsub.f32 1.0, %v3927
    %v3952 = vsub.f32 1.0, %v3928
    %v3953 = vsub.f32 1.0, %v3929
    %v3954 = vsub.f32 1.0, %v3930
    %v3955 = vsub.f32 1.0, %v3931
    %v3956 = vsub.f32 1.0, %v3932
    %v3957 = vsub.f32 1.0, %v3933
    %v3958 = vsub.f32 1.0, %v3934
    %v3959 = vsub.f32 1.0, %v3935
    %v3960 = vsub.f32 1.0, %v3936
    %v3961 = vsub.f32 1.0, %v3937
    %v3962 = vsub.f32 1.0, %v3938
    %v3963 = vsub.f32 %v3927, 1.0
    %v3964 = vsub.f32 %v3928, 1.0
    %v3965 = vsub.f32 %v3929, 1.0
    %v3966 = vsub.f32 %v3930, 1.0
    %v3967 = vsub.f32 %v3931, 1.0
    %v3968 = vsub.f32 %v3932, 1.0
    %v3969 = vsub.f32 %v3933, 1.0
    %v3970 = vsub.f32 %v3934, 1.0
    %v3971 = vsub.f32 %v3935, 1.0
    %v3972 = vsub.f32 %v3936, 1.0
    %v3973 = vsub.f32 %v3937, 1.0
    %v3974 = vsub.f32 %v3938, 1.0
    %v3975 = vsel %vm3939, %v3951, %v3963
    %v3976 = vsel %vm3940, %v3952, %v3964
    %v3977 = vsel %vm3941, %v3953, %v3965
    %v3978 = vsel %vm3942, %v3954, %v3966
    %v3979 = vsel %vm3943, %v3955, %v3967
    %v3980 = vsel %vm3944, %v3956, %v3968
    %v3981 = vsel %vm3945, %v3957, %v3969
    %v3982 = vsel %vm3946, %v3958, %v3970
    %v3983 = vsel %vm3947, %v3959, %v3971
    %v3984 = vsel %vm3948, %v3960, %v3972
    %v3985 = vsel %vm3949, %v3961, %v3973
    %v3986 = vsel %vm3950, %v3962, %v3974
    %v3987 = vadd.f32 %v3975, 1.0
    %v3988 = vadd.f32 %v3976, 1.0
    %v3989 = vadd.f32 %v3977, 1.0
    %v3990 = vadd.f32 %v3978, 1.0
    %v3991 = vadd.f32 %v3979, 1.0
    %v3992 = vadd.f32 %v3980, 1.0
    %v3993 = vadd.f32 %v3981, 1.0
    %v3994 = vadd.f32 %v3982, 1.0
    %v3995 = vadd.f32 %v3983, 1.0
    %v3996 = vadd.f32 %v3984, 1.0
    %v3997 = vadd.f32 %v3985, 1.0
    %v3998 = vadd.f32 %v3986, 1.0
    %v3999 = vmul.f32 %v3567, %v3987
    %v4000 = vmul.f32 %v3568, %v3988
    %v4001 = vmul.f32 %v3569, %v3989
    %v4002 = vmul.f32 %v3570, %v3990
    %v4003 = vmul.f32 %v3571, %v3991
    %v4004 = vmul.f32 %v3572, %v3992
    %v4005 = vmul.f32 %v3573, %v3993
    %v4006 = vmul.f32 %v3574, %v3994
    %v4007 = vmul.f32 %v3575, %v3995
    %v4008 = vmul.f32 %v3576, %v3996
    %v4009 = vmul.f32 %v3577, %v3997
    %v4010 = vmul.f32 %v3578, %v3998
    %v4011 = vld [vmem:[#allocation13] sm:$0xff]
    %v4012 = vld [vmem:[#allocation13 + $0x8] sm:$0xff]
    %v4013 = vld [vmem:[#allocation13 + $0x10] sm:$0xff]
    %v4014 = vld [vmem:[#allocation13 + $0x18] sm:$0xff]
    %v4015 = vmul.f32 %v2471, %v3999
    %v4016 = vmul.f32 %v2476, %v4000
    %v4017 = vmul.f32 %v2481, %v4001
    %v4018 = vmul.f32 %v2486, %v4002
    %v4019 = vmul.f32 %v2491, %v4003
    %v4020 = vmul.f32 %v2496, %v4004
    %v4021 = vmul.f32 %v2501, %v4005
    %v4022 = vmul.f32 %v2506, %v4006
    %v4023 = vmul.f32 %v2511, %v4007
    %v4024 = vmul.f32 %v2516, %v4008
    %v4025 = vmul.f32 %v2521, %v4009
    %v4026 = vmul.f32 %v2526, %v4010
    %v4027 = vmul.f32 %v3111, %v3555
    %v4028 = vmul.f32 %v3112, %v3556
    %v4029 = vmul.f32 %v3113, %v3557
    %v4030 = vmul.f32 %v3114, %v3558
    %v4031 = vmul.f32 %v3115, %v3559
    %v4032 = vmul.f32 %v3116, %v3560
    %v4033 = vmul.f32 %v3117, %v3561
    %v4034 = vmul.f32 %v3118, %v3562
    %v4035 = vmul.f32 %v3119, %v3563
    %v4036 = vmul.f32 %v3120, %v3564
    %v4037 = vmul.f32 %v3121, %v3565
    %v4038 = vmul.f32 %v3122, %v3566
    %v4039 = vadd.f32 %v4015, %v4027
    %v4040 = vadd.f32 %v4016, %v4028
    %v4041 = vadd.f32 %v4017, %v4029
    %v4042 = vadd.f32 %v4018, %v4030
    %v4043 = vadd.f32 %v4019, %v4031
    %v4044 = vadd.f32 %v4020, %v4032
    %v4045 = vadd.f32 %v4021, %v4033
    %v4046 = vadd.f32 %v4022, %v4034
    %v4047 = vadd.f32 %v4023, %v4035
    %v4048 = vadd.f32 %v4024, %v4036
    %v4049 = vadd.f32 %v4025, %v4037
    %v4050 = vadd.f32 %v4026, %v4038
    %4051 = vset.pattern.permute.xlu0 8
    %4052 = vperm.xlu0 %4051, %v150
    %v4053 = vpop.permute.xlu0 %4052
    %4055 = vset.pattern.permute.xlu0 8
    %4056 = vperm.xlu0 %4055, %v151
    %v4057 = vpop.permute.xlu0 %4056
    %4059 = vset.pattern.permute.xlu0 8
    %4060 = vperm.xlu0 %4059, %v152
    %v4061 = vpop.permute.xlu0 %4060
    %4063 = vset.pattern.permute.xlu0 8
    %4064 = vperm.xlu0 %4063, %v153
    %v4065 = vpop.permute.xlu0 %4064
    %vm4067 = vcmask 785408
    %v4069 = vsel %vm4067, %v4011, 0
    %v4072 = vsel %vm4067, %v4012, 0
    %v4075 = vsel %vm4067, %v4013, 0
    %v4078 = vsel %vm4067, %v4014, 0
    %4080 = vmatprep.subr.mxu0 0.0
    %4081 = vmatpush1.msra.mxu0 %v4039
    %4082 = vmatprep.subr.mxu0 0.0
    %4083 = vmatpush1.msra.mxu0 %v4040
    %4084 = vmatprep.subr.mxu0 0.0
    %4085 = vmatpush1.msra.mxu0 %v4041
    %4086 = vmatprep.subr.mxu0 0.0
    %4087 = vmatpush1.msra.mxu0 %v4042
    %4088 = vmatprep.subr.mxu0 0.0
    %4089 = vmatpush1.msra.mxu0 %v4043
    %4090 = vmatprep.subr.mxu0 0.0
    %4091 = vmatpush1.msra.mxu0 %v4044
    %4092 = vmatprep.subr.mxu0 0.0
    %4093 = vmatpush1.msra.mxu0 %v4045
    %4094 = vmatprep.subr.mxu0 0.0
    %4095 = vmatpush1.msra.mxu0 %v4046
    %4096 = vmatprep.subr.mxu0 0.0
    %4097 = vmatpush1.msra.mxu0 %v4047
    %4098 = vmatprep.subr.mxu0 0.0
    %4099 = vmatpush1.msra.mxu0 %v4048
    %4100 = vmatprep.subr.mxu0 0.0
    %4101 = vmatpush1.msra.mxu0 %v4049
    %4102 = vmatprep.subr.mxu0 0.0
    %4103 = vmatpush1.msra.mxu0 %v4050
    %4104 = vmatprep.subr.mxu0 0.0
    %4105 = vmatpush1.msra.mxu0 0.0
    %4106 = vmatprep.subr.mxu0 0.0
    %4107 = vmatpush1.msra.mxu0 0.0
    %4108 = vmatprep.subr.mxu0 0.0
    %4109 = vmatpush1.msra.mxu0 0.0
    %4110 = vmatprep.subr.mxu0 0.0
    %4111 = vmatpush1.msra.mxu0 0.0
    %4112 = vmatprep.subr.mxu0 0.0
    %4113 = vmatpush1.msra.mxu0 0.0
    %4114 = vmatprep.subr.mxu0 0.0
    %4115 = vmatpush1.msra.mxu0 0.0
    %4116 = vmatprep.subr.mxu0 0.0
    %4117 = vmatpush1.msra.mxu0 0.0
    %4118 = vmatprep.subr.mxu0 0.0
    %4119 = vmatpush1.msra.mxu0 0.0
    %4120 = vmatprep.subr.mxu0 0.0
    %4121 = vmatpush1.msra.mxu0 0.0
    %4122 = vmatprep.subr.mxu0 0.0
    %4123 = vmatpush1.msra.mxu0 0.0
    %4124 = vmatprep.subr.mxu0 0.0
    %4125 = vmatpush1.msra.mxu0 0.0
    %4126 = vmatprep.subr.mxu0 0.0
    %4127 = vmatpush1.msra.mxu0 0.0
    %4128 = vmatprep.subr.mxu0 0.0
    %4129 = vmatpush1.msra.mxu0 0.0
    %4130 = vmatprep.subr.mxu0 0.0
    %4131 = vmatpush1.msra.mxu0 0.0
    %4132 = vmatprep.subr.mxu0 0.0
    %4133 = vmatpush1.msra.mxu0 0.0
    %4134 = vmatprep.subr.mxu0 0.0
    %4135 = vmatpush1.msra.mxu0 0.0
    %4136 = vmatprep.subr.mxu0 0.0
    %4137 = vmatpush1.msra.mxu0 0.0
    %4138 = vmatprep.subr.mxu0 0.0
    %4139 = vmatpush1.msra.mxu0 0.0
    %4140 = vmatprep.subr.mxu0 0.0
    %4141 = vmatpush1.msra.mxu0 0.0
    %4142 = vmatprep.subr.mxu0 0.0
    %4143 = vmatpush1.msra.mxu0 0.0
    %4144 = vmatprep.mubr.f32.mxu0 0.0
    %4145 = vmatmul.mubr.f32.gmra.mrb[0].mxu0 %v4069
    %v4146 = vpop.f32.mrb[0].mxu0
    %v4147 = vadd.f32 %v4053, %v4146
    %v4148 = vpop.f32.mrb[0].mxu0
    %4149 = vmatprep.mubr.f32.mxu0 0.0
    %4150 = vmatmul.mubr.f32.gmra.mrb[0].mxu0 %v4072
    %v4151 = vpop.f32.mrb[0].mxu0
    %v4152 = vadd.f32 %v4057, %v4151
    %v4153 = vpop.f32.mrb[0].mxu0
    %4154 = vmatprep.mubr.f32.mxu0 0.0
    %4155 = vmatmul.mubr.f32.gmra.mrb[0].mxu0 %v4075
    %v4156 = vpop.f32.mrb[0].mxu0
    %v4157 = vadd.f32 %v4061, %v4156
    %v4158 = vpop.f32.mrb[0].mxu0
    %4159 = vmatprep.mubr.f32.mxu0 0.0
    %4160 = vmatmul.mubr.f32.gmra.mrb[0].mxu0 %v4078
    %v4161 = vpop.f32.mrb[0].mxu0
    %v4162 = vadd.f32 %v4065, %v4161
    %v4163 = vpop.f32.mrb[0].mxu0
    %4164 = vdwg.mxu0
    %v4165 = vadd.f32 %v142, %v4147
    %v4166 = vadd.f32 %v143, %v4152
    %v4167 = vadd.f32 %v144, %v4157
    %v4168 = vadd.f32 %v145, %v4162
    %4169 = vst [vmem:[#allocation16] sm:$0xff] %v4165
    %4170 = vst [vmem:[#allocation16 + $0x8] sm:$0xff] %v4166
    %4171 = vst [vmem:[#allocation16 + $0x10] sm:$0xff] %v4167
    %4172 = vst [vmem:[#allocation16 + $0x18] sm:$0xff] %v4168
    // Predicated region
    $region70: #{forward.1} parent=1 // pred_check
      _
    $region71: #{forward.1} parent=1 // pred_check_branch
      %4174 = sbr.rel (0) target = $region73
    $region72: #{forward.1} parent=1 // pred_region
      %s4176 = ssub.s32 512, 512
      %4177 = vsyncadd [#allocation4], %s4176
      %s4178 = sshll.u32 [#allocation16], 4
      %s4179 = int_to_ptr.vmem [resolvable:$true] %s4178
      %4184 = dma.vmem_to_hbm [thread:$0]  %s4179, 512, %s9, [#allocation4], 128, 128, 8
    $region73: #{forward.1} parent=1 // pred_fallthru
      _
    // Predicated region
    $region74: #{forward.1} parent=1 // pred_check
      _
    $region75: #{forward.1} parent=1 // pred_check_branch
      %4186 = sbr.rel (0) target = $region77
    $region76: #{forward.1} parent=1 // pred_region
      %4187 = dma.done [#allocation4], 512
    $region77: #{forward.1} parent=1 // pred_fallthru
      _
    %4188 = vsyncpa [#allocation3], 1
    %4189 = vsyncpa [#allocation6], 1
    %4190 = vsyncpa [#allocation9], 1
    %4191 = vsyncpa [#allocation12], 1
    %4192 = vsyncpa [#allocation15], 1
    %4193 = vsyncpa [#allocation4], 1

</llo_original>
